<compile_context>
chip_gen: v7x
topology: tpu7x:2x2x1
jax: 0.10.0
libtpu: 0.0.40
codegen_flags: <defaults>
</compile_context>

<pallas_src>
import functools
import math

import jax
import jax.numpy as jnp
from jax import lax
from jax.experimental import pallas as pl
from jax.experimental.pallas import tpu as pltpu


# ----------------------------- Pallas kernels -----------------------------

def _pdam_fused_kernel(xps_ref, w1_ref, wd_ref, kt_ref, w2b_ref,
                       y_ref, stat_ref,
                       br_ref, pool_ref, stat_sc,
                       *, Ho, Wo, Wo_p, Trc, n_chunks, top, left):
    """Per-image fused PDAM forward (everything except the final BN affine).

    xps_ref : (1, Hh, Wh, 4*nIn) bf16  parity-merged zero-padded input planes
    w1_ref  : (nIn, Cs)          bf16  conv1 (1x1)
    wd_ref  : (3, 9*nIn, Cs)     bf16  dilated 3x3 conv taps, K-stacked
    kt_ref  : (Cs, Cs)           f32   ECA conv1d as a Toeplitz matrix
    w2b_ref : (4, Cs, nOut)      bf16  conv2 split into per-branch row blocks
                                       (branch order: d0, d1, add3, add4)
    y_ref   : (1, n_chunks, nOut, CP)  pre-BN output (channel-major per chunk)
    stat_ref: (1, 2, nOut)             per-image [sum, sum of squares]
    br_ref  : (4, n_chunks, CP, Cs)    bf16 branch scratch
    pool_ref: (4, Cs) f32              global-average-pool accumulators
    stat_sc : (2, nOut) f32            BN statistic accumulators
    """
    nIn = w1_ref.shape[0]
    Cs = w1_ref.shape[1]
    CP = Trc * Wo_p
    f32 = jnp.float32
    bf16 = jnp.bfloat16
    need_mask = (Wo_p != Wo) or (n_chunks * Trc != Ho)

    pool_ref[...] = jnp.zeros_like(pool_ref)
    stat_sc[...] = jnp.zeros_like(stat_sc)

    # Loop-invariant weight loads (hoisted out of the chunk loops).
    w1 = w1_ref[...]
    wds = [wd_ref[0], wd_ref[1], wd_ref[2]]

    def window(row0, q_r, q_c):
        # Output pixel (oy, ox) of a stride-2 tap reads padded-by-4 input pixel
        # (2*oy + q_r, 2*ox + q_c); in the parity-merged layout this is a dense
        # (Trc, Wo_p) window of the nIn-wide channel block of parity p.
        p = (q_r % 2) * 2 + (q_c % 2)
        v = xps_ref[0,
                    pl.ds(row0 + q_r // 2, Trc),
                    pl.ds(q_c // 2, Wo_p),
                    pl.ds(p * nIn, nIn)]
        # Wo_p is a multiple of 8, so this flatten is layout-preserving.
        return v.reshape(CP, nIn)

    # --------------- phase A: branches + pooling partial sums ---------------
    def phase_a(c, carry):
        row0 = c * Trc

        if need_mask:
            pix = lax.broadcasted_iota(jnp.int32, (CP, 1), 0)
            row = row0 + pix // Wo_p
            col = pix % Wo_p
            mask = ((row < Ho) & (col < Wo)).astype(f32)
        else:
            mask = None

        def valid(v):
            return v if mask is None else v * mask

        # Dilated 3x3 / stride-2 convs: 9 taps K-stacked -> one MXU matmul
        # per branch with K = 9*nIn (bf16 operands, f32 accumulation).
        dil = []
        for di, d in enumerate((1, 2, 4)):
            slab = jnp.concatenate(
                [window(row0, ky * d + 4 - d, kx * d + 4 - d)
                 for ky in range(3) for kx in range(3)], axis=1)
            dil.append(valid(jnp.dot(slab, wds[di],
                                     preferred_element_type=f32)))
        d1, d2, d3 = dil

        # conv1 (1x1) fused with the zero-padded 3x3/2 same max-pool
        # (MaxPool2dStaticSamePadding zero-pads, and conv1(0) == 0).
        d0 = None
        for ky in range(3):
            for kx in range(3):
                v = jnp.dot(window(row0, ky - top + 4, kx - left + 4), w1,
                            preferred_element_type=f32)
                d0 = v if d0 is None else jnp.maximum(d0, v)
        d0 = valid(d0)

        add3 = d1 + d2
        add4 = add3 + d3

        # ECA global-average-pool partial sums (sublane reductions keep the
        # MXU free for the convolutions).
        pool_ref[...] += jnp.concatenate(
            [jnp.sum(t, axis=0, keepdims=True) for t in (d0, d1, d2, d3)],
            axis=0)

        br_ref[0, c] = d0.astype(bf16)
        br_ref[1, c] = d1.astype(bf16)
        br_ref[2, c] = add3.astype(bf16)
        br_ref[3, c] = add4.astype(bf16)
        return carry

    lax.fori_loop(0, n_chunks, phase_a, 0)

    # ----------- phase B: ECA attention + branch softmax weights -----------
    pools = pool_ref[...] * (1.0 / float(Ho * Wo))                  # (4, Cs)
    z = jnp.dot(pools, kt_ref[...], preferred_element_type=f32)     # batched ECA
    a = jax.nn.sigmoid(z)
    m = jnp.max(a, axis=0, keepdims=True)
    e = jnp.exp(a - m)
    s = e / jnp.sum(e, axis=0, keepdims=True)                       # (4, Cs)
    s_t = jnp.transpose(s)                                          # (Cs, 4)
    # Fold the per-channel softmax scales into the conv2 weight blocks so the
    # (Npix, nIn) feature tensors are never concatenated / re-scaled.
    w2s = [(w2b_ref[i] * s_t[:, i:i + 1]).astype(bf16) for i in range(4)]

    # -------------- phase C: conv2 + BN statistics + store --------------
    def phase_c(c, carry):
        y = jnp.dot(br_ref[0, c], w2s[0], preferred_element_type=f32)
        for i in range(1, 4):
            y = y + jnp.dot(br_ref[i, c], w2s[i], preferred_element_type=f32)
        stat_sc[...] += jnp.concatenate(
            [jnp.sum(y, axis=0, keepdims=True),
             jnp.sum(y * y, axis=0, keepdims=True)], axis=0)
        # Channel-major (lane-dense) store of the pre-BN activations.
        # TODO(synk): if the per-chunk transpose ever saturates the XLU, move
        # it into the memory-bound BN pass below instead.
        y_ref[0, c] = jnp.transpose(y)
        return carry

    lax.fori_loop(0, n_chunks, phase_c, 0)

    stat_ref[0] = stat_sc[...]


def _bn_affine_kernel(y_ref, scale_ref, shift_ref, o_ref):
    # Per-channel BatchNorm affine on one (nOut, CP) lane-dense chunk; the
    # chunk-major -> pixel-major relayout is done by the output BlockSpec.
    o_ref[0] = y_ref[0, 0] * scale_ref[...] + shift_ref[...]


# ------------------------------ PDAM wrapper ------------------------------

def _vmem_limit_bytes():
    # v5e/v6e have 128 MiB of VMEM, v7x has 64 MiB per TensorCore: size the
    # scoped limit to the chip we actually run on.
    try:
        cap = int(pltpu.get_tpu_info().vmem_capacity_bytes)
    except Exception:
        cap = 64 * 1024 * 1024
    return min(100 * 1024 * 1024, max(32 * 1024 * 1024, (cap * 3) // 4))


def _parity_merge(x, Hh, Wh):
    """Zero-pad spatially (top/left pad = 4) and merge the 4 (row, col) pixel
    parities into the channel axis: (B, Hh, Wh, 4*C) with channel p*C + c."""
    B, H, W, C = x.shape
    Hp, Wp = 2 * Hh, 2 * Wh
    xp = jnp.pad(x, ((0, 0), (4, Hp - H - 4), (4, Wp - W - 4), (0, 0)))
    xp = xp.reshape(B, Hh, 2, Wh, 2, C)
    xp = jnp.transpose(xp, (0, 1, 3, 2, 4, 5))
    return xp.reshape(B, Hh, Wh, 4 * C)


def pdam_forward(x_nchw, params, *, max_chunk_pixels=1024):
    """PDAM forward. x: (B, nIn, H, W) float32, NCHW (PyTorch convention)."""
    B, nIn, H, W = x_nchw.shape
    nOut = params['w2'].shape[0]
    Cs = nIn // 4
    assert nIn % 4 == 0 and nIn - 3 * Cs == Cs, "requires nIn % 4 == 0"
    f32, bf16 = jnp.float32, jnp.bfloat16

    Ho, Wo = -(-H // 2), -(-W // 2)
    extra_v = (Ho - 1) * 2 - H + 3
    extra_h = (Wo - 1) * 2 - W + 3
    top, left = extra_v // 2, extra_h // 2

    # Sublane-friendly padded output width (pad pixels are masked in-kernel).
    Wo_p = -(-Wo // 8) * 8

    # Pixel-row chunking: bounds the in-kernel live set; when chunked, the
    # chunk size CP is kept a multiple of 128 so the BN pass stays lane-tiled.
    trc_target = max(1, max_chunk_pixels // Wo_p)
    if trc_target >= Ho:
        Trc, n_chunks = Ho, 1
    else:
        unit = 128 // math.gcd(Wo_p, 128)
        Trc = max(unit, (trc_target // unit) * unit)
        if Trc >= Ho:
            Trc, n_chunks = Ho, 1
        else:
            n_chunks = -(-Ho // Trc)
    Ho_pad = n_chunks * Trc
    CP = Trc * Wo_p
    Npix_pad = Ho_pad * Wo_p
    Hh, Wh = Ho_pad + 4, Wo_p + 4

    # bf16 inputs: full-rate MXU and half the HBM/VMEM footprint.
    x = jnp.transpose(x_nchw, (0, 2, 3, 1)).astype(bf16)           # NHWC
    xps = _parity_merge(x, Hh, Wh)                                 # (B,Hh,Wh,4*nIn)

    # conv1 (1x1): (nIn, Cs)
    w1m = jnp.transpose(params['w1'][:, :, 0, 0], (1, 0)).astype(bf16)
    # dilated conv weights with the 9 taps K-stacked: (3, 9*nIn, Cs)
    wd = jnp.stack([params['wd1'], params['wd2'], params['wd4']])  # (3,Cs,nIn,3,3)
    wdk = jnp.transpose(wd, (0, 3, 4, 2, 1)).reshape(3, 9 * nIn, Cs).astype(bf16)
    # conv2 (1x1) split into per-branch row blocks (order d0, d1, add3, add4);
    # the original concat order is [add4 | add3 | d1 | d0].
    w2m = jnp.transpose(params['w2'][:, :, 0, 0], (1, 0)).astype(f32)
    w2b = jnp.stack([w2m[3 * Cs:], w2m[2 * Cs:3 * Cs],
                     w2m[Cs:2 * Cs], w2m[:Cs]]).astype(bf16)       # (4,Cs,nOut)
    # ECA conv1d (k=3, pad=1, no bias) as a (Cs, Cs) Toeplitz matrix (f32).
    we = params['we'][0, 0].astype(f32)
    idx = jnp.arange(Cs)
    diff = idx[:, None] - idx[None, :] + 1                         # kt[j,i]=we[j-i+1]
    kt = jnp.where((diff >= 0) & (diff <= 2),
                   we[jnp.clip(diff, 0, 2)], 0.0).astype(f32)

    kernel = functools.partial(
        _pdam_fused_kernel, Ho=Ho, Wo=Wo, Wo_p=Wo_p, Trc=Trc,
        n_chunks=n_chunks, top=top, left=left)

    y_t, stats = pl.pallas_call(
        kernel,
        out_shape=(jax.ShapeDtypeStruct((B, n_chunks, nOut, CP), f32),
                   jax.ShapeDtypeStruct((B, 2, nOut), f32)),
        grid=(B,),
        in_specs=[
            pl.BlockSpec((1, Hh, Wh, 4 * nIn), lambda b: (b, 0, 0, 0)),
            pl.BlockSpec((nIn, Cs), lambda b: (0, 0)),
            pl.BlockSpec((3, 9 * nIn, Cs), lambda b: (0, 0, 0)),
            pl.BlockSpec((Cs, Cs), lambda b: (0, 0)),
            pl.BlockSpec((4, Cs, nOut), lambda b: (0, 0, 0)),
        ],
        out_specs=(
            pl.BlockSpec((1, n_chunks, nOut, CP), lambda b: (b, 0, 0, 0)),
            pl.BlockSpec((1, 2, nOut), lambda b: (b, 0, 0)),
        ),
        scratch_shapes=[
            pltpu.VMEM((4, n_chunks, CP, Cs), bf16),   # branch activations
            pltpu.VMEM((4, Cs), f32),                  # pooling accumulators
            pltpu.VMEM((2, nOut), f32),                # BN stat accumulators
        ],
        compiler_params=pltpu.CompilerParams(
            dimension_semantics=("parallel",),
            vmem_limit_bytes=_vmem_limit_bytes()),
    )(xps, w1m, wdk, kt, w2b)

    # BatchNorm (training mode) statistics from the accumulated partial sums.
    M = B * Ho * Wo
    s1 = jnp.sum(stats[:, 0, :], axis=0)
    s2 = jnp.sum(stats[:, 1, :], axis=0)
    mean = s1 / M
    var = jnp.maximum(s2 / M - mean * mean, 0.0)                   # biased var
    scale = (params['gamma'] * lax.rsqrt(var + 1e-3)).astype(f32)
    shift = (params['beta'] - mean * scale).astype(f32)

    # BN affine with large lane-dense blocks; the output BlockSpec also folds
    # the chunk-major buffer back into pixel-major (NCHW) order for free.
    out = pl.pallas_call(
        _bn_affine_kernel,
        out_shape=jax.ShapeDtypeStruct((B, nOut, Npix_pad), f32),
        grid=(B, n_chunks),
        in_specs=[
            pl.BlockSpec((1, 1, nOut, CP), lambda b, c: (b, c, 0, 0)),
            pl.BlockSpec((nOut, 1), lambda b, c: (0, 0)),
            pl.BlockSpec((nOut, 1), lambda b, c: (0, 0)),
        ],
        out_specs=pl.BlockSpec((1, nOut, CP), lambda b, c: (b, 0, c)),
        compiler_params=pltpu.CompilerParams(
            dimension_semantics=("parallel", "parallel")),
    )(y_t, scale.reshape(nOut, 1), shift.reshape(nOut, 1))

    out = out.reshape(B, nOut, Ho_pad, Wo_p)[:, :, :Ho, :Wo]       # NCHW
    return out


# ---------------- pure-JAX reference (NCHW, for checking) ----------------

def pdam_reference(x, params):
    B, nIn, H, W = x.shape
    dn = ('NCHW', 'OIHW', 'NCHW')

    d0 = lax.conv_general_dilated(x, params['w1'], (1, 1), 'VALID',
                                  dimension_numbers=dn)
    Ho, Wo = -(-H // 2), -(-W // 2)
    extra_v = (Ho - 1) * 2 - H + 3
    extra_h = (Wo - 1) * 2 - W + 3
    top, left = extra_v // 2, extra_h // 2
    d0 = jnp.pad(d0, ((0, 0), (0, 0), (top, extra_v - top),
                      (left, extra_h - left)))
    d0 = lax.reduce_window(d0, -jnp.inf, lax.max,
                           (1, 1, 3, 3), (1, 1, 2, 2), 'VALID')

    def cdil(w, d):
        return lax.conv_general_dilated(x, w, (2, 2), ((d, d), (d, d)),
                                        rhs_dilation=(d, d),
                                        dimension_numbers=dn)

    d1 = cdil(params['wd1'], 1)
    d2 = cdil(params['wd2'], 2)
    d3 = cdil(params['wd4'], 4)

    add3 = d1 + d2
    add4 = add3 + d3
    feats = jnp.stack([d0, d1, add3, add4], axis=1)

    we = params['we'][0, 0]

    def eca(t):
        y = jnp.mean(t, axis=(2, 3))
        yp = jnp.pad(y, ((0, 0), (1, 1)))
        z = we[0] * yp[:, :-2] + we[1] * yp[:, 1:-1] + we[2] * yp[:, 2:]
        return jax.nn.sigmoid(z)

    att = jnp.stack([eca(d0), eca(d1), eca(d2), eca(d3)], axis=1)
    att = jax.nn.softmax(att, axis=1)[:, :, :, None, None]
    fw = feats * att
    out = jnp.concatenate([fw[:, 3], fw[:, 2], fw[:, 1], fw[:, 0]], axis=1)
    out = lax.conv_general_dilated(out, params['w2'], (1, 1), 'VALID',
                                   dimension_numbers=dn)
    mean = jnp.mean(out, axis=(0, 2, 3), keepdims=True)
    var = jnp.mean((out - mean) ** 2, axis=(0, 2, 3), keepdims=True)
    out = (out - mean) / jnp.sqrt(var + 1e-3)
    out = (out * params['gamma'][None, :, None, None]
           + params['beta'][None, :, None, None])
    return out


# ----------------------------------- main -----------------------------------

if __name__ == "__main__":
    def make_params(key, nIn, nOut):
        b = nIn // 4
        b1 = nIn - 3 * b
        k1, k2, k3, k4, k5, k6 = jax.random.split(key, 6)
        return {
            'w1':  0.2 * jax.random.normal(k1, (b1, nIn, 1, 1), jnp.float32),
            'wd1': 0.2 * jax.random.normal(k2, (b, nIn, 3, 3), jnp.float32),
            'wd2': 0.2 * jax.random.normal(k3, (b, nIn, 3, 3), jnp.float32),
            'wd4': 0.2 * jax.random.normal(k4, (b, nIn, 3, 3), jnp.float32),
            'w2':  0.2 * jax.random.normal(k5, (nOut, nIn, 1, 1), jnp.float32),
            'we':  0.5 * jax.random.normal(k6, (1, 1, 3), jnp.float32),
            'gamma': jnp.ones((nOut,), jnp.float32),   # BatchNorm default init
            'beta':  jnp.zeros((nOut,), jnp.float32),
        }

    key = jax.random.PRNGKey(0)
    kp1, kx1, kp2, kx2 = jax.random.split(key, 4)

    # Case 1: even spatial size, single pixel chunk.
    B, nIn, nOut, H, W = 2, 32, 32, 16, 16
    params1 = make_params(kp1, nIn, nOut)
    x1 = jax.random.normal(kx1, (B, nIn, H, W), jnp.float32)
    out1 = jax.block_until_ready(jax.jit(pdam_forward)(x1, params1))
    ref1 = pdam_reference(x1, params1)
    assert out1.shape == (B, nOut, 8, 8), out1.shape
    err1 = float(jnp.max(jnp.abs(out1 - ref1)))

    # Case 2: odd spatial size + forced multi-chunk path (masked pad pixels).
    B2, nIn2, nOut2, H2, W2 = 2, 32, 16, 33, 33
    params2 = make_params(kp2, nIn2, nOut2)
    x2 = jax.random.normal(kx2, (B2, nIn2, H2, W2), jnp.float32)
    fwd2 = jax.jit(functools.partial(pdam_forward, max_chunk_pixels=256))
    out2 = jax.block_until_ready(fwd2(x2, params2))
    ref2 = pdam_reference(x2, params2)
    assert out2.shape == (B2, nOut2, 17, 17), out2.shape
    err2 = float(jnp.max(jnp.abs(out2 - ref2)))

    # bf16 matmul operands -> tolerance relaxed vs the f32 reference.
    assert err1 < 0.1, f"case1 max abs err {err1}"
    assert err2 < 0.1, f"case2 max abs err {err2}"
    print("KERNEL_OK")
</pallas_src>

<mosaic_0001>
module attributes {stable_mosaic.version = 11 : i64} {
  func.func @_pdam_fused_kernel(%arg0: i32, %arg1: memref<1x12x12x128xbf16, #tpu.memory_space<vmem>>, %arg2: memref<32x8xbf16, #tpu.memory_space<vmem>>, %arg3: memref<3x288x8xbf16, #tpu.memory_space<vmem>>, %arg4: memref<8x8xf32, #tpu.memory_space<vmem>>, %arg5: memref<4x8x32xbf16, #tpu.memory_space<vmem>>, %arg6: memref<1x1x32x64xf32, #tpu.memory_space<vmem>>, %arg7: memref<1x2x32xf32, #tpu.memory_space<vmem>>, %arg8: memref<4x1x64x8xbf16, #tpu.memory_space<vmem>>, %arg9: memref<4x8xf32, #tpu.memory_space<vmem>>, %arg10: memref<2x32xf32, #tpu.memory_space<vmem>>) attributes {dimension_semantics = [#tpu.dimension_semantics<parallel>], iteration_bounds = array<i64: 2>, scalar_prefetch = 0 : i64, scratch_operands = 3 : i64, tpu.core_type = #tpu.core_type<tc>, window_params = [{transform_indices = @transform_0, window_bounds = array<i64: 1, 12, 12, 128>}, {pipeline_mode = #tpu.pipeline_mode<synchronous>, transform_indices = @transform_1, window_bounds = array<i64: 32, 8>}, {pipeline_mode = #tpu.pipeline_mode<synchronous>, transform_indices = @transform_2, window_bounds = array<i64: 3, 288, 8>}, {pipeline_mode = #tpu.pipeline_mode<synchronous>, transform_indices = @transform_3, window_bounds = array<i64: 8, 8>}, {pipeline_mode = #tpu.pipeline_mode<synchronous>, transform_indices = @transform_4, window_bounds = array<i64: 4, 8, 32>}, {transform_indices = @transform_5, window_bounds = array<i64: 1, 1, 32, 64>}, {transform_indices = @transform_6, window_bounds = array<i64: 1, 2, 32>}]} {
    %cst = arith.constant 0.000000e+00 : f32
    %0 = vector.broadcast %cst : f32 to vector<4x8xf32>
    %c0 = arith.constant 0 : index
    %c0_0 = arith.constant 0 : index
    %1 = vector.load %arg9[%c0, %c0_0] : memref<4x8xf32, #tpu.memory_space<vmem>>, vector<4x8xf32>
    tpu.vector_store %arg9[%c0, %c0_0], %0 {strides = array<i32>} : memref<4x8xf32, #tpu.memory_space<vmem>>, vector<4x8xf32>,
    %cst_1 = arith.constant 0.000000e+00 : f32
    %2 = vector.broadcast %cst_1 : f32 to vector<2x32xf32>
    %c0_2 = arith.constant 0 : index
    %c0_3 = arith.constant 0 : index
    %3 = vector.load %arg10[%c0_2, %c0_3] : memref<2x32xf32, #tpu.memory_space<vmem>>, vector<2x32xf32>
    tpu.vector_store %arg10[%c0_2, %c0_3], %2 {strides = array<i32>} : memref<2x32xf32, #tpu.memory_space<vmem>>, vector<2x32xf32>,
    %c0_4 = arith.constant 0 : index
    %c0_5 = arith.constant 0 : index
    %4 = vector.load %arg2[%c0_4, %c0_5] : memref<32x8xbf16, #tpu.memory_space<vmem>>, vector<32x8xbf16>
    %c0_6 = arith.constant 0 : index
    %c0_7 = arith.constant 0 : index
    %c0_8 = arith.constant 0 : index
    %5 = vector.load %arg3[%c0_6, %c0_7, %c0_8] : memref<3x288x8xbf16, #tpu.memory_space<vmem>>, vector<1x288x8xbf16>
    %6 = vector.shape_cast %5 : vector<1x288x8xbf16> to vector<288x8xbf16>
    %c1 = arith.constant 1 : index
    %c0_9 = arith.constant 0 : index
    %c0_10 = arith.constant 0 : index
    %7 = vector.load %arg3[%c1, %c0_9, %c0_10] : memref<3x288x8xbf16, #tpu.memory_space<vmem>>, vector<1x288x8xbf16>
    %8 = vector.shape_cast %7 : vector<1x288x8xbf16> to vector<288x8xbf16>
    %c2 = arith.constant 2 : index
    %c0_11 = arith.constant 0 : index
    %c0_12 = arith.constant 0 : index
    %9 = vector.load %arg3[%c2, %c0_11, %c0_12] : memref<3x288x8xbf16, #tpu.memory_space<vmem>>, vector<1x288x8xbf16>
    %10 = vector.shape_cast %9 : vector<1x288x8xbf16> to vector<288x8xbf16>
    %c0_i32 = arith.constant 0 : i32
    %c8_i32 = arith.constant 8 : i32
    %11 = arith.muli %c0_i32, %c8_i32 : i32
    %c1_i32 = arith.constant 1 : i32
    %12 = arith.addi %11, %c1_i32 : i32
    %c0_13 = arith.constant 0 : index
    %13 = arith.index_cast %12 : i32 to index
    %c1_14 = arith.constant 1 : index
    %c96 = arith.constant 96 : index
    %14 = vector.load %arg1[%c0_13, %13, %c1_14, %c96] : memref<1x12x12x128xbf16, #tpu.memory_space<vmem>>, vector<1x8x8x32xbf16>
    %15 = vector.shape_cast %14 : vector<1x8x8x32xbf16> to vector<8x8x32xbf16>
    %16 = vector.shape_cast %15 : vector<8x8x32xbf16> to vector<64x32xbf16>
    %c1_i32_15 = arith.constant 1 : i32
    %17 = arith.addi %11, %c1_i32_15 : i32
    %c0_16 = arith.constant 0 : index
    %18 = arith.index_cast %17 : i32 to index
    %c2_17 = arith.constant 2 : index
    %c64 = arith.constant 64 : index
    %19 = vector.load %arg1[%c0_16, %18, %c2_17, %c64] : memref<1x12x12x128xbf16, #tpu.memory_space<vmem>>, vector<1x8x8x32xbf16>
    %20 = vector.shape_cast %19 : vector<1x8x8x32xbf16> to vector<8x8x32xbf16>
    %21 = vector.shape_cast %20 : vector<8x8x32xbf16> to vector<64x32xbf16>
    %c1_i32_18 = arith.constant 1 : i32
    %22 = arith.addi %11, %c1_i32_18 : i32
    %c0_19 = arith.constant 0 : index
    %23 = arith.index_cast %22 : i32 to index
    %c2_20 = arith.constant 2 : index
    %c96_21 = arith.constant 96 : index
    %24 = vector.load %arg1[%c0_19, %23, %c2_20, %c96_21] : memref<1x12x12x128xbf16, #tpu.memory_space<vmem>>, vector<1x8x8x32xbf16>
    %25 = vector.shape_cast %24 : vector<1x8x8x32xbf16> to vector<8x8x32xbf16>
    %26 = vector.shape_cast %25 : vector<8x8x32xbf16> to vector<64x32xbf16>
    %c2_i32 = arith.constant 2 : i32
    %27 = arith.addi %11, %c2_i32 : i32
    %c0_22 = arith.constant 0 : index
    %28 = arith.index_cast %27 : i32 to index
    %c1_23 = arith.constant 1 : index
    %c32 = arith.constant 32 : index
    %29 = vector.load %arg1[%c0_22, %28, %c1_23, %c32] : memref<1x12x12x128xbf16, #tpu.memory_space<vmem>>, vector<1x8x8x32xbf16>
    %30 = vector.shape_cast %29 : vector<1x8x8x32xbf16> to vector<8x8x32xbf16>
    %31 = vector.shape_cast %30 : vector<8x8x32xbf16> to vector<64x32xbf16>
    %c2_i32_24 = arith.constant 2 : i32
    %32 = arith.addi %11, %c2_i32_24 : i32
    %c0_25 = arith.constant 0 : index
    %33 = arith.index_cast %32 : i32 to index
    %c2_26 = arith.constant 2 : index
    %c0_27 = arith.constant 0 : index
    %34 = vector.load %arg1[%c0_25, %33, %c2_26, %c0_27] : memref<1x12x12x128xbf16, #tpu.memory_space<vmem>>, vector<1x8x8x32xbf16>
    %35 = vector.shape_cast %34 : vector<1x8x8x32xbf16> to vector<8x8x32xbf16>
    %36 = vector.shape_cast %35 : vector<8x8x32xbf16> to vector<64x32xbf16>
    %c2_i32_28 = arith.constant 2 : i32
    %37 = arith.addi %11, %c2_i32_28 : i32
    %c0_29 = arith.constant 0 : index
    %38 = arith.index_cast %37 : i32 to index
    %c2_30 = arith.constant 2 : index
    %c32_31 = arith.constant 32 : index
    %39 = vector.load %arg1[%c0_29, %38, %c2_30, %c32_31] : memref<1x12x12x128xbf16, #tpu.memory_space<vmem>>, vector<1x8x8x32xbf16>
    %40 = vector.shape_cast %39 : vector<1x8x8x32xbf16> to vector<8x8x32xbf16>
    %41 = vector.shape_cast %40 : vector<8x8x32xbf16> to vector<64x32xbf16>
    %c2_i32_32 = arith.constant 2 : i32
    %42 = arith.addi %11, %c2_i32_32 : i32
    %c0_33 = arith.constant 0 : index
    %43 = arith.index_cast %42 : i32 to index
    %c1_34 = arith.constant 1 : index
    %c96_35 = arith.constant 96 : index
    %44 = vector.load %arg1[%c0_33, %43, %c1_34, %c96_35] : memref<1x12x12x128xbf16, #tpu.memory_space<vmem>>, vector<1x8x8x32xbf16>
    %45 = vector.shape_cast %44 : vector<1x8x8x32xbf16> to vector<8x8x32xbf16>
    %46 = vector.shape_cast %45 : vector<8x8x32xbf16> to vector<64x32xbf16>
    %c2_i32_36 = arith.constant 2 : i32
    %47 = arith.addi %11, %c2_i32_36 : i32
    %c0_37 = arith.constant 0 : index
    %48 = arith.index_cast %47 : i32 to index
    %c2_38 = arith.constant 2 : index
    %c64_39 = arith.constant 64 : index
    %49 = vector.load %arg1[%c0_37, %48, %c2_38, %c64_39] : memref<1x12x12x128xbf16, #tpu.memory_space<vmem>>, vector<1x8x8x32xbf16>
    %50 = vector.shape_cast %49 : vector<1x8x8x32xbf16> to vector<8x8x32xbf16>
    %51 = vector.shape_cast %50 : vector<8x8x32xbf16> to vector<64x32xbf16>
    %c2_i32_40 = arith.constant 2 : i32
    %52 = arith.addi %11, %c2_i32_40 : i32
    %c0_41 = arith.constant 0 : index
    %53 = arith.index_cast %52 : i32 to index
    %c2_42 = arith.constant 2 : index
    %c96_43 = arith.constant 96 : index
    %54 = vector.load %arg1[%c0_41, %53, %c2_42, %c96_43] : memref<1x12x12x128xbf16, #tpu.memory_space<vmem>>, vector<1x8x8x32xbf16>
    %55 = vector.shape_cast %54 : vector<1x8x8x32xbf16> to vector<8x8x32xbf16>
    %56 = vector.shape_cast %55 : vector<8x8x32xbf16> to vector<64x32xbf16>
    %57 = tpu.concatenate %16, %21, %26, %31, %36, %41, %46, %51, %56 in 1 : vector<64x32xbf16>, vector<64x32xbf16>, vector<64x32xbf16>, vector<64x32xbf16>, vector<64x32xbf16>, vector<64x32xbf16>, vector<64x32xbf16>, vector<64x32xbf16>, vector<64x32xbf16> -> vector<64x288xbf16>
    %cst_44 = arith.constant dense<0.000000e+00> : vector<64x8xf32>
    %58 = tpu.matmul %57, %6, %cst_44 {dimension_numbers = #tpu.dot_dimension_numbers<[1], [0], [0], [1], [0, 0, 1, 1], [], []>} : vector<64x288xbf16>, vector<288x8xbf16>, vector<64x8xf32> -> vector<64x8xf32>
    %c1_i32_45 = arith.constant 1 : i32
    %59 = arith.addi %11, %c1_i32_45 : i32
    %c0_46 = arith.constant 0 : index
    %60 = arith.index_cast %59 : i32 to index
    %c1_47 = arith.constant 1 : index
    %c0_48 = arith.constant 0 : index
    %61 = vector.load %arg1[%c0_46, %60, %c1_47, %c0_48] : memref<1x12x12x128xbf16, #tpu.memory_space<vmem>>, vector<1x8x8x32xbf16>
    %62 = vector.shape_cast %61 : vector<1x8x8x32xbf16> to vector<8x8x32xbf16>
    %63 = vector.shape_cast %62 : vector<8x8x32xbf16> to vector<64x32xbf16>
    %c1_i32_49 = arith.constant 1 : i32
    %64 = arith.addi %11, %c1_i32_49 : i32
    %c0_50 = arith.constant 0 : index
    %65 = arith.index_cast %64 : i32 to index
    %c2_51 = arith.constant 2 : index
    %c0_52 = arith.constant 0 : index
    %66 = vector.load %arg1[%c0_50, %65, %c2_51, %c0_52] : memref<1x12x12x128xbf16, #tpu.memory_space<vmem>>, vector<1x8x8x32xbf16>
    %67 = vector.shape_cast %66 : vector<1x8x8x32xbf16> to vector<8x8x32xbf16>
    %68 = vector.shape_cast %67 : vector<8x8x32xbf16> to vector<64x32xbf16>
    %c1_i32_53 = arith.constant 1 : i32
    %69 = arith.addi %11, %c1_i32_53 : i32
    %c0_54 = arith.constant 0 : index
    %70 = arith.index_cast %69 : i32 to index
    %c3 = arith.constant 3 : index
    %c0_55 = arith.constant 0 : index
    %71 = vector.load %arg1[%c0_54, %70, %c3, %c0_55] : memref<1x12x12x128xbf16, #tpu.memory_space<vmem>>, vector<1x8x8x32xbf16>
    %72 = vector.shape_cast %71 : vector<1x8x8x32xbf16> to vector<8x8x32xbf16>
    %73 = vector.shape_cast %72 : vector<8x8x32xbf16> to vector<64x32xbf16>
    %c2_i32_56 = arith.constant 2 : i32
    %74 = arith.addi %11, %c2_i32_56 : i32
    %c0_57 = arith.constant 0 : index
    %75 = arith.index_cast %74 : i32 to index
    %c1_58 = arith.constant 1 : index
    %c0_59 = arith.constant 0 : index
    %76 = vector.load %arg1[%c0_57, %75, %c1_58, %c0_59] : memref<1x12x12x128xbf16, #tpu.memory_space<vmem>>, vector<1x8x8x32xbf16>
    %77 = vector.shape_cast %76 : vector<1x8x8x32xbf16> to vector<8x8x32xbf16>
    %78 = vector.shape_cast %77 : vector<8x8x32xbf16> to vector<64x32xbf16>
    %c2_i32_60 = arith.constant 2 : i32
    %79 = arith.addi %11, %c2_i32_60 : i32
    %c0_61 = arith.constant 0 : index
    %80 = arith.index_cast %79 : i32 to index
    %c2_62 = arith.constant 2 : index
    %c0_63 = arith.constant 0 : index
    %81 = vector.load %arg1[%c0_61, %80, %c2_62, %c0_63] : memref<1x12x12x128xbf16, #tpu.memory_space<vmem>>, vector<1x8x8x32xbf16>
    %82 = vector.shape_cast %81 : vector<1x8x8x32xbf16> to vector<8x8x32xbf16>
    %83 = vector.shape_cast %82 : vector<8x8x32xbf16> to vector<64x32xbf16>
    %c2_i32_64 = arith.constant 2 : i32
    %84 = arith.addi %11, %c2_i32_64 : i32
    %c0_65 = arith.constant 0 : index
    %85 = arith.index_cast %84 : i32 to index
    %c3_66 = arith.constant 3 : index
    %c0_67 = arith.constant 0 : index
    %86 = vector.load %arg1[%c0_65, %85, %c3_66, %c0_67] : memref<1x12x12x128xbf16, #tpu.memory_space<vmem>>, vector<1x8x8x32xbf16>
    %87 = vector.shape_cast %86 : vector<1x8x8x32xbf16> to vector<8x8x32xbf16>
    %88 = vector.shape_cast %87 : vector<8x8x32xbf16> to vector<64x32xbf16>
    %c3_i32 = arith.constant 3 : i32
    %89 = arith.addi %11, %c3_i32 : i32
    %c0_68 = arith.constant 0 : index
    %90 = arith.index_cast %89 : i32 to index
    %c1_69 = arith.constant 1 : index
    %c0_70 = arith.constant 0 : index
    %91 = vector.load %arg1[%c0_68, %90, %c1_69, %c0_70] : memref<1x12x12x128xbf16, #tpu.memory_space<vmem>>, vector<1x8x8x32xbf16>
    %92 = vector.shape_cast %91 : vector<1x8x8x32xbf16> to vector<8x8x32xbf16>
    %93 = vector.shape_cast %92 : vector<8x8x32xbf16> to vector<64x32xbf16>
    %c3_i32_71 = arith.constant 3 : i32
    %94 = arith.addi %11, %c3_i32_71 : i32
    %c0_72 = arith.constant 0 : index
    %95 = arith.index_cast %94 : i32 to index
    %c2_73 = arith.constant 2 : index
    %c0_74 = arith.constant 0 : index
    %96 = vector.load %arg1[%c0_72, %95, %c2_73, %c0_74] : memref<1x12x12x128xbf16, #tpu.memory_space<vmem>>, vector<1x8x8x32xbf16>
    %97 = vector.shape_cast %96 : vector<1x8x8x32xbf16> to vector<8x8x32xbf16>
    %98 = vector.shape_cast %97 : vector<8x8x32xbf16> to vector<64x32xbf16>
    %c3_i32_75 = arith.constant 3 : i32
    %99 = arith.addi %11, %c3_i32_75 : i32
    %c0_76 = arith.constant 0 : index
    %100 = arith.index_cast %99 : i32 to index
    %c3_77 = arith.constant 3 : index
    %c0_78 = arith.constant 0 : index
    %101 = vector.load %arg1[%c0_76, %100, %c3_77, %c0_78] : memref<1x12x12x128xbf16, #tpu.memory_space<vmem>>, vector<1x8x8x32xbf16>
    %102 = vector.shape_cast %101 : vector<1x8x8x32xbf16> to vector<8x8x32xbf16>
    %103 = vector.shape_cast %102 : vector<8x8x32xbf16> to vector<64x32xbf16>
    %104 = tpu.concatenate %63, %68, %73, %78, %83, %88, %93, %98, %103 in 1 : vector<64x32xbf16>, vector<64x32xbf16>, vector<64x32xbf16>, vector<64x32xbf16>, vector<64x32xbf16>, vector<64x32xbf16>, vector<64x32xbf16>, vector<64x32xbf16>, vector<64x32xbf16> -> vector<64x288xbf16>
    %cst_79 = arith.constant dense<0.000000e+00> : vector<64x8xf32>
    %105 = tpu.matmul %104, %8, %cst_79 {dimension_numbers = #tpu.dot_dimension_numbers<[1], [0], [0], [1], [0, 0, 1, 1], [], []>} : vector<64x288xbf16>, vector<288x8xbf16>, vector<64x8xf32> -> vector<64x8xf32>
    %c0_i32_80 = arith.constant 0 : i32
    %106 = arith.addi %11, %c0_i32_80 : i32
    %c0_81 = arith.constant 0 : index
    %107 = arith.index_cast %106 : i32 to index
    %c0_82 = arith.constant 0 : index
    %c0_83 = arith.constant 0 : index
    %108 = vector.load %arg1[%c0_81, %107, %c0_82, %c0_83] : memref<1x12x12x128xbf16, #tpu.memory_space<vmem>>, vector<1x8x8x32xbf16>
    %109 = vector.shape_cast %108 : vector<1x8x8x32xbf16> to vector<8x8x32xbf16>
    %110 = vector.shape_cast %109 : vector<8x8x32xbf16> to vector<64x32xbf16>
    %c0_i32_84 = arith.constant 0 : i32
    %111 = arith.addi %11, %c0_i32_84 : i32
    %c0_85 = arith.constant 0 : index
    %112 = arith.index_cast %111 : i32 to index
    %c2_86 = arith.constant 2 : index
    %c0_87 = arith.constant 0 : index
    %113 = vector.load %arg1[%c0_85, %112, %c2_86, %c0_87] : memref<1x12x12x128xbf16, #tpu.memory_space<vmem>>, vector<1x8x8x32xbf16>
    %114 = vector.shape_cast %113 : vector<1x8x8x32xbf16> to vector<8x8x32xbf16>
    %115 = vector.shape_cast %114 : vector<8x8x32xbf16> to vector<64x32xbf16>
    %c0_i32_88 = arith.constant 0 : i32
    %116 = arith.addi %11, %c0_i32_88 : i32
    %c0_89 = arith.constant 0 : index
    %117 = arith.index_cast %116 : i32 to index
    %c4 = arith.constant 4 : index
    %c0_90 = arith.constant 0 : index
    %118 = vector.load %arg1[%c0_89, %117, %c4, %c0_90] : memref<1x12x12x128xbf16, #tpu.memory_space<vmem>>, vector<1x8x8x32xbf16>
    %119 = vector.shape_cast %118 : vector<1x8x8x32xbf16> to vector<8x8x32xbf16>
    %120 = vector.shape_cast %119 : vector<8x8x32xbf16> to vector<64x32xbf16>
    %c2_i32_91 = arith.constant 2 : i32
    %121 = arith.addi %11, %c2_i32_91 : i32
    %c0_92 = arith.constant 0 : index
    %122 = arith.index_cast %121 : i32 to index
    %c0_93 = arith.constant 0 : index
    %c0_94 = arith.constant 0 : index
    %123 = vector.load %arg1[%c0_92, %122, %c0_93, %c0_94] : memref<1x12x12x128xbf16, #tpu.memory_space<vmem>>, vector<1x8x8x32xbf16>
    %124 = vector.shape_cast %123 : vector<1x8x8x32xbf16> to vector<8x8x32xbf16>
    %125 = vector.shape_cast %124 : vector<8x8x32xbf16> to vector<64x32xbf16>
    %c2_i32_95 = arith.constant 2 : i32
    %126 = arith.addi %11, %c2_i32_95 : i32
    %c0_96 = arith.constant 0 : index
    %127 = arith.index_cast %126 : i32 to index
    %c2_97 = arith.constant 2 : index
    %c0_98 = arith.constant 0 : index
    %128 = vector.load %arg1[%c0_96, %127, %c2_97, %c0_98] : memref<1x12x12x128xbf16, #tpu.memory_space<vmem>>, vector<1x8x8x32xbf16>
    %129 = vector.shape_cast %128 : vector<1x8x8x32xbf16> to vector<8x8x32xbf16>
    %130 = vector.shape_cast %129 : vector<8x8x32xbf16> to vector<64x32xbf16>
    %c2_i32_99 = arith.constant 2 : i32
    %131 = arith.addi %11, %c2_i32_99 : i32
    %c0_100 = arith.constant 0 : index
    %132 = arith.index_cast %131 : i32 to index
    %c4_101 = arith.constant 4 : index
    %c0_102 = arith.constant 0 : index
    %133 = vector.load %arg1[%c0_100, %132, %c4_101, %c0_102] : memref<1x12x12x128xbf16, #tpu.memory_space<vmem>>, vector<1x8x8x32xbf16>
    %134 = vector.shape_cast %133 : vector<1x8x8x32xbf16> to vector<8x8x32xbf16>
    %135 = vector.shape_cast %134 : vector<8x8x32xbf16> to vector<64x32xbf16>
    %c4_i32 = arith.constant 4 : i32
    %136 = arith.addi %11, %c4_i32 : i32
    %c0_103 = arith.constant 0 : index
    %137 = arith.index_cast %136 : i32 to index
    %c0_104 = arith.constant 0 : index
    %c0_105 = arith.constant 0 : index
    %138 = vector.load %arg1[%c0_103, %137, %c0_104, %c0_105] : memref<1x12x12x128xbf16, #tpu.memory_space<vmem>>, vector<1x8x8x32xbf16>
    %139 = vector.shape_cast %138 : vector<1x8x8x32xbf16> to vector<8x8x32xbf16>
    %140 = vector.shape_cast %139 : vector<8x8x32xbf16> to vector<64x32xbf16>
    %c4_i32_106 = arith.constant 4 : i32
    %141 = arith.addi %11, %c4_i32_106 : i32
    %c0_107 = arith.constant 0 : index
    %142 = arith.index_cast %141 : i32 to index
    %c2_108 = arith.constant 2 : index
    %c0_109 = arith.constant 0 : index
    %143 = vector.load %arg1[%c0_107, %142, %c2_108, %c0_109] : memref<1x12x12x128xbf16, #tpu.memory_space<vmem>>, vector<1x8x8x32xbf16>
    %144 = vector.shape_cast %143 : vector<1x8x8x32xbf16> to vector<8x8x32xbf16>
    %145 = vector.shape_cast %144 : vector<8x8x32xbf16> to vector<64x32xbf16>
    %c4_i32_110 = arith.constant 4 : i32
    %146 = arith.addi %11, %c4_i32_110 : i32
    %c0_111 = arith.constant 0 : index
    %147 = arith.index_cast %146 : i32 to index
    %c4_112 = arith.constant 4 : index
    %c0_113 = arith.constant 0 : index
    %148 = vector.load %arg1[%c0_111, %147, %c4_112, %c0_113] : memref<1x12x12x128xbf16, #tpu.memory_space<vmem>>, vector<1x8x8x32xbf16>
    %149 = vector.shape_cast %148 : vector<1x8x8x32xbf16> to vector<8x8x32xbf16>
    %150 = vector.shape_cast %149 : vector<8x8x32xbf16> to vector<64x32xbf16>
    %151 = tpu.concatenate %110, %115, %120, %125, %130, %135, %140, %145, %150 in 1 : vector<64x32xbf16>, vector<64x32xbf16>, vector<64x32xbf16>, vector<64x32xbf16>, vector<64x32xbf16>, vector<64x32xbf16>, vector<64x32xbf16>, vector<64x32xbf16>, vector<64x32xbf16> -> vector<64x288xbf16>
    %cst_114 = arith.constant dense<0.000000e+00> : vector<64x8xf32>
    %152 = tpu.matmul %151, %10, %cst_114 {dimension_numbers = #tpu.dot_dimension_numbers<[1], [0], [0], [1], [0, 0, 1, 1], [], []>} : vector<64x288xbf16>, vector<288x8xbf16>, vector<64x8xf32> -> vector<64x8xf32>
    %c2_i32_115 = arith.constant 2 : i32
    %153 = arith.addi %11, %c2_i32_115 : i32
    %c0_116 = arith.constant 0 : index
    %154 = arith.index_cast %153 : i32 to index
    %c2_117 = arith.constant 2 : index
    %c0_118 = arith.constant 0 : index
    %155 = vector.load %arg1[%c0_116, %154, %c2_117, %c0_118] : memref<1x12x12x128xbf16, #tpu.memory_space<vmem>>, vector<1x8x8x32xbf16>
    %156 = vector.shape_cast %155 : vector<1x8x8x32xbf16> to vector<8x8x32xbf16>
    %157 = vector.shape_cast %156 : vector<8x8x32xbf16> to vector<64x32xbf16>
    %cst_119 = arith.constant dense<0.000000e+00> : vector<64x8xf32>
    %158 = tpu.matmul %157, %4, %cst_119 {dimension_numbers = #tpu.dot_dimension_numbers<[1], [0], [0], [1], [0, 0, 1, 1], [], []>} : vector<64x32xbf16>, vector<32x8xbf16>, vector<64x8xf32> -> vector<64x8xf32>
    %c2_i32_120 = arith.constant 2 : i32
    %159 = arith.addi %11, %c2_i32_120 : i32
    %c0_121 = arith.constant 0 : index
    %160 = arith.index_cast %159 : i32 to index
    %c2_122 = arith.constant 2 : index
    %c32_123 = arith.constant 32 : index
    %161 = vector.load %arg1[%c0_121, %160, %c2_122, %c32_123] : memref<1x12x12x128xbf16, #tpu.memory_space<vmem>>, vector<1x8x8x32xbf16>
    %162 = vector.shape_cast %161 : vector<1x8x8x32xbf16> to vector<8x8x32xbf16>
    %163 = vector.shape_cast %162 : vector<8x8x32xbf16> to vector<64x32xbf16>
    %cst_124 = arith.constant dense<0.000000e+00> : vector<64x8xf32>
    %164 = tpu.matmul %163, %4, %cst_124 {dimension_numbers = #tpu.dot_dimension_numbers<[1], [0], [0], [1], [0, 0, 1, 1], [], []>} : vector<64x32xbf16>, vector<32x8xbf16>, vector<64x8xf32> -> vector<64x8xf32>
    %165 = arith.maximumf %158, %164 : vector<64x8xf32>
    %c2_i32_125 = arith.constant 2 : i32
    %166 = arith.addi %11, %c2_i32_125 : i32
    %c0_126 = arith.constant 0 : index
    %167 = arith.index_cast %166 : i32 to index
    %c3_127 = arith.constant 3 : index
    %c0_128 = arith.constant 0 : index
    %168 = vector.load %arg1[%c0_126, %167, %c3_127, %c0_128] : memref<1x12x12x128xbf16, #tpu.memory_space<vmem>>, vector<1x8x8x32xbf16>
    %169 = vector.shape_cast %168 : vector<1x8x8x32xbf16> to vector<8x8x32xbf16>
    %170 = vector.shape_cast %169 : vector<8x8x32xbf16> to vector<64x32xbf16>
    %cst_129 = arith.constant dense<0.000000e+00> : vector<64x8xf32>
    %171 = tpu.matmul %170, %4, %cst_129 {dimension_numbers = #tpu.dot_dimension_numbers<[1], [0], [0], [1], [0, 0, 1, 1], [], []>} : vector<64x32xbf16>, vector<32x8xbf16>, vector<64x8xf32> -> vector<64x8xf32>
    %172 = arith.maximumf %165, %171 : vector<64x8xf32>
    %c2_i32_130 = arith.constant 2 : i32
    %173 = arith.addi %11, %c2_i32_130 : i32
    %c0_131 = arith.constant 0 : index
    %174 = arith.index_cast %173 : i32 to index
    %c2_132 = arith.constant 2 : index
    %c64_133 = arith.constant 64 : index
    %175 = vector.load %arg1[%c0_131, %174, %c2_132, %c64_133] : memref<1x12x12x128xbf16, #tpu.memory_space<vmem>>, vector<1x8x8x32xbf16>
    %176 = vector.shape_cast %175 : vector<1x8x8x32xbf16> to vector<8x8x32xbf16>
    %177 = vector.shape_cast %176 : vector<8x8x32xbf16> to vector<64x32xbf16>
    %cst_134 = arith.constant dense<0.000000e+00> : vector<64x8xf32>
    %178 = tpu.matmul %177, %4, %cst_134 {dimension_numbers = #tpu.dot_dimension_numbers<[1], [0], [0], [1], [0, 0, 1, 1], [], []>} : vector<64x32xbf16>, vector<32x8xbf16>, vector<64x8xf32> -> vector<64x8xf32>
    %179 = arith.maximumf %172, %178 : vector<64x8xf32>
    %c2_i32_135 = arith.constant 2 : i32
    %180 = arith.addi %11, %c2_i32_135 : i32
    %c0_136 = arith.constant 0 : index
    %181 = arith.index_cast %180 : i32 to index
    %c2_137 = arith.constant 2 : index
    %c96_138 = arith.constant 96 : index
    %182 = vector.load %arg1[%c0_136, %181, %c2_137, %c96_138] : memref<1x12x12x128xbf16, #tpu.memory_space<vmem>>, vector<1x8x8x32xbf16>
    %183 = vector.shape_cast %182 : vector<1x8x8x32xbf16> to vector<8x8x32xbf16>
    %184 = vector.shape_cast %183 : vector<8x8x32xbf16> to vector<64x32xbf16>
    %cst_139 = arith.constant dense<0.000000e+00> : vector<64x8xf32>
    %185 = tpu.matmul %184, %4, %cst_139 {dimension_numbers = #tpu.dot_dimension_numbers<[1], [0], [0], [1], [0, 0, 1, 1], [], []>} : vector<64x32xbf16>, vector<32x8xbf16>, vector<64x8xf32> -> vector<64x8xf32>
    %186 = arith.maximumf %179, %185 : vector<64x8xf32>
    %c2_i32_140 = arith.constant 2 : i32
    %187 = arith.addi %11, %c2_i32_140 : i32
    %c0_141 = arith.constant 0 : index
    %188 = arith.index_cast %187 : i32 to index
    %c3_142 = arith.constant 3 : index
    %c64_143 = arith.constant 64 : index
    %189 = vector.load %arg1[%c0_141, %188, %c3_142, %c64_143] : memref<1x12x12x128xbf16, #tpu.memory_space<vmem>>, vector<1x8x8x32xbf16>
    %190 = vector.shape_cast %189 : vector<1x8x8x32xbf16> to vector<8x8x32xbf16>
    %191 = vector.shape_cast %190 : vector<8x8x32xbf16> to vector<64x32xbf16>
    %cst_144 = arith.constant dense<0.000000e+00> : vector<64x8xf32>
    %192 = tpu.matmul %191, %4, %cst_144 {dimension_numbers = #tpu.dot_dimension_numbers<[1], [0], [0], [1], [0, 0, 1, 1], [], []>} : vector<64x32xbf16>, vector<32x8xbf16>, vector<64x8xf32> -> vector<64x8xf32>
    %193 = arith.maximumf %186, %192 : vector<64x8xf32>
    %c3_i32_145 = arith.constant 3 : i32
    %194 = arith.addi %11, %c3_i32_145 : i32
    %c0_146 = arith.constant 0 : index
    %195 = arith.index_cast %194 : i32 to index
    %c2_147 = arith.constant 2 : index
    %c0_148 = arith.constant 0 : index
    %196 = vector.load %arg1[%c0_146, %195, %c2_147, %c0_148] : memref<1x12x12x128xbf16, #tpu.memory_space<vmem>>, vector<1x8x8x32xbf16>
    %197 = vector.shape_cast %196 : vector<1x8x8x32xbf16> to vector<8x8x32xbf16>
    %198 = vector.shape_cast %197 : vector<8x8x32xbf16> to vector<64x32xbf16>
    %cst_149 = arith.constant dense<0.000000e+00> : vector<64x8xf32>
    %199 = tpu.matmul %198, %4, %cst_149 {dimension_numbers = #tpu.dot_dimension_numbers<[1], [0], [0], [1], [0, 0, 1, 1], [], []>} : vector<64x32xbf16>, vector<32x8xbf16>, vector<64x8xf32> -> vector<64x8xf32>
    %200 = arith.maximumf %193, %199 : vector<64x8xf32>
    %c3_i32_150 = arith.constant 3 : i32
    %201 = arith.addi %11, %c3_i32_150 : i32
    %c0_151 = arith.constant 0 : index
    %202 = arith.index_cast %201 : i32 to index
    %c2_152 = arith.constant 2 : index
    %c32_153 = arith.constant 32 : index
    %203 = vector.load %arg1[%c0_151, %202, %c2_152, %c32_153] : memref<1x12x12x128xbf16, #tpu.memory_space<vmem>>, vector<1x8x8x32xbf16>
    %204 = vector.shape_cast %203 : vector<1x8x8x32xbf16> to vector<8x8x32xbf16>
    %205 = vector.shape_cast %204 : vector<8x8x32xbf16> to vector<64x32xbf16>
    %cst_154 = arith.constant dense<0.000000e+00> : vector<64x8xf32>
    %206 = tpu.matmul %205, %4, %cst_154 {dimension_numbers = #tpu.dot_dimension_numbers<[1], [0], [0], [1], [0, 0, 1, 1], [], []>} : vector<64x32xbf16>, vector<32x8xbf16>, vector<64x8xf32> -> vector<64x8xf32>
    %207 = arith.maximumf %200, %206 : vector<64x8xf32>
    %c3_i32_155 = arith.constant 3 : i32
    %208 = arith.addi %11, %c3_i32_155 : i32
    %c0_156 = arith.constant 0 : index
    %209 = arith.index_cast %208 : i32 to index
    %c3_157 = arith.constant 3 : index
    %c0_158 = arith.constant 0 : index
    %210 = vector.load %arg1[%c0_156, %209, %c3_157, %c0_158] : memref<1x12x12x128xbf16, #tpu.memory_space<vmem>>, vector<1x8x8x32xbf16>
    %211 = vector.shape_cast %210 : vector<1x8x8x32xbf16> to vector<8x8x32xbf16>
    %212 = vector.shape_cast %211 : vector<8x8x32xbf16> to vector<64x32xbf16>
    %cst_159 = arith.constant dense<0.000000e+00> : vector<64x8xf32>
    %213 = tpu.matmul %212, %4, %cst_159 {dimension_numbers = #tpu.dot_dimension_numbers<[1], [0], [0], [1], [0, 0, 1, 1], [], []>} : vector<64x32xbf16>, vector<32x8xbf16>, vector<64x8xf32> -> vector<64x8xf32>
    %214 = arith.maximumf %207, %213 : vector<64x8xf32>
    %215 = arith.addf %58, %105 : vector<64x8xf32>
    %216 = arith.addf %215, %152 : vector<64x8xf32>
    %c0_160 = arith.constant 0 : index
    %c0_161 = arith.constant 0 : index
    %217 = vector.load %arg9[%c0_160, %c0_161] : memref<4x8xf32, #tpu.memory_space<vmem>>, vector<4x8xf32>
    %cst_162 = arith.constant dense<0.000000e+00> : vector<8xf32>
    %218 = vector.multi_reduction <add>, %214, %cst_162 [0] : vector<64x8xf32> to vector<8xf32>
    %219 = vector.shape_cast %218 : vector<8xf32> to vector<1x8xf32>
    %cst_163 = arith.constant dense<0.000000e+00> : vector<8xf32>
    %220 = vector.multi_reduction <add>, %58, %cst_163 [0] : vector<64x8xf32> to vector<8xf32>
    %221 = vector.shape_cast %220 : vector<8xf32> to vector<1x8xf32>
    %cst_164 = arith.constant dense<0.000000e+00> : vector<8xf32>
    %222 = vector.multi_reduction <add>, %105, %cst_164 [0] : vector<64x8xf32> to vector<8xf32>
    %223 = vector.shape_cast %222 : vector<8xf32> to vector<1x8xf32>
    %cst_165 = arith.constant dense<0.000000e+00> : vector<8xf32>
    %224 = vector.multi_reduction <add>, %152, %cst_165 [0] : vector<64x8xf32> to vector<8xf32>
    %225 = vector.shape_cast %224 : vector<8xf32> to vector<1x8xf32>
    %226 = tpu.concatenate %219, %221, %223, %225 in 0 : vector<1x8xf32>, vector<1x8xf32>, vector<1x8xf32>, vector<1x8xf32> -> vector<4x8xf32>
    %227 = arith.addf %217, %226 : vector<4x8xf32>
    %c0_166 = arith.constant 0 : index
    %c0_167 = arith.constant 0 : index
    %228 = vector.load %arg9[%c0_166, %c0_167] : memref<4x8xf32, #tpu.memory_space<vmem>>, vector<4x8xf32>
    tpu.vector_store %arg9[%c0_166, %c0_167], %227 {strides = array<i32>} : memref<4x8xf32, #tpu.memory_space<vmem>>, vector<4x8xf32>,
    %229 = arith.truncf %214 : vector<64x8xf32> to vector<64x8xbf16>
    %c0_168 = arith.constant 0 : index
    %230 = arith.index_cast %c0_i32 : i32 to index
    %c0_169 = arith.constant 0 : index
    %c0_170 = arith.constant 0 : index
    %231 = vector.load %arg8[%c0_168, %230, %c0_169, %c0_170] : memref<4x1x64x8xbf16, #tpu.memory_space<vmem>>, vector<1x1x64x8xbf16>
    %232 = vector.shape_cast %231 : vector<1x1x64x8xbf16> to vector<64x8xbf16>
    %233 = vector.shape_cast %229 : vector<64x8xbf16> to vector<1x1x64x8xbf16>
    tpu.vector_store %arg8[%c0_168, %230, %c0_169, %c0_170], %233 {strides = array<i32>} : memref<4x1x64x8xbf16, #tpu.memory_space<vmem>>, vector<1x1x64x8xbf16>,
    %234 = arith.truncf %58 : vector<64x8xf32> to vector<64x8xbf16>
    %c1_171 = arith.constant 1 : index
    %235 = arith.index_cast %c0_i32 : i32 to index
    %c0_172 = arith.constant 0 : index
    %c0_173 = arith.constant 0 : index
    %236 = vector.load %arg8[%c1_171, %235, %c0_172, %c0_173] : memref<4x1x64x8xbf16, #tpu.memory_space<vmem>>, vector<1x1x64x8xbf16>
    %237 = vector.shape_cast %236 : vector<1x1x64x8xbf16> to vector<64x8xbf16>
    %238 = vector.shape_cast %234 : vector<64x8xbf16> to vector<1x1x64x8xbf16>
    tpu.vector_store %arg8[%c1_171, %235, %c0_172, %c0_173], %238 {strides = array<i32>} : memref<4x1x64x8xbf16, #tpu.memory_space<vmem>>, vector<1x1x64x8xbf16>,
    %239 = arith.truncf %215 : vector<64x8xf32> to vector<64x8xbf16>
    %c2_174 = arith.constant 2 : index
    %240 = arith.index_cast %c0_i32 : i32 to index
    %c0_175 = arith.constant 0 : index
    %c0_176 = arith.constant 0 : index
    %241 = vector.load %arg8[%c2_174, %240, %c0_175, %c0_176] : memref<4x1x64x8xbf16, #tpu.memory_space<vmem>>, vector<1x1x64x8xbf16>
    %242 = vector.shape_cast %241 : vector<1x1x64x8xbf16> to vector<64x8xbf16>
    %243 = vector.shape_cast %239 : vector<64x8xbf16> to vector<1x1x64x8xbf16>
    tpu.vector_store %arg8[%c2_174, %240, %c0_175, %c0_176], %243 {strides = array<i32>} : memref<4x1x64x8xbf16, #tpu.memory_space<vmem>>, vector<1x1x64x8xbf16>,
    %244 = arith.truncf %216 : vector<64x8xf32> to vector<64x8xbf16>
    %c3_177 = arith.constant 3 : index
    %245 = arith.index_cast %c0_i32 : i32 to index
    %c0_178 = arith.constant 0 : index
    %c0_179 = arith.constant 0 : index
    %246 = vector.load %arg8[%c3_177, %245, %c0_178, %c0_179] : memref<4x1x64x8xbf16, #tpu.memory_space<vmem>>, vector<1x1x64x8xbf16>
    %247 = vector.shape_cast %246 : vector<1x1x64x8xbf16> to vector<64x8xbf16>
    %248 = vector.shape_cast %244 : vector<64x8xbf16> to vector<1x1x64x8xbf16>
    tpu.vector_store %arg8[%c3_177, %245, %c0_178, %c0_179], %248 {strides = array<i32>} : memref<4x1x64x8xbf16, #tpu.memory_space<vmem>>, vector<1x1x64x8xbf16>,
    %c1_i32_180 = arith.constant 1 : i32
    %c0_181 = arith.constant 0 : index
    %c0_182 = arith.constant 0 : index
    %249 = vector.load %arg9[%c0_181, %c0_182] : memref<4x8xf32, #tpu.memory_space<vmem>>, vector<4x8xf32>
    %cst_183 = arith.constant 1.562500e-02 : f32
    %250 = vector.broadcast %cst_183 : f32 to vector<4x8xf32>
    %251 = arith.mulf %249, %250 : vector<4x8xf32>
    %c0_184 = arith.constant 0 : index
    %c0_185 = arith.constant 0 : index
    %252 = vector.load %arg4[%c0_184, %c0_185] : memref<8x8xf32, #tpu.memory_space<vmem>>, vector<8x8xf32>
    %cst_186 = arith.constant dense<0.000000e+00> : vector<4x8xf32>
    %253 = tpu.matmul %251, %252, %cst_186 {dimension_numbers = #tpu.dot_dimension_numbers<[1], [0], [0], [1], [0, 0, 1, 1], [], []>} : vector<4x8xf32>, vector<8x8xf32>, vector<4x8xf32> -> vector<4x8xf32>
    %254 = arith.negf %253 : vector<4x8xf32>
    %255 = math.exp %254 : vector<4x8xf32>
    %cst_187 = arith.constant 1.000000e+00 : f32
    %256 = vector.broadcast %cst_187 : f32 to vector<4x8xf32>
    %257 = arith.addf %256, %255 : vector<4x8xf32>
    %258 = arith.divf %256, %257 : vector<4x8xf32>
    %cst_188 = arith.constant dense<0xFF800000> : vector<8xf32>
    %259 = vector.multi_reduction <maximumf>, %258, %cst_188 [0] : vector<4x8xf32> to vector<8xf32>
    %260 = vector.shape_cast %259 : vector<8xf32> to vector<1x8xf32>
    %261 = vector.broadcast %260 : vector<1x8xf32> to vector<4x8xf32>
    %262 = arith.subf %258, %261 : vector<4x8xf32>
    %263 = math.exp %262 : vector<4x8xf32>
    %cst_189 = arith.constant dense<0.000000e+00> : vector<8xf32>
    %264 = vector.multi_reduction <add>, %263, %cst_189 [0] : vector<4x8xf32> to vector<8xf32>
    %265 = vector.shape_cast %264 : vector<8xf32> to vector<1x8xf32>
    %266 = vector.broadcast %265 : vector<1x8xf32> to vector<4x8xf32>
    %267 = arith.divf %263, %266 : vector<4x8xf32>
    %268 = tpu.transpose %267, [1, 0] : vector<4x8xf32> -> vector<8x4xf32>
    %c0_190 = arith.constant 0 : index
    %c0_191 = arith.constant 0 : index
    %c0_192 = arith.constant 0 : index
    %269 = vector.load %arg5[%c0_190, %c0_191, %c0_192] : memref<4x8x32xbf16, #tpu.memory_space<vmem>>, vector<1x8x32xbf16>
    %270 = vector.shape_cast %269 : vector<1x8x32xbf16> to vector<8x32xbf16>
    %271 = vector.extract_strided_slice %268 {offsets = [0, 0], sizes = [8, 1], strides = [1, 1]} : vector<8x4xf32> to vector<8x1xf32>
    %272 = arith.extf %270 : vector<8x32xbf16> to vector<8x32xf32>
    %273 = vector.broadcast %271 : vector<8x1xf32> to vector<8x32xf32>
    %274 = arith.mulf %272, %273 : vector<8x32xf32>
    %275 = arith.truncf %274 : vector<8x32xf32> to vector<8x32xbf16>
    %c1_193 = arith.constant 1 : index
    %c0_194 = arith.constant 0 : index
    %c0_195 = arith.constant 0 : index
    %276 = vector.load %arg5[%c1_193, %c0_194, %c0_195] : memref<4x8x32xbf16, #tpu.memory_space<vmem>>, vector<1x8x32xbf16>
    %277 = vector.shape_cast %276 : vector<1x8x32xbf16> to vector<8x32xbf16>
    %278 = vector.extract_strided_slice %268 {offsets = [0, 1], sizes = [8, 1], strides = [1, 1]} : vector<8x4xf32> to vector<8x1xf32>
    %279 = arith.extf %277 : vector<8x32xbf16> to vector<8x32xf32>
    %280 = vector.broadcast %278 : vector<8x1xf32> to vector<8x32xf32>
    %281 = arith.mulf %279, %280 : vector<8x32xf32>
    %282 = arith.truncf %281 : vector<8x32xf32> to vector<8x32xbf16>
    %c2_196 = arith.constant 2 : index
    %c0_197 = arith.constant 0 : index
    %c0_198 = arith.constant 0 : index
    %283 = vector.load %arg5[%c2_196, %c0_197, %c0_198] : memref<4x8x32xbf16, #tpu.memory_space<vmem>>, vector<1x8x32xbf16>
    %284 = vector.shape_cast %283 : vector<1x8x32xbf16> to vector<8x32xbf16>
    %285 = vector.extract_strided_slice %268 {offsets = [0, 2], sizes = [8, 1], strides = [1, 1]} : vector<8x4xf32> to vector<8x1xf32>
    %286 = arith.extf %284 : vector<8x32xbf16> to vector<8x32xf32>
    %287 = vector.broadcast %285 : vector<8x1xf32> to vector<8x32xf32>
    %288 = arith.mulf %286, %287 : vector<8x32xf32>
    %289 = arith.truncf %288 : vector<8x32xf32> to vector<8x32xbf16>
    %c3_199 = arith.constant 3 : index
    %c0_200 = arith.constant 0 : index
    %c0_201 = arith.constant 0 : index
    %290 = vector.load %arg5[%c3_199, %c0_200, %c0_201] : memref<4x8x32xbf16, #tpu.memory_space<vmem>>, vector<1x8x32xbf16>
    %291 = vector.shape_cast %290 : vector<1x8x32xbf16> to vector<8x32xbf16>
    %292 = vector.extract_strided_slice %268 {offsets = [0, 3], sizes = [8, 1], strides = [1, 1]} : vector<8x4xf32> to vector<8x1xf32>
    %293 = arith.extf %291 : vector<8x32xbf16> to vector<8x32xf32>
    %294 = vector.broadcast %292 : vector<8x1xf32> to vector<8x32xf32>
    %295 = arith.mulf %293, %294 : vector<8x32xf32>
    %296 = arith.truncf %295 : vector<8x32xf32> to vector<8x32xbf16>
    %c0_i32_202 = arith.constant 0 : i32
    %c0_203 = arith.constant 0 : index
    %297 = arith.index_cast %c0_i32_202 : i32 to index
    %c0_204 = arith.constant 0 : index
    %c0_205 = arith.constant 0 : index
    %298 = vector.load %arg8[%c0_203, %297, %c0_204, %c0_205] : memref<4x1x64x8xbf16, #tpu.memory_space<vmem>>, vector<1x1x64x8xbf16>
    %299 = vector.shape_cast %298 : vector<1x1x64x8xbf16> to vector<64x8xbf16>
    %cst_206 = arith.constant dense<0.000000e+00> : vector<64x32xf32>
    %300 = tpu.matmul %299, %275, %cst_206 {dimension_numbers = #tpu.dot_dimension_numbers<[1], [0], [0], [1], [0, 0, 1, 1], [], []>} : vector<64x8xbf16>, vector<8x32xbf16>, vector<64x32xf32> -> vector<64x32xf32>
    %c1_207 = arith.constant 1 : index
    %301 = arith.index_cast %c0_i32_202 : i32 to index
    %c0_208 = arith.constant 0 : index
    %c0_209 = arith.constant 0 : index
    %302 = vector.load %arg8[%c1_207, %301, %c0_208, %c0_209] : memref<4x1x64x8xbf16, #tpu.memory_space<vmem>>, vector<1x1x64x8xbf16>
    %303 = vector.shape_cast %302 : vector<1x1x64x8xbf16> to vector<64x8xbf16>
    %cst_210 = arith.constant dense<0.000000e+00> : vector<64x32xf32>
    %304 = tpu.matmul %303, %282, %cst_210 {dimension_numbers = #tpu.dot_dimension_numbers<[1], [0], [0], [1], [0, 0, 1, 1], [], []>} : vector<64x8xbf16>, vector<8x32xbf16>, vector<64x32xf32> -> vector<64x32xf32>
    %305 = arith.addf %300, %304 : vector<64x32xf32>
    %c2_211 = arith.constant 2 : index
    %306 = arith.index_cast %c0_i32_202 : i32 to index
    %c0_212 = arith.constant 0 : index
    %c0_213 = arith.constant 0 : index
    %307 = vector.load %arg8[%c2_211, %306, %c0_212, %c0_213] : memref<4x1x64x8xbf16, #tpu.memory_space<vmem>>, vector<1x1x64x8xbf16>
    %308 = vector.shape_cast %307 : vector<1x1x64x8xbf16> to vector<64x8xbf16>
    %cst_214 = arith.constant dense<0.000000e+00> : vector<64x32xf32>
    %309 = tpu.matmul %308, %289, %cst_214 {dimension_numbers = #tpu.dot_dimension_numbers<[1], [0], [0], [1], [0, 0, 1, 1], [], []>} : vector<64x8xbf16>, vector<8x32xbf16>, vector<64x32xf32> -> vector<64x32xf32>
    %310 = arith.addf %305, %309 : vector<64x32xf32>
    %c3_215 = arith.constant 3 : index
    %311 = arith.index_cast %c0_i32_202 : i32 to index
    %c0_216 = arith.constant 0 : index
    %c0_217 = arith.constant 0 : index
    %312 = vector.load %arg8[%c3_215, %311, %c0_216, %c0_217] : memref<4x1x64x8xbf16, #tpu.memory_space<vmem>>, vector<1x1x64x8xbf16>
    %313 = vector.shape_cast %312 : vector<1x1x64x8xbf16> to vector<64x8xbf16>
    %cst_218 = arith.constant dense<0.000000e+00> : vector<64x32xf32>
    %314 = tpu.matmul %313, %296, %cst_218 {dimension_numbers = #tpu.dot_dimension_numbers<[1], [0], [0], [1], [0, 0, 1, 1], [], []>} : vector<64x8xbf16>, vector<8x32xbf16>, vector<64x32xf32> -> vector<64x32xf32>
    %315 = arith.addf %310, %314 : vector<64x32xf32>
    %c0_219 = arith.constant 0 : index
    %c0_220 = arith.constant 0 : index
    %316 = vector.load %arg10[%c0_219, %c0_220] : memref<2x32xf32, #tpu.memory_space<vmem>>, vector<2x32xf32>
    %cst_221 = arith.constant dense<0.000000e+00> : vector<32xf32>
    %317 = vector.multi_reduction <add>, %315, %cst_221 [0] : vector<64x32xf32> to vector<32xf32>
    %318 = vector.shape_cast %317 : vector<32xf32> to vector<1x32xf32>
    %319 = arith.mulf %315, %315 : vector<64x32xf32>
    %cst_222 = arith.constant dense<0.000000e+00> : vector<32xf32>
    %320 = vector.multi_reduction <add>, %319, %cst_222 [0] : vector<64x32xf32> to vector<32xf32>
    %321 = vector.shape_cast %320 : vector<32xf32> to vector<1x32xf32>
    %322 = tpu.concatenate %318, %321 in 0 : vector<1x32xf32>, vector<1x32xf32> -> vector<2x32xf32>
    %323 = arith.addf %316, %322 : vector<2x32xf32>
    %c0_223 = arith.constant 0 : index
    %c0_224 = arith.constant 0 : index
    %324 = vector.load %arg10[%c0_223, %c0_224] : memref<2x32xf32, #tpu.memory_space<vmem>>, vector<2x32xf32>
    tpu.vector_store %arg10[%c0_223, %c0_224], %323 {strides = array<i32>} : memref<2x32xf32, #tpu.memory_space<vmem>>, vector<2x32xf32>,
    %325 = tpu.transpose %315, [1, 0] : vector<64x32xf32> -> vector<32x64xf32>
    %c0_225 = arith.constant 0 : index
    %326 = arith.index_cast %c0_i32_202 : i32 to index
    %c0_226 = arith.constant 0 : index
    %c0_227 = arith.constant 0 : index
    %327 = vector.load %arg6[%c0_225, %326, %c0_226, %c0_227] : memref<1x1x32x64xf32, #tpu.memory_space<vmem>>, vector<1x1x32x64xf32>
    %328 = vector.shape_cast %327 : vector<1x1x32x64xf32> to vector<32x64xf32>
    %329 = vector.shape_cast %325 : vector<32x64xf32> to vector<1x1x32x64xf32>
    tpu.vector_store %arg6[%c0_225, %326, %c0_226, %c0_227], %329 {strides = array<i32>} : memref<1x1x32x64xf32, #tpu.memory_space<vmem>>, vector<1x1x32x64xf32>,
    %c1_i32_228 = arith.constant 1 : i32
    %c0_229 = arith.constant 0 : index
    %c0_230 = arith.constant 0 : index
    %330 = vector.load %arg10[%c0_229, %c0_230] : memref<2x32xf32, #tpu.memory_space<vmem>>, vector<2x32xf32>
    %c0_231 = arith.constant 0 : index
    %c0_232 = arith.constant 0 : index
    %c0_233 = arith.constant 0 : index
    %331 = vector.load %arg7[%c0_231, %c0_232, %c0_233] : memref<1x2x32xf32, #tpu.memory_space<vmem>>, vector<1x2x32xf32>
    %332 = vector.shape_cast %331 : vector<1x2x32xf32> to vector<2x32xf32>
    %333 = vector.shape_cast %330 : vector<2x32xf32> to vector<1x2x32xf32>
    tpu.vector_store %arg7[%c0_231, %c0_232, %c0_233], %333 {strides = array<i32>} : memref<1x2x32xf32, #tpu.memory_space<vmem>>, vector<1x2x32xf32>,
    return
  }
  func.func @transform_0(%arg0: i32) -> (i32, i32, i32, i32) {
    %c0_i32 = arith.constant 0 : i32
    %c0_i32_0 = arith.constant 0 : i32
    %c0_i32_1 = arith.constant 0 : i32
    %c0_i32_2 = arith.constant 0 : i32
    return %arg0, %c0_i32, %c0_i32_0, %c0_i32_1 : i32, i32, i32, i32
  }
  func.func @transform_1(%arg0: i32) -> (i32, i32) {
    %c0_i32 = arith.constant 0 : i32
    %c0_i32_0 = arith.constant 0 : i32
    %c0_i32_1 = arith.constant 0 : i32
    return %c0_i32, %c0_i32_0 : i32, i32
  }
  func.func @transform_2(%arg0: i32) -> (i32, i32, i32) {
    %c0_i32 = arith.constant 0 : i32
    %c0_i32_0 = arith.constant 0 : i32
    %c0_i32_1 = arith.constant 0 : i32
    %c0_i32_2 = arith.constant 0 : i32
    return %c0_i32, %c0_i32_0, %c0_i32_1 : i32, i32, i32
  }
  func.func @transform_3(%arg0: i32) -> (i32, i32) {
    %c0_i32 = arith.constant 0 : i32
    %c0_i32_0 = arith.constant 0 : i32
    %c0_i32_1 = arith.constant 0 : i32
    return %c0_i32, %c0_i32_0 : i32, i32
  }
  func.func @transform_4(%arg0: i32) -> (i32, i32, i32) {
    %c0_i32 = arith.constant 0 : i32
    %c0_i32_0 = arith.constant 0 : i32
    %c0_i32_1 = arith.constant 0 : i32
    %c0_i32_2 = arith.constant 0 : i32
    return %c0_i32, %c0_i32_0, %c0_i32_1 : i32, i32, i32
  }
  func.func @transform_5(%arg0: i32) -> (i32, i32, i32, i32) {
    %c0_i32 = arith.constant 0 : i32
    %c0_i32_0 = arith.constant 0 : i32
    %c0_i32_1 = arith.constant 0 : i32
    %c0_i32_2 = arith.constant 0 : i32
    return %arg0, %c0_i32, %c0_i32_0, %c0_i32_1 : i32, i32, i32, i32
  }
  func.func @transform_6(%arg0: i32) -> (i32, i32, i32) {
    %c0_i32 = arith.constant 0 : i32
    %c0_i32_0 = arith.constant 0 : i32
    %c0_i32_1 = arith.constant 0 : i32
    return %arg0, %c0_i32, %c0_i32_0 : i32, i32, i32
  }
}

module attributes {stable_mosaic.version = 11 : i64} {
  func.func @_bn_affine_kernel(%arg0: i32, %arg1: i32, %arg2: memref<1x1x32x64xf32, #tpu.memory_space<vmem>>, %arg3: memref<32x1xf32, #tpu.memory_space<vmem>>, %arg4: memref<32x1xf32, #tpu.memory_space<vmem>>, %arg5: memref<1x32x64xf32, #tpu.memory_space<vmem>>) attributes {dimension_semantics = [#tpu.dimension_semantics<parallel>, #tpu.dimension_semantics<parallel>], iteration_bounds = array<i64: 2, 1>, scalar_prefetch = 0 : i64, scratch_operands = 0 : i64, tpu.core_type = #tpu.core_type<tc>, window_params = [{transform_indices = @transform_0, window_bounds = array<i64: 1, 1, 32, 64>}, {pipeline_mode = #tpu.pipeline_mode<synchronous>, transform_indices = @transform_1, window_bounds = array<i64: 32, 1>}, {pipeline_mode = #tpu.pipeline_mode<synchronous>, transform_indices = @transform_2, window_bounds = array<i64: 32, 1>}, {transform_indices = @transform_3, window_bounds = array<i64: 1, 32, 64>}]} {
    %c0 = arith.constant 0 : index
    %c0_0 = arith.constant 0 : index
    %c0_1 = arith.constant 0 : index
    %c0_2 = arith.constant 0 : index
    %0 = vector.load %arg2[%c0, %c0_0, %c0_1, %c0_2] : memref<1x1x32x64xf32, #tpu.memory_space<vmem>>, vector<1x1x32x64xf32>
    %1 = vector.shape_cast %0 : vector<1x1x32x64xf32> to vector<32x64xf32>
    %c0_3 = arith.constant 0 : index
    %c0_4 = arith.constant 0 : index
    %2 = vector.load %arg3[%c0_3, %c0_4] : memref<32x1xf32, #tpu.memory_space<vmem>>, vector<32x1xf32>
    %3 = vector.broadcast %2 : vector<32x1xf32> to vector<32x64xf32>
    %4 = arith.mulf %1, %3 : vector<32x64xf32>
    %c0_5 = arith.constant 0 : index
    %c0_6 = arith.constant 0 : index
    %5 = vector.load %arg4[%c0_5, %c0_6] : memref<32x1xf32, #tpu.memory_space<vmem>>, vector<32x1xf32>
    %6 = vector.broadcast %5 : vector<32x1xf32> to vector<32x64xf32>
    %7 = arith.addf %4, %6 : vector<32x64xf32>
    %c0_7 = arith.constant 0 : index
    %c0_8 = arith.constant 0 : index
    %c0_9 = arith.constant 0 : index
    %8 = vector.load %arg5[%c0_7, %c0_8, %c0_9] : memref<1x32x64xf32, #tpu.memory_space<vmem>>, vector<1x32x64xf32>
    %9 = vector.shape_cast %8 : vector<1x32x64xf32> to vector<32x64xf32>
    %10 = vector.shape_cast %7 : vector<32x64xf32> to vector<1x32x64xf32>
    tpu.vector_store %arg5[%c0_7, %c0_8, %c0_9], %10 {strides = array<i32>} : memref<1x32x64xf32, #tpu.memory_space<vmem>>, vector<1x32x64xf32>,
    return
  }
  func.func @transform_0(%arg0: i32, %arg1: i32) -> (i32, i32, i32, i32) {
    %c0_i32 = arith.constant 0 : i32
    %c0_i32_0 = arith.constant 0 : i32
    %c0_i32_1 = arith.constant 0 : i32
    return %arg0, %arg1, %c0_i32, %c0_i32_0 : i32, i32, i32, i32
  }
  func.func @transform_1(%arg0: i32, %arg1: i32) -> (i32, i32) {
    %c0_i32 = arith.constant 0 : i32
    %c0_i32_0 = arith.constant 0 : i32
    %c0_i32_1 = arith.constant 0 : i32
    return %c0_i32, %c0_i32_0 : i32, i32
  }
  func.func @transform_2(%arg0: i32, %arg1: i32) -> (i32, i32) {
    %c0_i32 = arith.constant 0 : i32
    %c0_i32_0 = arith.constant 0 : i32
    %c0_i32_1 = arith.constant 0 : i32
    return %c0_i32, %c0_i32_0 : i32, i32
  }
  func.func @transform_3(%arg0: i32, %arg1: i32) -> (i32, i32, i32) {
    %c0_i32 = arith.constant 0 : i32
    %c0_i32_0 = arith.constant 0 : i32
    return %arg0, %c0_i32, %arg1 : i32, i32, i32
  }
}

</mosaic_0001>

<llo_original>
// kernel: pdam_forward.3
$region0: #{pdam_forward.3}
  #allocation0 [shape = 'u32[]', space=smem, size = 0x4, offset = 0x4, fixed_abs, tag = 'smem constant byte address 0x4 - core index']
  #allocation1 [shape = 'u32[144,128]{1,0:T(1,128)}', space=vmem, size = 0x12000, scoped, tag = 'internal scratch']
  %s0 = inlined_call_operand.vmem [shape: f32[2,1,32,64], index: 0, kind: input, shape index: {}]
  %s1 = inlined_call_operand.vmem [shape: f32[32,1], index: 1, kind: input, shape index: {}]
  %s2 = inlined_call_operand.vmem [shape: f32[32,1], index: 2, kind: input, shape index: {}]
  %s3 = inlined_call_operand.vmem [shape: f32[2,32,64], index: 3, kind: output, shape index: {}]
  %s4 = sld [smem:[#allocation0]]
  $region45: #{pdam_forward.3} parent=0
    _
  %s6 = ssub.s32 1, %s4
  %s7 = scalar_select 0, %s6, %s4
  loop: start=0, step=1, limit=4
  $region2: #{pdam_forward.3} parent=0 // loop_pre_header
    _
  $region3: #{pdam_forward.3} parent=0 // loop_header
    %s9 = sphi 0, %s13
    %p10 = scmp.ge.s32.totalorder %s9, 4
    %s16 = sphi 0, %s28
    %s17 = sphi 0, %s24
    %s18 = sphi 0, %s16
    %s19 = sphi 0, %s17
    %s20 = sphi 0, %s18
    %s21 = sphi 0, %s19
    %s33 = sphi 0, %s35
    %s36 = sphi 0, %s33
    %s37 = sphi 0, %s36
    %s53 = sphi 0, %s37
    %s57 = sphi 0, %s57
    %s59 = sphi 0, %s57
    %s60 = sphi 0, %s59
    %s74 = sphi 0, %s60
    %s78 = sphi 0, %s78
    %s80 = sphi 0, %s78
    %s81 = sphi 0, %s80
    %s95 = sphi 0, %s81
    %s103 = sphi 0, %s105
    %s106 = sphi 0, %s103
    %s107 = sphi 0, %s106
    %s123 = sphi 0, %s107
  $region4: #{pdam_forward.3} parent=0 // loop_header_branch
    %12 = sbr.rel (%p10) target = $region8
  $region5: #{pdam_forward.3} parent=0 // loop_body
    %s14 = ssub.s32 %s9, 1
    %s15 = ssub.s32 %s9, 2
    %s22 = sadd.s32 1, %s17
    %p23 = scmp.ge.s32.totalorder %s22, 1
    %s24 = scalar_select %p23, 0, %s22
    %s25 = sadd.s32 1, %s16
    %s26 = scalar_select %p23, %s25, %s16
    %p27 = scmp.ge.s32.totalorder %s26, 2
    %s28 = scalar_select %p27, 0, %s26
    %s29 = ssub.s32 %s16, %s28
    %s30 = ssub.s32 %s17, %s24
    %s31 = sor.u32 %s29, %s30
    %p32 = scmp.eq.s32.totalorder %s31, 0
    %s34 = sadd.s32 %s33, 1
    %s35 = scalar_select %p32, %s33, %s34
    %p38 = pneg %p32
    %p39 = scmp.eq.s32.totalorder %s9, 1
    %p40 = por %p38, %p39
    %p41 = scmp.ne.s32.totalorder %s33, %s36
    %p42 = scmp.eq.s32.totalorder %s9, 0
    %p43 = por %p41, %p42
    %p44 = scmp.ne.s32.totalorder %s33, %s36
    %p45 = scmp.eq.s32.totalorder %s14, 1
    %p46 = por %p44, %p45
    %p47 = scmp.ne.s32.totalorder %s36, %s37
    %p48 = scmp.eq.s32.totalorder %s14, 0
    %p49 = por %p47, %p48
    %p50 = scmp.ne.s32.totalorder %s36, %s37
    %p51 = scmp.eq.s32.totalorder %s15, 1
    %p52 = por %p50, %p51
    %p54 = scmp.ne.s32.totalorder %s37, %s53
    %p55 = scmp.eq.s32.totalorder %s15, 0
    %p56 = por %p54, %p55
    %s58 = sadd.s32 %s57, 1
    %p61 = scmp.eq.s32.totalorder %s9, 1
    %p62 = scmp.ne.s32.totalorder %s57, %s59
    %p63 = scmp.eq.s32.totalorder %s9, 0
    %p64 = por %p62, %p63
    %p65 = scmp.ne.s32.totalorder %s57, %s59
    %p66 = scmp.eq.s32.totalorder %s14, 1
    %p67 = por %p65, %p66
    %p68 = scmp.ne.s32.totalorder %s59, %s60
    %p69 = scmp.eq.s32.totalorder %s14, 0
    %p70 = por %p68, %p69
    %p71 = scmp.ne.s32.totalorder %s59, %s60
    %p72 = scmp.eq.s32.totalorder %s15, 1
    %p73 = por %p71, %p72
    %p75 = scmp.ne.s32.totalorder %s60, %s74
    %p76 = scmp.eq.s32.totalorder %s15, 0
    %p77 = por %p75, %p76
    %s79 = sadd.s32 %s78, 1
    %p82 = scmp.eq.s32.totalorder %s9, 1
    %p83 = scmp.ne.s32.totalorder %s78, %s80
    %p84 = scmp.eq.s32.totalorder %s9, 0
    %p85 = por %p83, %p84
    %p86 = scmp.ne.s32.totalorder %s78, %s80
    %p87 = scmp.eq.s32.totalorder %s14, 1
    %p88 = por %p86, %p87
    %p89 = scmp.ne.s32.totalorder %s80, %s81
    %p90 = scmp.eq.s32.totalorder %s14, 0
    %p91 = por %p89, %p90
    %p92 = scmp.ne.s32.totalorder %s80, %s81
    %p93 = scmp.eq.s32.totalorder %s15, 1
    %p94 = por %p92, %p93
    %p96 = scmp.ne.s32.totalorder %s81, %s95
    %p97 = scmp.eq.s32.totalorder %s15, 0
    %p98 = por %p96, %p97
    %s99 = ssub.s32 %s16, %s28
    %s100 = ssub.s32 %s17, %s24
    %s101 = sor.u32 %s99, %s100
    %p102 = scmp.eq.s32.totalorder %s101, 0
    %s104 = sadd.s32 %s103, 1
    %s105 = scalar_select %p102, %s103, %s104
    %p108 = pneg %p102
    %p109 = scmp.eq.s32.totalorder %s9, 1
    %p110 = por %p108, %p109
    %p111 = scmp.ne.s32.totalorder %s103, %s106
    %p112 = scmp.eq.s32.totalorder %s9, 0
    %p113 = por %p111, %p112
    %p114 = scmp.ne.s32.totalorder %s103, %s106
    %p115 = scmp.eq.s32.totalorder %s14, 1
    %p116 = por %p114, %p115
    %p117 = scmp.ne.s32.totalorder %s106, %s107
    %p118 = scmp.eq.s32.totalorder %s14, 0
    %p119 = por %p117, %p118
    %p120 = scmp.ne.s32.totalorder %s106, %s107
    %p121 = scmp.eq.s32.totalorder %s15, 1
    %p122 = por %p120, %p121
    %p124 = scmp.ne.s32.totalorder %s107, %s123
    %p125 = scmp.eq.s32.totalorder %s15, 0
    %p126 = por %p124, %p125
    %p127 = scmp.le.s32.totalorder 1, %s9
    %p128 = scmp.lt.s32.totalorder %s9, 3
    %p129 = pnand %p127, %p128
    %p130 = pneg %p129
    // Predicated region
    $region9: #{pdam_forward.3} parent=5 // pred_check
      _
    $region10: #{pdam_forward.3} parent=5 // pred_check_branch
      %132 = sbr.rel (%p129) target = $region12
    $region11: #{pdam_forward.3} parent=5 // pred_region
      %s133 = ssub.s32 %s9, 1
      // Predicated region
      $region13: #{pdam_forward.3} parent=11 // pred_check
        %p134 = pneg %p70
      $region14: #{pdam_forward.3} parent=11 // pred_check_branch
        %136 = sbr.rel (%p134) target = $region16
      $region15: #{pdam_forward.3} parent=11 // pred_region
        _
      $region16: #{pdam_forward.3} parent=11 // pred_fallthru
        _
      // Predicated region
      $region17: #{pdam_forward.3} parent=11 // pred_check
        %p137 = pneg %p91
      $region18: #{pdam_forward.3} parent=11 // pred_check_branch
        %139 = sbr.rel (%p137) target = $region20
      $region19: #{pdam_forward.3} parent=11 // pred_region
        _
      $region20: #{pdam_forward.3} parent=11 // pred_fallthru
        _
    $region12: #{pdam_forward.3} parent=5 // pred_fallthru
      _
    %p140 = scmp.lt.s32.totalorder %s9, 2
    // Predicated region
    $region21: #{pdam_forward.3} parent=5 // pred_check
      %p141 = pneg %p140
    $region22: #{pdam_forward.3} parent=5 // pred_check_branch
      %143 = sbr.rel (%p141) target = $region24
    $region23: #{pdam_forward.3} parent=5 // pred_region
      // Predicated region
      $region25: #{pdam_forward.3} parent=23 // pred_check
        %p144 = pneg %p43
      $region26: #{pdam_forward.3} parent=23 // pred_check_branch
        %146 = sbr.rel (%p144) target = $region28
      $region27: #{pdam_forward.3} parent=23 // pred_region
        %p147 = scmp.lt.s32.totalorder %s16, 1
        %s148 = scalar_select %p147, %s16, 1
        %p149 = scmp.lt.s32.totalorder %s17, 0
        %s150 = scalar_select %p149, %s17, 0
        %s151 = smul.addr %s150, 4
        %s152 = smul.addr %s148, 4
        %s153 = sadd.s32 %s151, %s152
        %s154 = smul.addr %s153, 8
        %s155 = scalar_lea.vmem %s0, %s154
      $region28: #{pdam_forward.3} parent=23 // pred_fallthru
        _
    $region24: #{pdam_forward.3} parent=5 // pred_fallthru
      _
    %p156 = scmp.le.s32.totalorder 1, %s9
    %p157 = scmp.lt.s32.totalorder %s9, 3
    %p158 = pnand %p156, %p157
    %p159 = pneg %p158
    // Predicated region
    $region29: #{pdam_forward.3} parent=5 // pred_check
      _
    $region30: #{pdam_forward.3} parent=5 // pred_check_branch
      %161 = sbr.rel (%p158) target = $region32
    $region31: #{pdam_forward.3} parent=5 // pred_region
      %s162 = ssub.s32 %s9, 1
      %p163 = scmp.lt.s32.totalorder %s18, 1
      %s164 = scalar_select %p163, %s18, 1
      %p165 = scmp.lt.s32.totalorder %s19, 0
      %s166 = scalar_select %p165, %s19, 0
      %s167 = smul.addr %s166, 4
      %s168 = smul.addr %s164, 4
      %s169 = sadd.s32 %s167, %s168
      %s170 = smul.addr %s169, 8
      %s171 = scalar_lea.vmem %s0, %s170
      %p172 = pneg %p49
      %p173 = pneg %p46
      %p174 = pneg %p70
      %p175 = pneg %p67
      %p176 = pneg %p91
      %p177 = pneg %p88
      %p178 = pneg %p119
      %p179 = pneg %p116
      %p180 = scmp.lt.s32.totalorder %s18, 1
      %s181 = scalar_select %p180, %s18, 1
      %p182 = scmp.lt.s32.totalorder %s19, 0
      %s183 = scalar_select %p182, %s19, 0
      %s184 = smul.addr %s181, 4
      %s185 = sadd.s32 %s183, %s184
      %s186 = smul.addr %s185, 8
      %s187 = scalar_lea.vmem %s3, %s186
      %p188 = scmp.lt.s32.totalorder %s18, 1
      %s189 = scalar_select %p188, %s18, 1
      %p190 = scmp.lt.s32.totalorder %s19, 0
      %s191 = scalar_select %p190, %s19, 0
      %s192 = smul.addr %s191, 4
      %s193 = smul.addr %s189, 4
      %s194 = sadd.s32 %s192, %s193
      %s195 = smul.addr %s194, 8
      %s196 = scalar_lea.vmem %s0, %s195
      %p197 = scmp.lt.s32.totalorder %s18, 1
      %s198 = scalar_select %p197, %s18, 1
      %p199 = scmp.lt.s32.totalorder %s19, 0
      %s200 = scalar_select %p199, %s19, 0
      %s201 = smul.addr %s198, 4
      %s202 = sadd.s32 %s200, %s201
      %s203 = smul.addr %s202, 8
      %s204 = scalar_lea.vmem %s3, %s203
      %v205 = vld [vmem:[%s196] sm:$0xff]
      %v206 = vld [vmem:[%s196 + $0x8] sm:$0xff]
      %v207 = vld [vmem:[%s196 + $0x10] sm:$0xff]
      %v208 = vld [vmem:[%s196 + $0x18] sm:$0xff]
      %v209 = vld [vmem:[%s1] sm:$0xff]
      %v210 = vld [vmem:[%s1 + $0x8] sm:$0xff]
      %v211 = vld [vmem:[%s1 + $0x10] sm:$0xff]
      %v212 = vld [vmem:[%s1 + $0x18] sm:$0xff]
      %214 = vset.pattern.permute.xlu0 0
      %215 = vperm.xlu0 %214, %v209
      %v216 = vpop.permute.xlu0 %215
      %219 = vset.pattern.permute.xlu0 0
      %220 = vperm.xlu0 %219, %v210
      %v221 = vpop.permute.xlu0 %220
      %224 = vset.pattern.permute.xlu0 0
      %225 = vperm.xlu0 %224, %v211
      %v226 = vpop.permute.xlu0 %225
      %229 = vset.pattern.permute.xlu0 0
      %230 = vperm.xlu0 %229, %v212
      %v231 = vpop.permute.xlu0 %230
      %v233 = vmul.f32 %v205, %v216
      %v234 = vmul.f32 %v206, %v221
      %v235 = vmul.f32 %v207, %v226
      %v236 = vmul.f32 %v208, %v231
      %v237 = vld [vmem:[%s2] sm:$0xff]
      %v238 = vld [vmem:[%s2 + $0x8] sm:$0xff]
      %v239 = vld [vmem:[%s2 + $0x10] sm:$0xff]
      %v240 = vld [vmem:[%s2 + $0x18] sm:$0xff]
      %242 = vset.pattern.permute.xlu0 0
      %243 = vperm.xlu0 %242, %v237
      %v244 = vpop.permute.xlu0 %243
      %247 = vset.pattern.permute.xlu0 0
      %248 = vperm.xlu0 %247, %v238
      %v249 = vpop.permute.xlu0 %248
      %252 = vset.pattern.permute.xlu0 0
      %253 = vperm.xlu0 %252, %v239
      %v254 = vpop.permute.xlu0 %253
      %257 = vset.pattern.permute.xlu0 0
      %258 = vperm.xlu0 %257, %v240
      %v259 = vpop.permute.xlu0 %258
      %v261 = vadd.f32 %v233, %v244
      %v262 = vadd.f32 %v234, %v249
      %v263 = vadd.f32 %v235, %v254
      %v264 = vadd.f32 %v236, %v259
      %vm265 = vcmask 523264
      %266 = vst.msk [vmem:[%s204] sm:$0xff] %vm265, %v261
      %267 = vst.msk [vmem:[%s204 + $0x8] sm:$0xff] %vm265, %v262
      %268 = vst.msk [vmem:[%s204 + $0x10] sm:$0xff] %vm265, %v263
      %269 = vst.msk [vmem:[%s204 + $0x18] sm:$0xff] %vm265, %v264
      %p270 = scmp.lt.s32.totalorder %s18, 1
      %s271 = scalar_select %p270, %s18, 1
      %p272 = scmp.lt.s32.totalorder %s19, 0
      %s273 = scalar_select %p272, %s19, 0
      %s274 = smul.addr %s271, 4
      %s275 = sadd.s32 %s273, %s274
      %s276 = smul.addr %s275, 8
      %s277 = scalar_lea.vmem %s3, %s276
      // Predicated region
      $region33: #{pdam_forward.3} parent=31 // pred_check
        %p278 = pneg %p116
      $region34: #{pdam_forward.3} parent=31 // pred_check_branch
        %280 = sbr.rel (%p278) target = $region36
      $region35: #{pdam_forward.3} parent=31 // pred_region
        _
      $region36: #{pdam_forward.3} parent=31 // pred_fallthru
        _
    $region32: #{pdam_forward.3} parent=5 // pred_fallthru
      _
    %p281 = scmp.le.s32.totalorder 2, %s9
    // Predicated region
    $region37: #{pdam_forward.3} parent=5 // pred_check
      %p282 = pneg %p281
    $region38: #{pdam_forward.3} parent=5 // pred_check_branch
      %284 = sbr.rel (%p282) target = $region40
    $region39: #{pdam_forward.3} parent=5 // pred_region
      %s285 = ssub.s32 %s9, 2
      // Predicated region
      $region41: #{pdam_forward.3} parent=39 // pred_check
        %p286 = pneg %p122
      $region42: #{pdam_forward.3} parent=39 // pred_check_branch
        %288 = sbr.rel (%p286) target = $region44
      $region43: #{pdam_forward.3} parent=39 // pred_region
        %p289 = scmp.lt.s32.totalorder %s20, 1
        %s290 = scalar_select %p289, %s20, 1
        %p291 = scmp.lt.s32.totalorder %s21, 0
        %s292 = scalar_select %p291, %s21, 0
        %s293 = smul.addr %s290, 4
        %s294 = sadd.s32 %s292, %s293
        %s295 = smul.addr %s294, 8
        %s296 = scalar_lea.vmem %s3, %s295
      $region44: #{pdam_forward.3} parent=39 // pred_fallthru
        _
    $region40: #{pdam_forward.3} parent=5 // pred_fallthru
      _
  $region6: #{pdam_forward.3} parent=0 // loop_footer
    %s13 = sadd.s32 1, %s9
  $region7: #{pdam_forward.3} parent=0 // loop_footer_branch
    %8 = sbr.rel target = $region3
  $region8: #{pdam_forward.3} parent=0 // loop_exit
    _

// kernel: pdam_forward.2
$region0: #{pdam_forward.2}
  #allocation0 [shape = 'u32[]', space=smem, size = 0x4, offset = 0x4, fixed_abs, tag = 'smem constant byte address 0x4 - core index']
  #allocation1 [shape = 'u32[144,128]{1,0:T(1,128)}', space=vmem, size = 0x12000, scoped, tag = 'internal scratch']
  #allocation2 [shape = 'bf16[4,1,64,8]{3,2,1,0:T(16,128)(2,1)}', space=vmem, size = 0x10000, scoped, tag = 'scratch operand']
  #allocation3 [shape = 'f32[4,8]{1,0:T(4,128)}', space=vmem, size = 0x800, scoped, tag = 'scratch operand']
  #allocation4 [shape = 'f32[2,32]{1,0:T(2,128)}', space=vmem, size = 0x400, scoped, tag = 'scratch operand']
  %s0 = inlined_call_operand.vmem [shape: bf16[2,12,12,128], index: 0, kind: input, shape index: {}]
  %s1 = inlined_call_operand.vmem [shape: bf16[32,8], index: 1, kind: input, shape index: {}]
  %s2 = inlined_call_operand.vmem [shape: bf16[3,288,8], index: 2, kind: input, shape index: {}]
  %s3 = inlined_call_operand.vmem [shape: f32[8,8], index: 3, kind: input, shape index: {}]
  %s4 = inlined_call_operand.vmem [shape: bf16[4,8,32], index: 4, kind: input, shape index: {}]
  %s5 = inlined_call_operand.vmem [shape: f32[2,1,32,64], index: 5, kind: output, shape index: {0}]
  %s6 = inlined_call_operand.vmem [shape: f32[2,2,32], index: 6, kind: output, shape index: {1}]
  %7 = xla_tuple %s5, %s6
  %s8 = sld [smem:[#allocation0]]
  $region61: #{pdam_forward.2} parent=0
    _
  %s10 = ssub.s32 1, %s8
  %s11 = scalar_select 0, %s10, %s8
  loop: start=0, step=1, limit=4
  $region2: #{pdam_forward.2} parent=0 // loop_pre_header
    _
  $region3: #{pdam_forward.2} parent=0 // loop_header
    %s13 = sphi 0, %s17
    %p14 = scmp.ge.s32.totalorder %s13, 4
    %s23 = sphi 0, %s25
    %s26 = sphi 0, %s23
    %s27 = sphi 0, %s26
    %s43 = sphi 0, %s27
    %s47 = sphi 0, %s47
    %s49 = sphi 0, %s47
    %s50 = sphi 0, %s49
    %s64 = sphi 0, %s50
    %s68 = sphi 0, %s68
    %s70 = sphi 0, %s68
    %s71 = sphi 0, %s70
    %s85 = sphi 0, %s71
    %s89 = sphi 0, %s89
    %s91 = sphi 0, %s89
    %s92 = sphi 0, %s91
    %s106 = sphi 0, %s92
    %s110 = sphi 0, %s110
    %s112 = sphi 0, %s110
    %s113 = sphi 0, %s112
    %s127 = sphi 0, %s113
    %s133 = sphi 0, %s135
    %s136 = sphi 0, %s133
    %s137 = sphi 0, %s136
    %s153 = sphi 0, %s137
    %s159 = sphi 0, %s161
    %s162 = sphi 0, %s159
    %s163 = sphi 0, %s162
    %s179 = sphi 0, %s163
  $region4: #{pdam_forward.2} parent=0 // loop_header_branch
    %16 = sbr.rel (%p14) target = $region8
  $region5: #{pdam_forward.2} parent=0 // loop_body
    %s18 = ssub.s32 %s13, 1
    %s19 = ssub.s32 %s13, 2
    %s20 = sadd.s32 %s13, 1
    %s21 = ssub.s32 %s13, %s20
    %p22 = scmp.eq.s32.totalorder %s21, 0
    %s24 = sadd.s32 %s23, 1
    %s25 = scalar_select %p22, %s23, %s24
    %p28 = pneg %p22
    %p29 = scmp.eq.s32.totalorder %s13, 1
    %p30 = por %p28, %p29
    %p31 = scmp.ne.s32.totalorder %s23, %s26
    %p32 = scmp.eq.s32.totalorder %s13, 0
    %p33 = por %p31, %p32
    %p34 = scmp.ne.s32.totalorder %s23, %s26
    %p35 = scmp.eq.s32.totalorder %s18, 1
    %p36 = por %p34, %p35
    %p37 = scmp.ne.s32.totalorder %s26, %s27
    %p38 = scmp.eq.s32.totalorder %s18, 0
    %p39 = por %p37, %p38
    %p40 = scmp.ne.s32.totalorder %s26, %s27
    %p41 = scmp.eq.s32.totalorder %s19, 1
    %p42 = por %p40, %p41
    %p44 = scmp.ne.s32.totalorder %s27, %s43
    %p45 = scmp.eq.s32.totalorder %s19, 0
    %p46 = por %p44, %p45
    %s48 = sadd.s32 %s47, 1
    %p51 = scmp.eq.s32.totalorder %s13, 1
    %p52 = scmp.ne.s32.totalorder %s47, %s49
    %p53 = scmp.eq.s32.totalorder %s13, 0
    %p54 = por %p52, %p53
    %p55 = scmp.ne.s32.totalorder %s47, %s49
    %p56 = scmp.eq.s32.totalorder %s18, 1
    %p57 = por %p55, %p56
    %p58 = scmp.ne.s32.totalorder %s49, %s50
    %p59 = scmp.eq.s32.totalorder %s18, 0
    %p60 = por %p58, %p59
    %p61 = scmp.ne.s32.totalorder %s49, %s50
    %p62 = scmp.eq.s32.totalorder %s19, 1
    %p63 = por %p61, %p62
    %p65 = scmp.ne.s32.totalorder %s50, %s64
    %p66 = scmp.eq.s32.totalorder %s19, 0
    %p67 = por %p65, %p66
    %s69 = sadd.s32 %s68, 1
    %p72 = scmp.eq.s32.totalorder %s13, 1
    %p73 = scmp.ne.s32.totalorder %s68, %s70
    %p74 = scmp.eq.s32.totalorder %s13, 0
    %p75 = por %p73, %p74
    %p76 = scmp.ne.s32.totalorder %s68, %s70
    %p77 = scmp.eq.s32.totalorder %s18, 1
    %p78 = por %p76, %p77
    %p79 = scmp.ne.s32.totalorder %s70, %s71
    %p80 = scmp.eq.s32.totalorder %s18, 0
    %p81 = por %p79, %p80
    %p82 = scmp.ne.s32.totalorder %s70, %s71
    %p83 = scmp.eq.s32.totalorder %s19, 1
    %p84 = por %p82, %p83
    %p86 = scmp.ne.s32.totalorder %s71, %s85
    %p87 = scmp.eq.s32.totalorder %s19, 0
    %p88 = por %p86, %p87
    %s90 = sadd.s32 %s89, 1
    %p93 = scmp.eq.s32.totalorder %s13, 1
    %p94 = scmp.ne.s32.totalorder %s89, %s91
    %p95 = scmp.eq.s32.totalorder %s13, 0
    %p96 = por %p94, %p95
    %p97 = scmp.ne.s32.totalorder %s89, %s91
    %p98 = scmp.eq.s32.totalorder %s18, 1
    %p99 = por %p97, %p98
    %p100 = scmp.ne.s32.totalorder %s91, %s92
    %p101 = scmp.eq.s32.totalorder %s18, 0
    %p102 = por %p100, %p101
    %p103 = scmp.ne.s32.totalorder %s91, %s92
    %p104 = scmp.eq.s32.totalorder %s19, 1
    %p105 = por %p103, %p104
    %p107 = scmp.ne.s32.totalorder %s92, %s106
    %p108 = scmp.eq.s32.totalorder %s19, 0
    %p109 = por %p107, %p108
    %s111 = sadd.s32 %s110, 1
    %p114 = scmp.eq.s32.totalorder %s13, 1
    %p115 = scmp.ne.s32.totalorder %s110, %s112
    %p116 = scmp.eq.s32.totalorder %s13, 0
    %p117 = por %p115, %p116
    %p118 = scmp.ne.s32.totalorder %s110, %s112
    %p119 = scmp.eq.s32.totalorder %s18, 1
    %p120 = por %p118, %p119
    %p121 = scmp.ne.s32.totalorder %s112, %s113
    %p122 = scmp.eq.s32.totalorder %s18, 0
    %p123 = por %p121, %p122
    %p124 = scmp.ne.s32.totalorder %s112, %s113
    %p125 = scmp.eq.s32.totalorder %s19, 1
    %p126 = por %p124, %p125
    %p128 = scmp.ne.s32.totalorder %s113, %s127
    %p129 = scmp.eq.s32.totalorder %s19, 0
    %p130 = por %p128, %p129
    %s131 = ssub.s32 %s13, %s20
    %p132 = scmp.eq.s32.totalorder %s131, 0
    %s134 = sadd.s32 %s133, 1
    %s135 = scalar_select %p132, %s133, %s134
    %p138 = pneg %p132
    %p139 = scmp.eq.s32.totalorder %s13, 1
    %p140 = por %p138, %p139
    %p141 = scmp.ne.s32.totalorder %s133, %s136
    %p142 = scmp.eq.s32.totalorder %s13, 0
    %p143 = por %p141, %p142
    %p144 = scmp.ne.s32.totalorder %s133, %s136
    %p145 = scmp.eq.s32.totalorder %s18, 1
    %p146 = por %p144, %p145
    %p147 = scmp.ne.s32.totalorder %s136, %s137
    %p148 = scmp.eq.s32.totalorder %s18, 0
    %p149 = por %p147, %p148
    %p150 = scmp.ne.s32.totalorder %s136, %s137
    %p151 = scmp.eq.s32.totalorder %s19, 1
    %p152 = por %p150, %p151
    %p154 = scmp.ne.s32.totalorder %s137, %s153
    %p155 = scmp.eq.s32.totalorder %s19, 0
    %p156 = por %p154, %p155
    %s157 = ssub.s32 %s13, %s20
    %p158 = scmp.eq.s32.totalorder %s157, 0
    %s160 = sadd.s32 %s159, 1
    %s161 = scalar_select %p158, %s159, %s160
    %p164 = pneg %p158
    %p165 = scmp.eq.s32.totalorder %s13, 1
    %p166 = por %p164, %p165
    %p167 = scmp.ne.s32.totalorder %s159, %s162
    %p168 = scmp.eq.s32.totalorder %s13, 0
    %p169 = por %p167, %p168
    %p170 = scmp.ne.s32.totalorder %s159, %s162
    %p171 = scmp.eq.s32.totalorder %s18, 1
    %p172 = por %p170, %p171
    %p173 = scmp.ne.s32.totalorder %s162, %s163
    %p174 = scmp.eq.s32.totalorder %s18, 0
    %p175 = por %p173, %p174
    %p176 = scmp.ne.s32.totalorder %s162, %s163
    %p177 = scmp.eq.s32.totalorder %s19, 1
    %p178 = por %p176, %p177
    %p180 = scmp.ne.s32.totalorder %s163, %s179
    %p181 = scmp.eq.s32.totalorder %s19, 0
    %p182 = por %p180, %p181
    %p183 = scmp.le.s32.totalorder 1, %s13
    %p184 = scmp.lt.s32.totalorder %s13, 3
    %p185 = pnand %p183, %p184
    %p186 = pneg %p185
    // Predicated region
    $region9: #{pdam_forward.2} parent=5 // pred_check
      _
    $region10: #{pdam_forward.2} parent=5 // pred_check_branch
      %188 = sbr.rel (%p185) target = $region12
    $region11: #{pdam_forward.2} parent=5 // pred_region
      %s189 = ssub.s32 %s13, 1
      // Predicated region
      $region13: #{pdam_forward.2} parent=11 // pred_check
        %p190 = pneg %p60
      $region14: #{pdam_forward.2} parent=11 // pred_check_branch
        %192 = sbr.rel (%p190) target = $region16
      $region15: #{pdam_forward.2} parent=11 // pred_region
        _
      $region16: #{pdam_forward.2} parent=11 // pred_fallthru
        _
      // Predicated region
      $region17: #{pdam_forward.2} parent=11 // pred_check
        %p193 = pneg %p81
      $region18: #{pdam_forward.2} parent=11 // pred_check_branch
        %195 = sbr.rel (%p193) target = $region20
      $region19: #{pdam_forward.2} parent=11 // pred_region
        _
      $region20: #{pdam_forward.2} parent=11 // pred_fallthru
        _
      // Predicated region
      $region21: #{pdam_forward.2} parent=11 // pred_check
        %p196 = pneg %p102
      $region22: #{pdam_forward.2} parent=11 // pred_check_branch
        %198 = sbr.rel (%p196) target = $region24
      $region23: #{pdam_forward.2} parent=11 // pred_region
        _
      $region24: #{pdam_forward.2} parent=11 // pred_fallthru
        _
      // Predicated region
      $region25: #{pdam_forward.2} parent=11 // pred_check
        %p199 = pneg %p123
      $region26: #{pdam_forward.2} parent=11 // pred_check_branch
        %201 = sbr.rel (%p199) target = $region28
      $region27: #{pdam_forward.2} parent=11 // pred_region
        _
      $region28: #{pdam_forward.2} parent=11 // pred_fallthru
        _
    $region12: #{pdam_forward.2} parent=5 // pred_fallthru
      _
    %p202 = scmp.lt.s32.totalorder %s13, 2
    // Predicated region
    $region29: #{pdam_forward.2} parent=5 // pred_check
      %p203 = pneg %p202
    $region30: #{pdam_forward.2} parent=5 // pred_check_branch
      %205 = sbr.rel (%p203) target = $region32
    $region31: #{pdam_forward.2} parent=5 // pred_region
      // Predicated region
      $region33: #{pdam_forward.2} parent=31 // pred_check
        %p206 = pneg %p33
      $region34: #{pdam_forward.2} parent=31 // pred_check_branch
        %208 = sbr.rel (%p206) target = $region36
      $region35: #{pdam_forward.2} parent=31 // pred_region
        %p209 = scmp.lt.s32.totalorder %s13, 1
        %s210 = scalar_select %p209, %s13, 1
        %s211 = smul.addr %s210, 24
        %s212 = smul.addr %s211, 4
        %s213 = scalar_lea.vmem %s0, %s212
      $region36: #{pdam_forward.2} parent=31 // pred_fallthru
        _
    $region32: #{pdam_forward.2} parent=5 // pred_fallthru
      _
    %p214 = scmp.le.s32.totalorder 1, %s13
    %p215 = scmp.lt.s32.totalorder %s13, 3
    %p216 = pnand %p214, %p215
    %p217 = pneg %p216
    // Predicated region
    $region37: #{pdam_forward.2} parent=5 // pred_check
      _
    $region38: #{pdam_forward.2} parent=5 // pred_check_branch
      %219 = sbr.rel (%p216) target = $region40
    $region39: #{pdam_forward.2} parent=5 // pred_region
      %s220 = ssub.s32 %s13, 1
      %p221 = scmp.lt.s32.totalorder %s18, 1
      %s222 = scalar_select %p221, %s18, 1
      %s223 = smul.addr %s222, 24
      %s224 = smul.addr %s223, 4
      %s225 = scalar_lea.vmem %s0, %s224
      %p226 = pneg %p39
      %p227 = pneg %p36
      %p228 = pneg %p60
      %p229 = pneg %p57
      %p230 = pneg %p81
      %p231 = pneg %p78
      %p232 = pneg %p102
      %p233 = pneg %p99
      %p234 = pneg %p123
      %p235 = pneg %p120
      %p236 = pneg %p149
      %p237 = pneg %p146
      %p238 = scmp.lt.s32.totalorder %s18, 1
      %s239 = scalar_select %p238, %s18, 1
      %s240 = smul.addr %s239, 4
      %s241 = smul.addr %s240, 8
      %s242 = scalar_lea.vmem %s5, %s241
      %p243 = pneg %p175
      %p244 = pneg %p172
      %p245 = scmp.lt.s32.totalorder %s18, 1
      %s246 = scalar_select %p245, %s18, 1
      %s247 = smul.addr %s246, 2
      %s248 = scalar_lea.vmem %s6, %s247
      %p249 = scmp.lt.s32.totalorder %s18, 1
      %s250 = scalar_select %p249, %s18, 1
      %s251 = smul.addr %s250, 24
      %s252 = smul.addr %s251, 4
      %s253 = scalar_lea.vmem %s0, %s252
      %p254 = scmp.lt.s32.totalorder %s18, 1
      %s255 = scalar_select %p254, %s18, 1
      %s256 = smul.addr %s255, 4
      %s257 = smul.addr %s256, 8
      %s258 = scalar_lea.vmem %s5, %s257
      %p259 = scmp.lt.s32.totalorder %s18, 1
      %s260 = scalar_select %p259, %s18, 1
      %s261 = smul.addr %s260, 2
      %s262 = scalar_lea.vmem %s6, %s261
      %vm264 = vcmask 60416
      %265 = vst.msk [vmem:[#allocation3] sm:$0xf] %vm264, 0.0
      %vm266 = vcmask 254976
      %267 = vst.msk [vmem:[#allocation4] sm:$0x3] %vm266, 0.0
      %v268 = vld [vmem:[%s1] sm:$0xf]
      %v269 = vld [vmem:[%s1 + $0x4] sm:$0xf]
      %v270 = vld [vmem:[%s1 + $0x8] sm:$0xf]
      %v271 = vld [vmem:[%s1 + $0xc] sm:$0xf]
      %v272 = vld [vmem:[%s2] sm:$0xf]
      %v273 = vld [vmem:[%s2 + $0x4] sm:$0xf]
      %v274 = vld [vmem:[%s2 + $0x8] sm:$0xf]
      %v275 = vld [vmem:[%s2 + $0xc] sm:$0xf]
      %v276 = vld [vmem:[%s2 + $0x10] sm:$0xf]
      %v277 = vld [vmem:[%s2 + $0x14] sm:$0xf]
      %v278 = vld [vmem:[%s2 + $0x18] sm:$0xf]
      %v279 = vld [vmem:[%s2 + $0x1c] sm:$0xf]
      %v280 = vld [vmem:[%s2 + $0x20] sm:$0xf]
      %v281 = vld [vmem:[%s2 + $0x24] sm:$0xf]
      %v282 = vld [vmem:[%s2 + $0x28] sm:$0xf]
      %v283 = vld [vmem:[%s2 + $0x2c] sm:$0xf]
      %v284 = vld [vmem:[%s2 + $0x30] sm:$0xf]
      %v285 = vld [vmem:[%s2 + $0x34] sm:$0xf]
      %v286 = vld [vmem:[%s2 + $0x38] sm:$0xf]
      %v287 = vld [vmem:[%s2 + $0x3c] sm:$0xf]
      %v288 = vld [vmem:[%s2 + $0x40] sm:$0xf]
      %v289 = vld [vmem:[%s2 + $0x44] sm:$0xf]
      %v290 = vld [vmem:[%s2 + $0x48] sm:$0xf]
      %v291 = vld [vmem:[%s2 + $0x4c] sm:$0xf]
      %v292 = vld [vmem:[%s2 + $0x50] sm:$0xf]
      %v293 = vld [vmem:[%s2 + $0x54] sm:$0xf]
      %v294 = vld [vmem:[%s2 + $0x58] sm:$0xf]
      %v295 = vld [vmem:[%s2 + $0x5c] sm:$0xf]
      %v296 = vld [vmem:[%s2 + $0x60] sm:$0xf]
      %v297 = vld [vmem:[%s2 + $0x64] sm:$0xf]
      %v298 = vld [vmem:[%s2 + $0x68] sm:$0xf]
      %v299 = vld [vmem:[%s2 + $0x6c] sm:$0xf]
      %v300 = vld [vmem:[%s2 + $0x70] sm:$0xf]
      %v301 = vld [vmem:[%s2 + $0x74] sm:$0xf]
      %v302 = vld [vmem:[%s2 + $0x78] sm:$0xf]
      %v303 = vld [vmem:[%s2 + $0x7c] sm:$0xf]
      %v304 = vld [vmem:[%s2 + $0x80] sm:$0xf]
      %v305 = vld [vmem:[%s2 + $0x84] sm:$0xf]
      %v306 = vld [vmem:[%s2 + $0x88] sm:$0xf]
      %v307 = vld [vmem:[%s2 + $0x8c] sm:$0xf]
      %s308 = scalar_lea.vmem %s2, 144
      %v309 = vld [vmem:[%s308] sm:$0xf]
      %v310 = vld [vmem:[%s308 + $0x4] sm:$0xf]
      %v311 = vld [vmem:[%s308 + $0x8] sm:$0xf]
      %v312 = vld [vmem:[%s308 + $0xc] sm:$0xf]
      %v313 = vld [vmem:[%s308 + $0x10] sm:$0xf]
      %v314 = vld [vmem:[%s308 + $0x14] sm:$0xf]
      %v315 = vld [vmem:[%s308 + $0x18] sm:$0xf]
      %v316 = vld [vmem:[%s308 + $0x1c] sm:$0xf]
      %v317 = vld [vmem:[%s308 + $0x20] sm:$0xf]
      %v318 = vld [vmem:[%s308 + $0x24] sm:$0xf]
      %v319 = vld [vmem:[%s308 + $0x28] sm:$0xf]
      %v320 = vld [vmem:[%s308 + $0x2c] sm:$0xf]
      %v321 = vld [vmem:[%s308 + $0x30] sm:$0xf]
      %v322 = vld [vmem:[%s308 + $0x34] sm:$0xf]
      %v323 = vld [vmem:[%s308 + $0x38] sm:$0xf]
      %v324 = vld [vmem:[%s308 + $0x3c] sm:$0xf]
      %v325 = vld [vmem:[%s308 + $0x40] sm:$0xf]
      %v326 = vld [vmem:[%s308 + $0x44] sm:$0xf]
      %v327 = vld [vmem:[%s308 + $0x48] sm:$0xf]
      %v328 = vld [vmem:[%s308 + $0x4c] sm:$0xf]
      %v329 = vld [vmem:[%s308 + $0x50] sm:$0xf]
      %v330 = vld [vmem:[%s308 + $0x54] sm:$0xf]
      %v331 = vld [vmem:[%s308 + $0x58] sm:$0xf]
      %v332 = vld [vmem:[%s308 + $0x5c] sm:$0xf]
      %v333 = vld [vmem:[%s308 + $0x60] sm:$0xf]
      %v334 = vld [vmem:[%s308 + $0x64] sm:$0xf]
      %v335 = vld [vmem:[%s308 + $0x68] sm:$0xf]
      %v336 = vld [vmem:[%s308 + $0x6c] sm:$0xf]
      %v337 = vld [vmem:[%s308 + $0x70] sm:$0xf]
      %v338 = vld [vmem:[%s308 + $0x74] sm:$0xf]
      %v339 = vld [vmem:[%s308 + $0x78] sm:$0xf]
      %v340 = vld [vmem:[%s308 + $0x7c] sm:$0xf]
      %v341 = vld [vmem:[%s308 + $0x80] sm:$0xf]
      %v342 = vld [vmem:[%s308 + $0x84] sm:$0xf]
      %v343 = vld [vmem:[%s308 + $0x88] sm:$0xf]
      %v344 = vld [vmem:[%s308 + $0x8c] sm:$0xf]
      %s345 = scalar_lea.vmem %s2, 288
      %v346 = vld [vmem:[%s345] sm:$0xf]
      %v347 = vld [vmem:[%s345 + $0x4] sm:$0xf]
      %v348 = vld [vmem:[%s345 + $0x8] sm:$0xf]
      %v349 = vld [vmem:[%s345 + $0xc] sm:$0xf]
      %v350 = vld [vmem:[%s345 + $0x10] sm:$0xf]
      %v351 = vld [vmem:[%s345 + $0x14] sm:$0xf]
      %v352 = vld [vmem:[%s345 + $0x18] sm:$0xf]
      %v353 = vld [vmem:[%s345 + $0x1c] sm:$0xf]
      %v354 = vld [vmem:[%s345 + $0x20] sm:$0xf]
      %v355 = vld [vmem:[%s345 + $0x24] sm:$0xf]
      %v356 = vld [vmem:[%s345 + $0x28] sm:$0xf]
      %v357 = vld [vmem:[%s345 + $0x2c] sm:$0xf]
      %v358 = vld [vmem:[%s345 + $0x30] sm:$0xf]
      %v359 = vld [vmem:[%s345 + $0x34] sm:$0xf]
      %v360 = vld [vmem:[%s345 + $0x38] sm:$0xf]
      %v361 = vld [vmem:[%s345 + $0x3c] sm:$0xf]
      %v362 = vld [vmem:[%s345 + $0x40] sm:$0xf]
      %v363 = vld [vmem:[%s345 + $0x44] sm:$0xf]
      %v364 = vld [vmem:[%s345 + $0x48] sm:$0xf]
      %v365 = vld [vmem:[%s345 + $0x4c] sm:$0xf]
      %v366 = vld [vmem:[%s345 + $0x50] sm:$0xf]
      %v367 = vld [vmem:[%s345 + $0x54] sm:$0xf]
      %v368 = vld [vmem:[%s345 + $0x58] sm:$0xf]
      %v369 = vld [vmem:[%s345 + $0x5c] sm:$0xf]
      %v370 = vld [vmem:[%s345 + $0x60] sm:$0xf]
      %v371 = vld [vmem:[%s345 + $0x64] sm:$0xf]
      %v372 = vld [vmem:[%s345 + $0x68] sm:$0xf]
      %v373 = vld [vmem:[%s345 + $0x6c] sm:$0xf]
      %v374 = vld [vmem:[%s345 + $0x70] sm:$0xf]
      %v375 = vld [vmem:[%s345 + $0x74] sm:$0xf]
      %v376 = vld [vmem:[%s345 + $0x78] sm:$0xf]
      %v377 = vld [vmem:[%s345 + $0x7c] sm:$0xf]
      %v378 = vld [vmem:[%s345 + $0x80] sm:$0xf]
      %v379 = vld [vmem:[%s345 + $0x84] sm:$0xf]
      %v380 = vld [vmem:[%s345 + $0x88] sm:$0xf]
      %v381 = vld [vmem:[%s345 + $0x8c] sm:$0xf]
      %s382 = scalar_lea.vmem %s253, 8
      %v383 = vld [vmem:[%s382] sm:$0xf]
      %v384 = vld [vmem:[%s382 + $0x4] sm:$0x1]
      %v385 = vld [vmem:[%s382 + $0x8] sm:$0xf]
      %v386 = vld [vmem:[%s382 + $0xc] sm:$0x1]
      %v387 = vld [vmem:[%s382 + $0x10] sm:$0xf]
      %v388 = vld [vmem:[%s382 + $0x14] sm:$0x1]
      %v389 = vld [vmem:[%s382 + $0x18] sm:$0xf]
      %v390 = vld [vmem:[%s382 + $0x1c] sm:$0x1]
      %v391 = vld [vmem:[%s382 + $0x20] sm:$0xf]
      %v392 = vld [vmem:[%s382 + $0x24] sm:$0x1]
      %v393 = vld [vmem:[%s382 + $0x28] sm:$0xf]
      %v394 = vld [vmem:[%s382 + $0x2c] sm:$0x1]
      %v395 = vld [vmem:[%s382 + $0x30] sm:$0xf]
      %v396 = vld [vmem:[%s382 + $0x34] sm:$0x1]
      %v397 = vld [vmem:[%s382 + $0x38] sm:$0xf]
      %v398 = vld [vmem:[%s382 + $0x3c] sm:$0x1]
      %vm399 = vsmask.f32 3328
      %vm400 = vsmask.f32 7440
      %vm401 = vmor %vm399, %vm400
      %v403 = vshrl.u32 %v383, 16
      %v405 = vrot.slane %v403, 4
      %v406 = vshll.u32 %v383, 16
      %v408 = vrot.slane %v406, 5
      %v409 = vor.u32 %v405, %v408
      %v410 = vrot.slane %v409, 4
      %v412 = vshll.u32 %v384, 16
      %v414 = vrot.slane %v412, 5
      %v415 = vsel %vm401, %v410, %v414
      %v417 = vshrl.u32 %v385, 16
      %v419 = vrot.slane %v417, 4
      %v420 = vshll.u32 %v385, 16
      %v422 = vrot.slane %v420, 5
      %v423 = vor.u32 %v419, %v422
      %v424 = vrot.slane %v423, 4
      %v426 = vshll.u32 %v386, 16
      %v428 = vrot.slane %v426, 5
      %v429 = vsel %vm401, %v424, %v428
      %v431 = vshrl.u32 %v387, 16
      %v433 = vrot.slane %v431, 4
      %v434 = vshll.u32 %v387, 16
      %v436 = vrot.slane %v434, 5
      %v437 = vor.u32 %v433, %v436
      %v438 = vrot.slane %v437, 4
      %v440 = vshll.u32 %v388, 16
      %v442 = vrot.slane %v440, 5
      %v443 = vsel %vm401, %v438, %v442
      %v445 = vshrl.u32 %v389, 16
      %v447 = vrot.slane %v445, 4
      %v448 = vshll.u32 %v389, 16
      %v450 = vrot.slane %v448, 5
      %v451 = vor.u32 %v447, %v450
      %v452 = vrot.slane %v451, 4
      %v454 = vshll.u32 %v390, 16
      %v456 = vrot.slane %v454, 5
      %v457 = vsel %vm401, %v452, %v456
      %v459 = vshrl.u32 %v391, 16
      %v461 = vrot.slane %v459, 4
      %v462 = vshll.u32 %v391, 16
      %v464 = vrot.slane %v462, 5
      %v465 = vor.u32 %v461, %v464
      %v466 = vrot.slane %v465, 4
      %v468 = vshll.u32 %v392, 16
      %v470 = vrot.slane %v468, 5
      %v471 = vsel %vm401, %v466, %v470
      %v473 = vshrl.u32 %v393, 16
      %v475 = vrot.slane %v473, 4
      %v476 = vshll.u32 %v393, 16
      %v478 = vrot.slane %v476, 5
      %v479 = vor.u32 %v475, %v478
      %v480 = vrot.slane %v479, 4
      %v482 = vshll.u32 %v394, 16
      %v484 = vrot.slane %v482, 5
      %v485 = vsel %vm401, %v480, %v484
      %v487 = vshrl.u32 %v395, 16
      %v489 = vrot.slane %v487, 4
      %v490 = vshll.u32 %v395, 16
      %v492 = vrot.slane %v490, 5
      %v493 = vor.u32 %v489, %v492
      %v494 = vrot.slane %v493, 4
      %v496 = vshll.u32 %v396, 16
      %v498 = vrot.slane %v496, 5
      %v499 = vsel %vm401, %v494, %v498
      %v501 = vshrl.u32 %v397, 16
      %v503 = vrot.slane %v501, 4
      %v504 = vshll.u32 %v397, 16
      %v506 = vrot.slane %v504, 5
      %v507 = vor.u32 %v503, %v506
      %v508 = vrot.slane %v507, 4
      %v510 = vshll.u32 %v398, 16
      %v512 = vrot.slane %v510, 5
      %v513 = vsel %vm401, %v508, %v512
      %v514 = vld [vmem:[%s382] sm:$0xe]
      %v515 = vld [vmem:[%s382 + $0x8] sm:$0xe]
      %v516 = vld [vmem:[%s382 + $0x10] sm:$0xe]
      %v517 = vld [vmem:[%s382 + $0x18] sm:$0xe]
      %v518 = vld [vmem:[%s382 + $0x20] sm:$0xe]
      %v519 = vld [vmem:[%s382 + $0x28] sm:$0xe]
      %v520 = vld [vmem:[%s382 + $0x30] sm:$0xe]
      %v521 = vld [vmem:[%s382 + $0x38] sm:$0xe]
      %vm538 = vcmask 1042432
      %vm539 = vcmask 1046532
      %vm540 = vmor %vm538, %vm539
      %v541 = vrot.slane %v514, 5
      %v542 = vrot.slane %v541, 4
      %v543 = vrot.slane %v384, 5
      %v544 = vsel %vm540, %v542, %v543
      %v545 = vrot.slane %v515, 5
      %v546 = vrot.slane %v545, 4
      %v547 = vrot.slane %v386, 5
      %v548 = vsel %vm540, %v546, %v547
      %v549 = vrot.slane %v516, 5
      %v550 = vrot.slane %v549, 4
      %v551 = vrot.slane %v388, 5
      %v552 = vsel %vm540, %v550, %v551
      %v553 = vrot.slane %v517, 5
      %v554 = vrot.slane %v553, 4
      %v555 = vrot.slane %v390, 5
      %v556 = vsel %vm540, %v554, %v555
      %v557 = vrot.slane %v518, 5
      %v558 = vrot.slane %v557, 4
      %v559 = vrot.slane %v392, 5
      %v560 = vsel %vm540, %v558, %v559
      %v561 = vrot.slane %v519, 5
      %v562 = vrot.slane %v561, 4
      %v563 = vrot.slane %v394, 5
      %v564 = vsel %vm540, %v562, %v563
      %v565 = vrot.slane %v520, 5
      %v566 = vrot.slane %v565, 4
      %v567 = vrot.slane %v396, 5
      %v568 = vsel %vm540, %v566, %v567
      %v569 = vrot.slane %v521, 5
      %v570 = vrot.slane %v569, 4
      %v571 = vrot.slane %v398, 5
      %v572 = vsel %vm540, %v570, %v571
      %s573 = scalar_lea.vmem %s253, 16
      %v574 = vld [vmem:[%s573] sm:$0xf]
      %v575 = vld [vmem:[%s573 + $0x4] sm:$0x1]
      %v576 = vld [vmem:[%s573 + $0x8] sm:$0xf]
      %v577 = vld [vmem:[%s573 + $0xc] sm:$0x1]
      %v578 = vld [vmem:[%s573 + $0x10] sm:$0xf]
      %v579 = vld [vmem:[%s573 + $0x14] sm:$0x1]
      %v580 = vld [vmem:[%s573 + $0x18] sm:$0xf]
      %v581 = vld [vmem:[%s573 + $0x1c] sm:$0x1]
      %v582 = vld [vmem:[%s573 + $0x20] sm:$0xf]
      %v583 = vld [vmem:[%s573 + $0x24] sm:$0x1]
      %v584 = vld [vmem:[%s573 + $0x28] sm:$0xf]
      %v585 = vld [vmem:[%s573 + $0x2c] sm:$0x1]
      %v586 = vld [vmem:[%s573 + $0x30] sm:$0xf]
      %v587 = vld [vmem:[%s573 + $0x34] sm:$0x1]
      %v588 = vld [vmem:[%s573 + $0x38] sm:$0xf]
      %v589 = vld [vmem:[%s573 + $0x3c] sm:$0x1]
      %v591 = vshrl.u32 %v574, 16
      %v593 = vrot.slane %v591, 4
      %v594 = vshll.u32 %v574, 16
      %v596 = vrot.slane %v594, 5
      %v597 = vor.u32 %v593, %v596
      %v598 = vrot.slane %v597, 4
      %v600 = vshll.u32 %v575, 16
      %v602 = vrot.slane %v600, 5
      %v603 = vsel %vm401, %v598, %v602
      %v605 = vshrl.u32 %v576, 16
      %v607 = vrot.slane %v605, 4
      %v608 = vshll.u32 %v576, 16
      %v610 = vrot.slane %v608, 5
      %v611 = vor.u32 %v607, %v610
      %v612 = vrot.slane %v611, 4
      %v614 = vshll.u32 %v577, 16
      %v616 = vrot.slane %v614, 5
      %v617 = vsel %vm401, %v612, %v616
      %v619 = vshrl.u32 %v578, 16
      %v621 = vrot.slane %v619, 4
      %v622 = vshll.u32 %v578, 16
      %v624 = vrot.slane %v622, 5
      %v625 = vor.u32 %v621, %v624
      %v626 = vrot.slane %v625, 4
      %v628 = vshll.u32 %v579, 16
      %v630 = vrot.slane %v628, 5
      %v631 = vsel %vm401, %v626, %v630
      %v633 = vshrl.u32 %v580, 16
      %v635 = vrot.slane %v633, 4
      %v636 = vshll.u32 %v580, 16
      %v638 = vrot.slane %v636, 5
      %v639 = vor.u32 %v635, %v638
      %v640 = vrot.slane %v639, 4
      %v642 = vshll.u32 %v581, 16
      %v644 = vrot.slane %v642, 5
      %v645 = vsel %vm401, %v640, %v644
      %v647 = vshrl.u32 %v582, 16
      %v649 = vrot.slane %v647, 4
      %v650 = vshll.u32 %v582, 16
      %v652 = vrot.slane %v650, 5
      %v653 = vor.u32 %v649, %v652
      %v654 = vrot.slane %v653, 4
      %v656 = vshll.u32 %v583, 16
      %v658 = vrot.slane %v656, 5
      %v659 = vsel %vm401, %v654, %v658
      %v661 = vshrl.u32 %v584, 16
      %v663 = vrot.slane %v661, 4
      %v664 = vshll.u32 %v584, 16
      %v666 = vrot.slane %v664, 5
      %v667 = vor.u32 %v663, %v666
      %v668 = vrot.slane %v667, 4
      %v670 = vshll.u32 %v585, 16
      %v672 = vrot.slane %v670, 5
      %v673 = vsel %vm401, %v668, %v672
      %v675 = vshrl.u32 %v586, 16
      %v677 = vrot.slane %v675, 4
      %v678 = vshll.u32 %v586, 16
      %v680 = vrot.slane %v678, 5
      %v681 = vor.u32 %v677, %v680
      %v682 = vrot.slane %v681, 4
      %v684 = vshll.u32 %v587, 16
      %v686 = vrot.slane %v684, 5
      %v687 = vsel %vm401, %v682, %v686
      %v689 = vshrl.u32 %v588, 16
      %v691 = vrot.slane %v689, 4
      %v692 = vshll.u32 %v588, 16
      %v694 = vrot.slane %v692, 5
      %v695 = vor.u32 %v691, %v694
      %v696 = vrot.slane %v695, 4
      %v698 = vshll.u32 %v589, 16
      %v700 = vrot.slane %v698, 5
      %v701 = vsel %vm401, %v696, %v700
      %v702 = vld [vmem:[%s573] sm:$0xe]
      %v703 = vld [vmem:[%s573 + $0x8] sm:$0xe]
      %v704 = vld [vmem:[%s573 + $0x10] sm:$0xe]
      %v705 = vld [vmem:[%s573 + $0x18] sm:$0xe]
      %v706 = vld [vmem:[%s573 + $0x20] sm:$0xe]
      %v707 = vld [vmem:[%s573 + $0x28] sm:$0xe]
      %v708 = vld [vmem:[%s573 + $0x30] sm:$0xe]
      %v709 = vld [vmem:[%s573 + $0x38] sm:$0xe]
      %v726 = vrot.slane %v702, 5
      %v727 = vrot.slane %v726, 4
      %v728 = vrot.slane %v575, 5
      %v729 = vsel %vm540, %v727, %v728
      %v730 = vrot.slane %v703, 5
      %v731 = vrot.slane %v730, 4
      %v732 = vrot.slane %v577, 5
      %v733 = vsel %vm540, %v731, %v732
      %v734 = vrot.slane %v704, 5
      %v735 = vrot.slane %v734, 4
      %v736 = vrot.slane %v579, 5
      %v737 = vsel %vm540, %v735, %v736
      %v738 = vrot.slane %v705, 5
      %v739 = vrot.slane %v738, 4
      %v740 = vrot.slane %v581, 5
      %v741 = vsel %vm540, %v739, %v740
      %v742 = vrot.slane %v706, 5
      %v743 = vrot.slane %v742, 4
      %v744 = vrot.slane %v583, 5
      %v745 = vsel %vm540, %v743, %v744
      %v746 = vrot.slane %v707, 5
      %v747 = vrot.slane %v746, 4
      %v748 = vrot.slane %v585, 5
      %v749 = vsel %vm540, %v747, %v748
      %v750 = vrot.slane %v708, 5
      %v751 = vrot.slane %v750, 4
      %v752 = vrot.slane %v587, 5
      %v753 = vsel %vm540, %v751, %v752
      %v754 = vrot.slane %v709, 5
      %v755 = vrot.slane %v754, 4
      %v756 = vrot.slane %v589, 5
      %v757 = vsel %vm540, %v755, %v756
      %v758 = vunpack.c.l.b16 %v415
      %v759 = vunpack.c.l.b16 %v429
      %v760 = vunpack.c.l.b16 %v443
      %v761 = vunpack.c.l.b16 %v457
      %v762 = vunpack.c.l.b16 %v471
      %v763 = vunpack.c.l.b16 %v485
      %v764 = vunpack.c.l.b16 %v499
      %v765 = vunpack.c.l.b16 %v513
      %v766 = vpack.c.b16 %v759, %v758
      %v767 = vpack.c.b16 %v761, %v760
      %v768 = vpack.c.b16 %v763, %v762
      %v769 = vpack.c.b16 %v765, %v764
      %770 = vrot.lane.b32.xlu0 %v766, 32
      %v771 = vpop.permute.xlu0 %770
      %772 = vrot.lane.b32.xlu0 %v767, 32
      %v773 = vpop.permute.xlu0 %772
      %774 = vrot.lane.b32.xlu0 %v768, 32
      %v775 = vpop.permute.xlu0 %774
      %776 = vrot.lane.b32.xlu0 %v769, 32
      %v777 = vpop.permute.xlu0 %776
      %v778 = vunpack.c.l.b16 %v544
      %v779 = vunpack.c.l.b16 %v548
      %v780 = vunpack.c.l.b16 %v552
      %v781 = vunpack.c.l.b16 %v556
      %v782 = vunpack.c.l.b16 %v560
      %v783 = vunpack.c.l.b16 %v564
      %v784 = vunpack.c.l.b16 %v568
      %v785 = vunpack.c.l.b16 %v572
      %v786 = vpack.c.b16 %v779, %v778
      %v787 = vpack.c.b16 %v781, %v780
      %v788 = vpack.c.b16 %v783, %v782
      %v789 = vpack.c.b16 %v785, %v784
      %790 = vrot.lane.b32.xlu0 %v786, 96
      %v791 = vpop.permute.xlu0 %790
      %792 = vrot.lane.b32.xlu0 %v787, 96
      %v793 = vpop.permute.xlu0 %792
      %794 = vrot.lane.b32.xlu0 %v788, 96
      %v795 = vpop.permute.xlu0 %794
      %796 = vrot.lane.b32.xlu0 %v789, 96
      %v797 = vpop.permute.xlu0 %796
      %v798 = vunpack.c.l.b16 %v603
      %v799 = vunpack.c.l.b16 %v617
      %v800 = vunpack.c.l.b16 %v631
      %v801 = vunpack.c.l.b16 %v645
      %v802 = vunpack.c.l.b16 %v659
      %v803 = vunpack.c.l.b16 %v673
      %v804 = vunpack.c.l.b16 %v687
      %v805 = vunpack.c.l.b16 %v701
      %v806 = vpack.c.b16 %v799, %v798
      %v807 = vpack.c.b16 %v801, %v800
      %v808 = vpack.c.b16 %v803, %v802
      %v809 = vpack.c.b16 %v805, %v804
      %810 = vrot.lane.b32.xlu0 %v806, 64
      %v811 = vpop.permute.xlu0 %810
      %812 = vrot.lane.b32.xlu0 %v807, 64
      %v813 = vpop.permute.xlu0 %812
      %814 = vrot.lane.b32.xlu0 %v808, 64
      %v815 = vpop.permute.xlu0 %814
      %816 = vrot.lane.b32.xlu0 %v809, 64
      %v817 = vpop.permute.xlu0 %816
      %v818 = vunpack.c.l.b16 %v729
      %v819 = vunpack.c.l.b16 %v733
      %v820 = vunpack.c.l.b16 %v737
      %v821 = vunpack.c.l.b16 %v741
      %v822 = vunpack.c.l.b16 %v745
      %v823 = vunpack.c.l.b16 %v749
      %v824 = vunpack.c.l.b16 %v753
      %v825 = vunpack.c.l.b16 %v757
      %v826 = vpack.c.b16 %v819, %v818
      %v827 = vpack.c.b16 %v821, %v820
      %v828 = vpack.c.b16 %v823, %v822
      %v829 = vpack.c.b16 %v825, %v824
      %830 = vrot.lane.b32.xlu0 %v806, 96
      %v831 = vpop.permute.xlu0 %830
      %832 = vrot.lane.b32.xlu0 %v807, 96
      %v833 = vpop.permute.xlu0 %832
      %834 = vrot.lane.b32.xlu0 %v808, 96
      %v835 = vpop.permute.xlu0 %834
      %836 = vrot.lane.b32.xlu0 %v809, 96
      %v837 = vpop.permute.xlu0 %836
      %838 = vrot.lane.b32.xlu0 %v826, 32
      %v839 = vpop.permute.xlu0 %838
      %840 = vrot.lane.b32.xlu0 %v827, 32
      %v841 = vpop.permute.xlu0 %840
      %842 = vrot.lane.b32.xlu0 %v828, 32
      %v843 = vpop.permute.xlu0 %842
      %844 = vrot.lane.b32.xlu0 %v829, 32
      %v845 = vpop.permute.xlu0 %844
      %vm846 = vcmask 261120
      %v849 = vsel %vm846, %v771, %v791
      %v852 = vsel %vm846, %v773, %v793
      %v855 = vsel %vm846, %v775, %v795
      %v858 = vsel %vm846, %v777, %v797
      %vm859 = vcmask 523264
      %v860 = vsel %vm859, %v849, %v791
      %v861 = vsel %vm859, %v852, %v793
      %v862 = vsel %vm859, %v855, %v795
      %v863 = vsel %vm859, %v858, %v797
      %vm864 = vcmask 785408
      %v866 = vsel %vm864, %v860, %v811
      %v869 = vsel %vm864, %v861, %v813
      %v872 = vsel %vm864, %v862, %v815
      %v875 = vsel %vm864, %v863, %v817
      %v882 = vsel %vm859, %v826, %v831
      %v884 = vsel %vm859, %v827, %v833
      %v886 = vsel %vm859, %v828, %v835
      %v888 = vsel %vm859, %v829, %v837
      %v890 = vsel %vm864, %v882, %v839
      %v893 = vsel %vm864, %v884, %v841
      %v896 = vsel %vm864, %v886, %v843
      %v899 = vsel %vm864, %v888, %v845
      %v937 = vunpack.c.l.b16 %v272
      %v938 = vunpack.c.l.b16 %v273
      %v939 = vunpack.c.l.b16 %v274
      %v940 = vunpack.c.l.b16 %v275
      %v941 = vunpack.c.l.b16 %v276
      %v942 = vunpack.c.l.b16 %v277
      %v943 = vunpack.c.l.b16 %v278
      %v944 = vunpack.c.l.b16 %v279
      %v945 = vunpack.c.l.b16 %v280
      %v946 = vunpack.c.l.b16 %v281
      %v947 = vunpack.c.l.b16 %v282
      %v948 = vunpack.c.l.b16 %v283
      %v949 = vunpack.c.l.b16 %v284
      %v950 = vunpack.c.l.b16 %v285
      %v951 = vunpack.c.l.b16 %v286
      %v952 = vunpack.c.l.b16 %v287
      %v953 = vunpack.c.l.b16 %v288
      %v954 = vunpack.c.l.b16 %v289
      %v955 = vunpack.c.l.b16 %v290
      %v956 = vunpack.c.l.b16 %v291
      %v957 = vunpack.c.l.b16 %v292
      %v958 = vunpack.c.l.b16 %v293
      %v959 = vunpack.c.l.b16 %v294
      %v960 = vunpack.c.l.b16 %v295
      %v961 = vunpack.c.l.b16 %v296
      %v962 = vunpack.c.l.b16 %v297
      %v963 = vunpack.c.l.b16 %v298
      %v964 = vunpack.c.l.b16 %v299
      %v965 = vunpack.c.l.b16 %v300
      %v966 = vunpack.c.l.b16 %v301
      %v967 = vunpack.c.l.b16 %v302
      %v968 = vunpack.c.l.b16 %v303
      %v969 = vunpack.c.l.b16 %v304
      %v970 = vunpack.c.l.b16 %v305
      %v971 = vunpack.c.l.b16 %v306
      %v972 = vunpack.c.l.b16 %v307
      %v973 = vpack.c.b16 %v938, %v937
      %v974 = vpack.c.b16 %v940, %v939
      %v975 = vpack.c.b16 %v942, %v941
      %v976 = vpack.c.b16 %v944, %v943
      %v977 = vpack.c.b16 %v946, %v945
      %v978 = vpack.c.b16 %v948, %v947
      %v979 = vpack.c.b16 %v950, %v949
      %v980 = vpack.c.b16 %v952, %v951
      %v981 = vpack.c.b16 %v954, %v953
      %v982 = vpack.c.b16 %v956, %v955
      %v983 = vpack.c.b16 %v958, %v957
      %v984 = vpack.c.b16 %v960, %v959
      %v985 = vpack.c.b16 %v962, %v961
      %v986 = vpack.c.b16 %v964, %v963
      %v987 = vpack.c.b16 %v966, %v965
      %v988 = vpack.c.b16 %v968, %v967
      %v989 = vpack.c.b16 %v970, %v969
      %v990 = vpack.c.b16 %v972, %v971
      %v1009 = vsel %vm846, %v839, 0
      %v1011 = vsel %vm846, %v841, 0
      %v1013 = vsel %vm846, %v843, 0
      %v1015 = vsel %vm846, %v845, 0
      %1017 = vmatprep.subr.bf16.mxu0 0
      %1018 = vmatpush1.bf16.msra.mxu0 %v973
      %1019 = vmatprep.subr.bf16.mxu0 0
      %1020 = vmatpush1.bf16.msra.mxu0 %v974
      %1021 = vmatprep.subr.bf16.mxu0 0
      %1022 = vmatpush1.bf16.msra.mxu0 %v975
      %1023 = vmatprep.subr.bf16.mxu0 0
      %1024 = vmatpush1.bf16.msra.mxu0 %v976
      %1025 = vmatprep.subr.bf16.mxu0 0
      %1026 = vmatpush1.bf16.msra.mxu0 %v977
      %1027 = vmatprep.subr.bf16.mxu0 0
      %1028 = vmatpush1.bf16.msra.mxu0 %v978
      %1029 = vmatprep.subr.bf16.mxu0 0
      %1030 = vmatpush1.bf16.msra.mxu0 %v979
      %1031 = vmatprep.subr.bf16.mxu0 0
      %1032 = vmatpush1.bf16.msra.mxu0 %v980
      %1033 = vmatprep.subr.bf16.mxu0 0
      %1034 = vmatpush1.bf16.msra.mxu0 %v981
      %1035 = vmatprep.subr.bf16.mxu0 0
      %1036 = vmatpush1.bf16.msra.mxu0 %v982
      %1037 = vmatprep.subr.bf16.mxu0 0
      %1038 = vmatpush1.bf16.msra.mxu0 %v983
      %1039 = vmatprep.subr.bf16.mxu0 0
      %1040 = vmatpush1.bf16.msra.mxu0 %v984
      %1041 = vmatprep.subr.bf16.mxu0 0
      %1042 = vmatpush1.bf16.msra.mxu0 %v985
      %1043 = vmatprep.subr.bf16.mxu0 0
      %1044 = vmatpush1.bf16.msra.mxu0 %v986
      %1045 = vmatprep.subr.bf16.mxu0 0
      %1046 = vmatpush1.bf16.msra.mxu0 %v987
      %1047 = vmatprep.subr.bf16.mxu0 0
      %1048 = vmatpush1.bf16.msra.mxu0 %v988
      %1049 = vmatprep.mubr.bf16.mxu0 %v890
      %1050 = vmatmul.mubr.bf16.gmra.mrb[0].mxu0 %v866
      %v1051 = vpop.f32.mrb[0].mxu0
      %v1052 = vadd.f32 0.0, %v1051
      %v1053 = vpop.f32.mrb[0].mxu0
      %v1054 = vpop.f32.mrb[0].mxu0
      %v1055 = vadd.f32 0.0, %v1054
      %v1056 = vpop.f32.mrb[0].mxu0
      %1057 = vmatprep.mubr.bf16.mxu0 %v893
      %1058 = vmatmul.mubr.bf16.gmra.mrb[0].mxu0 %v869
      %v1059 = vpop.f32.mrb[0].mxu0
      %v1060 = vadd.f32 0.0, %v1059
      %v1061 = vpop.f32.mrb[0].mxu0
      %v1062 = vpop.f32.mrb[0].mxu0
      %v1063 = vadd.f32 0.0, %v1062
      %v1064 = vpop.f32.mrb[0].mxu0
      %1065 = vmatprep.mubr.bf16.mxu0 %v896
      %1066 = vmatmul.mubr.bf16.gmra.mrb[0].mxu0 %v872
      %v1067 = vpop.f32.mrb[0].mxu0
      %v1068 = vadd.f32 0.0, %v1067
      %v1069 = vpop.f32.mrb[0].mxu0
      %v1070 = vpop.f32.mrb[0].mxu0
      %v1071 = vadd.f32 0.0, %v1070
      %v1072 = vpop.f32.mrb[0].mxu0
      %1073 = vmatprep.mubr.bf16.mxu0 %v899
      %1074 = vmatmul.mubr.bf16.gmra.mrb[0].mxu0 %v875
      %v1075 = vpop.f32.mrb[0].mxu0
      %v1076 = vadd.f32 0.0, %v1075
      %v1077 = vpop.f32.mrb[0].mxu0
      %v1078 = vpop.f32.mrb[0].mxu0
      %v1079 = vadd.f32 0.0, %v1078
      %v1080 = vpop.f32.mrb[0].mxu0
      %1081 = vdwg.mxu0
      %1082 = vmatprep.subr.bf16.mxu0 0
      %1083 = vmatpush1.bf16.msra.mxu0 %v989
      %1084 = vmatprep.subr.bf16.mxu0 0
      %1085 = vmatpush1.bf16.msra.mxu0 %v990
      %1086 = vmatprep.subr.bf16.mxu0 0
      %1087 = vmatpush1.bf16.msra.mxu0 0
      %1088 = vmatprep.subr.bf16.mxu0 0
      %1089 = vmatpush1.bf16.msra.mxu0 0
      %1090 = vmatprep.subr.bf16.mxu0 0
      %1091 = vmatpush1.bf16.msra.mxu0 0
      %1092 = vmatprep.subr.bf16.mxu0 0
      %1093 = vmatpush1.bf16.msra.mxu0 0
      %1094 = vmatprep.subr.bf16.mxu0 0
      %1095 = vmatpush1.bf16.msra.mxu0 0
      %1096 = vmatprep.subr.bf16.mxu0 0
      %1097 = vmatpush1.bf16.msra.mxu0 0
      %1098 = vmatprep.subr.bf16.mxu0 0
      %1099 = vmatpush1.bf16.msra.mxu0 0
      %1100 = vmatprep.subr.bf16.mxu0 0
      %1101 = vmatpush1.bf16.msra.mxu0 0
      %1102 = vmatprep.subr.bf16.mxu0 0
      %1103 = vmatpush1.bf16.msra.mxu0 0
      %1104 = vmatprep.subr.bf16.mxu0 0
      %1105 = vmatpush1.bf16.msra.mxu0 0
      %1106 = vmatprep.subr.bf16.mxu0 0
      %1107 = vmatpush1.bf16.msra.mxu0 0
      %1108 = vmatprep.subr.bf16.mxu0 0
      %1109 = vmatpush1.bf16.msra.mxu0 0
      %1110 = vmatprep.subr.bf16.mxu0 0
      %1111 = vmatpush1.bf16.msra.mxu0 0
      %1112 = vmatprep.subr.bf16.mxu0 0
      %1113 = vmatpush1.bf16.msra.mxu0 0
      %1114 = vmatprep.mubr.bf16.mxu0 0
      %1115 = vmatmul.mubr.bf16.gmra.mrb[0].mxu0 %v1009
      %v1116 = vpop.f32.mrb[0].mxu0
      %v1117 = vadd.f32 %v1052, %v1116
      %v1118 = vpop.f32.mrb[0].mxu0
      %v1119 = vpop.f32.mrb[0].mxu0
      %v1120 = vadd.f32 %v1055, %v1119
      %v1121 = vpop.f32.mrb[0].mxu0
      %1122 = vmatprep.mubr.bf16.mxu0 0
      %1123 = vmatmul.mubr.bf16.gmra.mrb[0].mxu0 %v1011
      %v1124 = vpop.f32.mrb[0].mxu0
      %v1125 = vadd.f32 %v1060, %v1124
      %v1126 = vpop.f32.mrb[0].mxu0
      %v1127 = vpop.f32.mrb[0].mxu0
      %v1128 = vadd.f32 %v1063, %v1127
      %v1129 = vpop.f32.mrb[0].mxu0
      %1130 = vmatprep.mubr.bf16.mxu0 0
      %1131 = vmatmul.mubr.bf16.gmra.mrb[0].mxu0 %v1013
      %v1132 = vpop.f32.mrb[0].mxu0
      %v1133 = vadd.f32 %v1068, %v1132
      %v1134 = vpop.f32.mrb[0].mxu0
      %v1135 = vpop.f32.mrb[0].mxu0
      %v1136 = vadd.f32 %v1071, %v1135
      %v1137 = vpop.f32.mrb[0].mxu0
      %1138 = vmatprep.mubr.bf16.mxu0 0
      %1139 = vmatmul.mubr.bf16.gmra.mrb[0].mxu0 %v1015
      %v1140 = vpop.f32.mrb[0].mxu0
      %v1141 = vadd.f32 %v1076, %v1140
      %v1142 = vpop.f32.mrb[0].mxu0
      %v1143 = vpop.f32.mrb[0].mxu0
      %v1144 = vadd.f32 %v1079, %v1143
      %v1145 = vpop.f32.mrb[0].mxu0
      %1146 = vdwg.mxu0
      %v1147 = vld [vmem:[%s382 + $0x4] sm:$0x3]
      %v1148 = vld [vmem:[%s382 + $0xc] sm:$0x3]
      %v1149 = vld [vmem:[%s382 + $0x14] sm:$0x3]
      %v1150 = vld [vmem:[%s382 + $0x1c] sm:$0x3]
      %v1151 = vld [vmem:[%s382 + $0x24] sm:$0x3]
      %v1152 = vld [vmem:[%s382 + $0x2c] sm:$0x3]
      %v1153 = vld [vmem:[%s382 + $0x34] sm:$0x3]
      %v1154 = vld [vmem:[%s382 + $0x3c] sm:$0x3]
      %vm1155 = vsmask.f32 2304
      %vm1156 = vsmask.f32 6416
      %vm1157 = vmor %vm1155, %vm1156
      %v1159 = vshrl.u32 %v514, 16
      %v1161 = vrot.slane %v1159, 5
      %v1162 = vshll.u32 %v514, 16
      %v1164 = vrot.slane %v1162, 6
      %v1165 = vor.u32 %v1161, %v1164
      %v1166 = vrot.slane %v1165, 4
      %v1168 = vshrl.u32 %v1147, 16
      %v1170 = vrot.slane %v1168, 5
      %v1171 = vshll.u32 %v1147, 16
      %v1173 = vrot.slane %v1171, 6
      %v1174 = vor.u32 %v1170, %v1173
      %v1175 = vsel %vm1157, %v1166, %v1174
      %v1177 = vshrl.u32 %v515, 16
      %v1179 = vrot.slane %v1177, 5
      %v1180 = vshll.u32 %v515, 16
      %v1182 = vrot.slane %v1180, 6
      %v1183 = vor.u32 %v1179, %v1182
      %v1184 = vrot.slane %v1183, 4
      %v1186 = vshrl.u32 %v1148, 16
      %v1188 = vrot.slane %v1186, 5
      %v1189 = vshll.u32 %v1148, 16
      %v1191 = vrot.slane %v1189, 6
      %v1192 = vor.u32 %v1188, %v1191
      %v1193 = vsel %vm1157, %v1184, %v1192
      %v1195 = vshrl.u32 %v516, 16
      %v1197 = vrot.slane %v1195, 5
      %v1198 = vshll.u32 %v516, 16
      %v1200 = vrot.slane %v1198, 6
      %v1201 = vor.u32 %v1197, %v1200
      %v1202 = vrot.slane %v1201, 4
      %v1204 = vshrl.u32 %v1149, 16
      %v1206 = vrot.slane %v1204, 5
      %v1207 = vshll.u32 %v1149, 16
      %v1209 = vrot.slane %v1207, 6
      %v1210 = vor.u32 %v1206, %v1209
      %v1211 = vsel %vm1157, %v1202, %v1210
      %v1213 = vshrl.u32 %v517, 16
      %v1215 = vrot.slane %v1213, 5
      %v1216 = vshll.u32 %v517, 16
      %v1218 = vrot.slane %v1216, 6
      %v1219 = vor.u32 %v1215, %v1218
      %v1220 = vrot.slane %v1219, 4
      %v1222 = vshrl.u32 %v1150, 16
      %v1224 = vrot.slane %v1222, 5
      %v1225 = vshll.u32 %v1150, 16
      %v1227 = vrot.slane %v1225, 6
      %v1228 = vor.u32 %v1224, %v1227
      %v1229 = vsel %vm1157, %v1220, %v1228
      %v1231 = vshrl.u32 %v518, 16
      %v1233 = vrot.slane %v1231, 5
      %v1234 = vshll.u32 %v518, 16
      %v1236 = vrot.slane %v1234, 6
      %v1237 = vor.u32 %v1233, %v1236
      %v1238 = vrot.slane %v1237, 4
      %v1240 = vshrl.u32 %v1151, 16
      %v1242 = vrot.slane %v1240, 5
      %v1243 = vshll.u32 %v1151, 16
      %v1245 = vrot.slane %v1243, 6
      %v1246 = vor.u32 %v1242, %v1245
      %v1247 = vsel %vm1157, %v1238, %v1246
      %v1249 = vshrl.u32 %v519, 16
      %v1251 = vrot.slane %v1249, 5
      %v1252 = vshll.u32 %v519, 16
      %v1254 = vrot.slane %v1252, 6
      %v1255 = vor.u32 %v1251, %v1254
      %v1256 = vrot.slane %v1255, 4
      %v1258 = vshrl.u32 %v1152, 16
      %v1260 = vrot.slane %v1258, 5
      %v1261 = vshll.u32 %v1152, 16
      %v1263 = vrot.slane %v1261, 6
      %v1264 = vor.u32 %v1260, %v1263
      %v1265 = vsel %vm1157, %v1256, %v1264
      %v1267 = vshrl.u32 %v520, 16
      %v1269 = vrot.slane %v1267, 5
      %v1270 = vshll.u32 %v520, 16
      %v1272 = vrot.slane %v1270, 6
      %v1273 = vor.u32 %v1269, %v1272
      %v1274 = vrot.slane %v1273, 4
      %v1276 = vshrl.u32 %v1153, 16
      %v1278 = vrot.slane %v1276, 5
      %v1279 = vshll.u32 %v1153, 16
      %v1281 = vrot.slane %v1279, 6
      %v1282 = vor.u32 %v1278, %v1281
      %v1283 = vsel %vm1157, %v1274, %v1282
      %v1285 = vshrl.u32 %v521, 16
      %v1287 = vrot.slane %v1285, 5
      %v1288 = vshll.u32 %v521, 16
      %v1290 = vrot.slane %v1288, 6
      %v1291 = vor.u32 %v1287, %v1290
      %v1292 = vrot.slane %v1291, 4
      %v1294 = vshrl.u32 %v1154, 16
      %v1296 = vrot.slane %v1294, 5
      %v1297 = vshll.u32 %v1154, 16
      %v1299 = vrot.slane %v1297, 6
      %v1300 = vor.u32 %v1296, %v1299
      %v1301 = vsel %vm1157, %v1292, %v1300
      %v1302 = vld [vmem:[%s573 + $0x4] sm:$0x3]
      %v1303 = vld [vmem:[%s573 + $0xc] sm:$0x3]
      %v1304 = vld [vmem:[%s573 + $0x14] sm:$0x3]
      %v1305 = vld [vmem:[%s573 + $0x1c] sm:$0x3]
      %v1306 = vld [vmem:[%s573 + $0x24] sm:$0x3]
      %v1307 = vld [vmem:[%s573 + $0x2c] sm:$0x3]
      %v1308 = vld [vmem:[%s573 + $0x34] sm:$0x3]
      %v1309 = vld [vmem:[%s573 + $0x3c] sm:$0x3]
      %v1311 = vshrl.u32 %v702, 16
      %v1313 = vrot.slane %v1311, 5
      %v1314 = vshll.u32 %v702, 16
      %v1316 = vrot.slane %v1314, 6
      %v1317 = vor.u32 %v1313, %v1316
      %v1318 = vrot.slane %v1317, 4
      %v1320 = vshrl.u32 %v1302, 16
      %v1322 = vrot.slane %v1320, 5
      %v1323 = vshll.u32 %v1302, 16
      %v1325 = vrot.slane %v1323, 6
      %v1326 = vor.u32 %v1322, %v1325
      %v1327 = vsel %vm1157, %v1318, %v1326
      %v1329 = vshrl.u32 %v703, 16
      %v1331 = vrot.slane %v1329, 5
      %v1332 = vshll.u32 %v703, 16
      %v1334 = vrot.slane %v1332, 6
      %v1335 = vor.u32 %v1331, %v1334
      %v1336 = vrot.slane %v1335, 4
      %v1338 = vshrl.u32 %v1303, 16
      %v1340 = vrot.slane %v1338, 5
      %v1341 = vshll.u32 %v1303, 16
      %v1343 = vrot.slane %v1341, 6
      %v1344 = vor.u32 %v1340, %v1343
      %v1345 = vsel %vm1157, %v1336, %v1344
      %v1347 = vshrl.u32 %v704, 16
      %v1349 = vrot.slane %v1347, 5
      %v1350 = vshll.u32 %v704, 16
      %v1352 = vrot.slane %v1350, 6
      %v1353 = vor.u32 %v1349, %v1352
      %v1354 = vrot.slane %v1353, 4
      %v1356 = vshrl.u32 %v1304, 16
      %v1358 = vrot.slane %v1356, 5
      %v1359 = vshll.u32 %v1304, 16
      %v1361 = vrot.slane %v1359, 6
      %v1362 = vor.u32 %v1358, %v1361
      %v1363 = vsel %vm1157, %v1354, %v1362
      %v1365 = vshrl.u32 %v705, 16
      %v1367 = vrot.slane %v1365, 5
      %v1368 = vshll.u32 %v705, 16
      %v1370 = vrot.slane %v1368, 6
      %v1371 = vor.u32 %v1367, %v1370
      %v1372 = vrot.slane %v1371, 4
      %v1374 = vshrl.u32 %v1305, 16
      %v1376 = vrot.slane %v1374, 5
      %v1377 = vshll.u32 %v1305, 16
      %v1379 = vrot.slane %v1377, 6
      %v1380 = vor.u32 %v1376, %v1379
      %v1381 = vsel %vm1157, %v1372, %v1380
      %v1383 = vshrl.u32 %v706, 16
      %v1385 = vrot.slane %v1383, 5
      %v1386 = vshll.u32 %v706, 16
      %v1388 = vrot.slane %v1386, 6
      %v1389 = vor.u32 %v1385, %v1388
      %v1390 = vrot.slane %v1389, 4
      %v1392 = vshrl.u32 %v1306, 16
      %v1394 = vrot.slane %v1392, 5
      %v1395 = vshll.u32 %v1306, 16
      %v1397 = vrot.slane %v1395, 6
      %v1398 = vor.u32 %v1394, %v1397
      %v1399 = vsel %vm1157, %v1390, %v1398
      %v1401 = vshrl.u32 %v707, 16
      %v1403 = vrot.slane %v1401, 5
      %v1404 = vshll.u32 %v707, 16
      %v1406 = vrot.slane %v1404, 6
      %v1407 = vor.u32 %v1403, %v1406
      %v1408 = vrot.slane %v1407, 4
      %v1410 = vshrl.u32 %v1307, 16
      %v1412 = vrot.slane %v1410, 5
      %v1413 = vshll.u32 %v1307, 16
      %v1415 = vrot.slane %v1413, 6
      %v1416 = vor.u32 %v1412, %v1415
      %v1417 = vsel %vm1157, %v1408, %v1416
      %v1419 = vshrl.u32 %v708, 16
      %v1421 = vrot.slane %v1419, 5
      %v1422 = vshll.u32 %v708, 16
      %v1424 = vrot.slane %v1422, 6
      %v1425 = vor.u32 %v1421, %v1424
      %v1426 = vrot.slane %v1425, 4
      %v1428 = vshrl.u32 %v1308, 16
      %v1430 = vrot.slane %v1428, 5
      %v1431 = vshll.u32 %v1308, 16
      %v1433 = vrot.slane %v1431, 6
      %v1434 = vor.u32 %v1430, %v1433
      %v1435 = vsel %vm1157, %v1426, %v1434
      %v1437 = vshrl.u32 %v709, 16
      %v1439 = vrot.slane %v1437, 5
      %v1440 = vshll.u32 %v709, 16
      %v1442 = vrot.slane %v1440, 6
      %v1443 = vor.u32 %v1439, %v1442
      %v1444 = vrot.slane %v1443, 4
      %v1446 = vshrl.u32 %v1309, 16
      %v1448 = vrot.slane %v1446, 5
      %v1449 = vshll.u32 %v1309, 16
      %v1451 = vrot.slane %v1449, 6
      %v1452 = vor.u32 %v1448, %v1451
      %v1453 = vsel %vm1157, %v1444, %v1452
      %s1454 = scalar_lea.vmem %s253, 24
      %v1455 = vld [vmem:[%s1454] sm:$0xf]
      %v1456 = vld [vmem:[%s1454 + $0x4] sm:$0x1]
      %v1457 = vld [vmem:[%s1454 + $0x8] sm:$0xf]
      %v1458 = vld [vmem:[%s1454 + $0xc] sm:$0x1]
      %v1459 = vld [vmem:[%s1454 + $0x10] sm:$0xf]
      %v1460 = vld [vmem:[%s1454 + $0x14] sm:$0x1]
      %v1461 = vld [vmem:[%s1454 + $0x18] sm:$0xf]
      %v1462 = vld [vmem:[%s1454 + $0x1c] sm:$0x1]
      %v1463 = vld [vmem:[%s1454 + $0x20] sm:$0xf]
      %v1464 = vld [vmem:[%s1454 + $0x24] sm:$0x1]
      %v1465 = vld [vmem:[%s1454 + $0x28] sm:$0xf]
      %v1466 = vld [vmem:[%s1454 + $0x2c] sm:$0x1]
      %v1467 = vld [vmem:[%s1454 + $0x30] sm:$0xf]
      %v1468 = vld [vmem:[%s1454 + $0x34] sm:$0x1]
      %v1469 = vld [vmem:[%s1454 + $0x38] sm:$0xf]
      %v1470 = vld [vmem:[%s1454 + $0x3c] sm:$0x1]
      %v1472 = vshrl.u32 %v1455, 16
      %v1474 = vrot.slane %v1472, 4
      %v1475 = vshll.u32 %v1455, 16
      %v1477 = vrot.slane %v1475, 5
      %v1478 = vor.u32 %v1474, %v1477
      %v1479 = vrot.slane %v1478, 4
      %v1481 = vshll.u32 %v1456, 16
      %v1483 = vrot.slane %v1481, 5
      %v1484 = vsel %vm401, %v1479, %v1483
      %v1486 = vshrl.u32 %v1457, 16
      %v1488 = vrot.slane %v1486, 4
      %v1489 = vshll.u32 %v1457, 16
      %v1491 = vrot.slane %v1489, 5
      %v1492 = vor.u32 %v1488, %v1491
      %v1493 = vrot.slane %v1492, 4
      %v1495 = vshll.u32 %v1458, 16
      %v1497 = vrot.slane %v1495, 5
      %v1498 = vsel %vm401, %v1493, %v1497
      %v1500 = vshrl.u32 %v1459, 16
      %v1502 = vrot.slane %v1500, 4
      %v1503 = vshll.u32 %v1459, 16
      %v1505 = vrot.slane %v1503, 5
      %v1506 = vor.u32 %v1502, %v1505
      %v1507 = vrot.slane %v1506, 4
      %v1509 = vshll.u32 %v1460, 16
      %v1511 = vrot.slane %v1509, 5
      %v1512 = vsel %vm401, %v1507, %v1511
      %v1514 = vshrl.u32 %v1461, 16
      %v1516 = vrot.slane %v1514, 4
      %v1517 = vshll.u32 %v1461, 16
      %v1519 = vrot.slane %v1517, 5
      %v1520 = vor.u32 %v1516, %v1519
      %v1521 = vrot.slane %v1520, 4
      %v1523 = vshll.u32 %v1462, 16
      %v1525 = vrot.slane %v1523, 5
      %v1526 = vsel %vm401, %v1521, %v1525
      %v1528 = vshrl.u32 %v1463, 16
      %v1530 = vrot.slane %v1528, 4
      %v1531 = vshll.u32 %v1463, 16
      %v1533 = vrot.slane %v1531, 5
      %v1534 = vor.u32 %v1530, %v1533
      %v1535 = vrot.slane %v1534, 4
      %v1537 = vshll.u32 %v1464, 16
      %v1539 = vrot.slane %v1537, 5
      %v1540 = vsel %vm401, %v1535, %v1539
      %v1542 = vshrl.u32 %v1465, 16
      %v1544 = vrot.slane %v1542, 4
      %v1545 = vshll.u32 %v1465, 16
      %v1547 = vrot.slane %v1545, 5
      %v1548 = vor.u32 %v1544, %v1547
      %v1549 = vrot.slane %v1548, 4
      %v1551 = vshll.u32 %v1466, 16
      %v1553 = vrot.slane %v1551, 5
      %v1554 = vsel %vm401, %v1549, %v1553
      %v1556 = vshrl.u32 %v1467, 16
      %v1558 = vrot.slane %v1556, 4
      %v1559 = vshll.u32 %v1467, 16
      %v1561 = vrot.slane %v1559, 5
      %v1562 = vor.u32 %v1558, %v1561
      %v1563 = vrot.slane %v1562, 4
      %v1565 = vshll.u32 %v1468, 16
      %v1567 = vrot.slane %v1565, 5
      %v1568 = vsel %vm401, %v1563, %v1567
      %v1570 = vshrl.u32 %v1469, 16
      %v1572 = vrot.slane %v1570, 4
      %v1573 = vshll.u32 %v1469, 16
      %v1575 = vrot.slane %v1573, 5
      %v1576 = vor.u32 %v1572, %v1575
      %v1577 = vrot.slane %v1576, 4
      %v1579 = vshll.u32 %v1470, 16
      %v1581 = vrot.slane %v1579, 5
      %v1582 = vsel %vm401, %v1577, %v1581
      %v1583 = vld [vmem:[%s1454] sm:$0xe]
      %v1584 = vld [vmem:[%s1454 + $0x8] sm:$0xe]
      %v1585 = vld [vmem:[%s1454 + $0x10] sm:$0xe]
      %v1586 = vld [vmem:[%s1454 + $0x18] sm:$0xe]
      %v1587 = vld [vmem:[%s1454 + $0x20] sm:$0xe]
      %v1588 = vld [vmem:[%s1454 + $0x28] sm:$0xe]
      %v1589 = vld [vmem:[%s1454 + $0x30] sm:$0xe]
      %v1590 = vld [vmem:[%s1454 + $0x38] sm:$0xe]
      %v1607 = vrot.slane %v1583, 5
      %v1608 = vrot.slane %v1607, 4
      %v1609 = vrot.slane %v1456, 5
      %v1610 = vsel %vm540, %v1608, %v1609
      %v1611 = vrot.slane %v1584, 5
      %v1612 = vrot.slane %v1611, 4
      %v1613 = vrot.slane %v1458, 5
      %v1614 = vsel %vm540, %v1612, %v1613
      %v1615 = vrot.slane %v1585, 5
      %v1616 = vrot.slane %v1615, 4
      %v1617 = vrot.slane %v1460, 5
      %v1618 = vsel %vm540, %v1616, %v1617
      %v1619 = vrot.slane %v1586, 5
      %v1620 = vrot.slane %v1619, 4
      %v1621 = vrot.slane %v1462, 5
      %v1622 = vsel %vm540, %v1620, %v1621
      %v1623 = vrot.slane %v1587, 5
      %v1624 = vrot.slane %v1623, 4
      %v1625 = vrot.slane %v1464, 5
      %v1626 = vsel %vm540, %v1624, %v1625
      %v1627 = vrot.slane %v1588, 5
      %v1628 = vrot.slane %v1627, 4
      %v1629 = vrot.slane %v1466, 5
      %v1630 = vsel %vm540, %v1628, %v1629
      %v1631 = vrot.slane %v1589, 5
      %v1632 = vrot.slane %v1631, 4
      %v1633 = vrot.slane %v1468, 5
      %v1634 = vsel %vm540, %v1632, %v1633
      %v1635 = vrot.slane %v1590, 5
      %v1636 = vrot.slane %v1635, 4
      %v1637 = vrot.slane %v1470, 5
      %v1638 = vsel %vm540, %v1636, %v1637
      %v1639 = vld [vmem:[%s1454 + $0x4] sm:$0x3]
      %v1640 = vld [vmem:[%s1454 + $0xc] sm:$0x3]
      %v1641 = vld [vmem:[%s1454 + $0x14] sm:$0x3]
      %v1642 = vld [vmem:[%s1454 + $0x1c] sm:$0x3]
      %v1643 = vld [vmem:[%s1454 + $0x24] sm:$0x3]
      %v1644 = vld [vmem:[%s1454 + $0x2c] sm:$0x3]
      %v1645 = vld [vmem:[%s1454 + $0x34] sm:$0x3]
      %v1646 = vld [vmem:[%s1454 + $0x3c] sm:$0x3]
      %v1648 = vshrl.u32 %v1583, 16
      %v1650 = vrot.slane %v1648, 5
      %v1651 = vshll.u32 %v1583, 16
      %v1653 = vrot.slane %v1651, 6
      %v1654 = vor.u32 %v1650, %v1653
      %v1655 = vrot.slane %v1654, 4
      %v1657 = vshrl.u32 %v1639, 16
      %v1659 = vrot.slane %v1657, 5
      %v1660 = vshll.u32 %v1639, 16
      %v1662 = vrot.slane %v1660, 6
      %v1663 = vor.u32 %v1659, %v1662
      %v1664 = vsel %vm1157, %v1655, %v1663
      %v1666 = vshrl.u32 %v1584, 16
      %v1668 = vrot.slane %v1666, 5
      %v1669 = vshll.u32 %v1584, 16
      %v1671 = vrot.slane %v1669, 6
      %v1672 = vor.u32 %v1668, %v1671
      %v1673 = vrot.slane %v1672, 4
      %v1675 = vshrl.u32 %v1640, 16
      %v1677 = vrot.slane %v1675, 5
      %v1678 = vshll.u32 %v1640, 16
      %v1680 = vrot.slane %v1678, 6
      %v1681 = vor.u32 %v1677, %v1680
      %v1682 = vsel %vm1157, %v1673, %v1681
      %v1684 = vshrl.u32 %v1585, 16
      %v1686 = vrot.slane %v1684, 5
      %v1687 = vshll.u32 %v1585, 16
      %v1689 = vrot.slane %v1687, 6
      %v1690 = vor.u32 %v1686, %v1689
      %v1691 = vrot.slane %v1690, 4
      %v1693 = vshrl.u32 %v1641, 16
      %v1695 = vrot.slane %v1693, 5
      %v1696 = vshll.u32 %v1641, 16
      %v1698 = vrot.slane %v1696, 6
      %v1699 = vor.u32 %v1695, %v1698
      %v1700 = vsel %vm1157, %v1691, %v1699
      %v1702 = vshrl.u32 %v1586, 16
      %v1704 = vrot.slane %v1702, 5
      %v1705 = vshll.u32 %v1586, 16
      %v1707 = vrot.slane %v1705, 6
      %v1708 = vor.u32 %v1704, %v1707
      %v1709 = vrot.slane %v1708, 4
      %v1711 = vshrl.u32 %v1642, 16
      %v1713 = vrot.slane %v1711, 5
      %v1714 = vshll.u32 %v1642, 16
      %v1716 = vrot.slane %v1714, 6
      %v1717 = vor.u32 %v1713, %v1716
      %v1718 = vsel %vm1157, %v1709, %v1717
      %v1720 = vshrl.u32 %v1587, 16
      %v1722 = vrot.slane %v1720, 5
      %v1723 = vshll.u32 %v1587, 16
      %v1725 = vrot.slane %v1723, 6
      %v1726 = vor.u32 %v1722, %v1725
      %v1727 = vrot.slane %v1726, 4
      %v1729 = vshrl.u32 %v1643, 16
      %v1731 = vrot.slane %v1729, 5
      %v1732 = vshll.u32 %v1643, 16
      %v1734 = vrot.slane %v1732, 6
      %v1735 = vor.u32 %v1731, %v1734
      %v1736 = vsel %vm1157, %v1727, %v1735
      %v1738 = vshrl.u32 %v1588, 16
      %v1740 = vrot.slane %v1738, 5
      %v1741 = vshll.u32 %v1588, 16
      %v1743 = vrot.slane %v1741, 6
      %v1744 = vor.u32 %v1740, %v1743
      %v1745 = vrot.slane %v1744, 4
      %v1747 = vshrl.u32 %v1644, 16
      %v1749 = vrot.slane %v1747, 5
      %v1750 = vshll.u32 %v1644, 16
      %v1752 = vrot.slane %v1750, 6
      %v1753 = vor.u32 %v1749, %v1752
      %v1754 = vsel %vm1157, %v1745, %v1753
      %v1756 = vshrl.u32 %v1589, 16
      %v1758 = vrot.slane %v1756, 5
      %v1759 = vshll.u32 %v1589, 16
      %v1761 = vrot.slane %v1759, 6
      %v1762 = vor.u32 %v1758, %v1761
      %v1763 = vrot.slane %v1762, 4
      %v1765 = vshrl.u32 %v1645, 16
      %v1767 = vrot.slane %v1765, 5
      %v1768 = vshll.u32 %v1645, 16
      %v1770 = vrot.slane %v1768, 6
      %v1771 = vor.u32 %v1767, %v1770
      %v1772 = vsel %vm1157, %v1763, %v1771
      %v1774 = vshrl.u32 %v1590, 16
      %v1776 = vrot.slane %v1774, 5
      %v1777 = vshll.u32 %v1590, 16
      %v1779 = vrot.slane %v1777, 6
      %v1780 = vor.u32 %v1776, %v1779
      %v1781 = vrot.slane %v1780, 4
      %v1783 = vshrl.u32 %v1646, 16
      %v1785 = vrot.slane %v1783, 5
      %v1786 = vshll.u32 %v1646, 16
      %v1788 = vrot.slane %v1786, 6
      %v1789 = vor.u32 %v1785, %v1788
      %v1790 = vsel %vm1157, %v1781, %v1789
      %1791 = vrot.lane.b32.xlu0 %v786, 32
      %v1792 = vpop.permute.xlu0 %1791
      %1793 = vrot.lane.b32.xlu0 %v787, 32
      %v1794 = vpop.permute.xlu0 %1793
      %1795 = vrot.lane.b32.xlu0 %v788, 32
      %v1796 = vpop.permute.xlu0 %1795
      %1797 = vrot.lane.b32.xlu0 %v789, 32
      %v1798 = vpop.permute.xlu0 %1797
      %v1799 = vunpack.c.l.b16 %v1175
      %v1800 = vunpack.c.l.b16 %v1193
      %v1801 = vunpack.c.l.b16 %v1211
      %v1802 = vunpack.c.l.b16 %v1229
      %v1803 = vunpack.c.l.b16 %v1247
      %v1804 = vunpack.c.l.b16 %v1265
      %v1805 = vunpack.c.l.b16 %v1283
      %v1806 = vunpack.c.l.b16 %v1301
      %v1807 = vpack.c.b16 %v1800, %v1799
      %v1808 = vpack.c.b16 %v1802, %v1801
      %v1809 = vpack.c.b16 %v1804, %v1803
      %v1810 = vpack.c.b16 %v1806, %v1805
      %1811 = vrot.lane.b32.xlu0 %v1807, 64
      %v1812 = vpop.permute.xlu0 %1811
      %1813 = vrot.lane.b32.xlu0 %v1808, 64
      %v1814 = vpop.permute.xlu0 %1813
      %1815 = vrot.lane.b32.xlu0 %v1809, 64
      %v1816 = vpop.permute.xlu0 %1815
      %1817 = vrot.lane.b32.xlu0 %v1810, 64
      %v1818 = vpop.permute.xlu0 %1817
      %v1819 = vunpack.c.l.b16 %v1327
      %v1820 = vunpack.c.l.b16 %v1345
      %v1821 = vunpack.c.l.b16 %v1363
      %v1822 = vunpack.c.l.b16 %v1381
      %v1823 = vunpack.c.l.b16 %v1399
      %v1824 = vunpack.c.l.b16 %v1417
      %v1825 = vunpack.c.l.b16 %v1435
      %v1826 = vunpack.c.l.b16 %v1453
      %v1827 = vpack.c.b16 %v1820, %v1819
      %v1828 = vpack.c.b16 %v1822, %v1821
      %v1829 = vpack.c.b16 %v1824, %v1823
      %v1830 = vpack.c.b16 %v1826, %v1825
      %1831 = vrot.lane.b32.xlu0 %v1827, 32
      %v1832 = vpop.permute.xlu0 %1831
      %1833 = vrot.lane.b32.xlu0 %v1828, 32
      %v1834 = vpop.permute.xlu0 %1833
      %1835 = vrot.lane.b32.xlu0 %v1829, 32
      %v1836 = vpop.permute.xlu0 %1835
      %1837 = vrot.lane.b32.xlu0 %v1830, 32
      %v1838 = vpop.permute.xlu0 %1837
      %v1839 = vunpack.c.l.b16 %v1484
      %v1840 = vunpack.c.l.b16 %v1498
      %v1841 = vunpack.c.l.b16 %v1512
      %v1842 = vunpack.c.l.b16 %v1526
      %v1843 = vunpack.c.l.b16 %v1540
      %v1844 = vunpack.c.l.b16 %v1554
      %v1845 = vunpack.c.l.b16 %v1568
      %v1846 = vunpack.c.l.b16 %v1582
      %v1847 = vpack.c.b16 %v1840, %v1839
      %v1848 = vpack.c.b16 %v1842, %v1841
      %v1849 = vpack.c.b16 %v1844, %v1843
      %v1850 = vpack.c.b16 %v1846, %v1845
      %1851 = vrot.lane.b32.xlu0 %v1847, 64
      %v1852 = vpop.permute.xlu0 %1851
      %1853 = vrot.lane.b32.xlu0 %v1848, 64
      %v1854 = vpop.permute.xlu0 %1853
      %1855 = vrot.lane.b32.xlu0 %v1849, 64
      %v1856 = vpop.permute.xlu0 %1855
      %1857 = vrot.lane.b32.xlu0 %v1850, 64
      %v1858 = vpop.permute.xlu0 %1857
      %v1859 = vunpack.c.l.b16 %v1610
      %v1860 = vunpack.c.l.b16 %v1614
      %v1861 = vunpack.c.l.b16 %v1618
      %v1862 = vunpack.c.l.b16 %v1622
      %v1863 = vunpack.c.l.b16 %v1626
      %v1864 = vunpack.c.l.b16 %v1630
      %v1865 = vunpack.c.l.b16 %v1634
      %v1866 = vunpack.c.l.b16 %v1638
      %v1867 = vpack.c.b16 %v1860, %v1859
      %v1868 = vpack.c.b16 %v1862, %v1861
      %v1869 = vpack.c.b16 %v1864, %v1863
      %v1870 = vpack.c.b16 %v1866, %v1865
      %1871 = vrot.lane.b32.xlu0 %v1867, 96
      %v1872 = vpop.permute.xlu0 %1871
      %1873 = vrot.lane.b32.xlu0 %v1868, 96
      %v1874 = vpop.permute.xlu0 %1873
      %1875 = vrot.lane.b32.xlu0 %v1869, 96
      %v1876 = vpop.permute.xlu0 %1875
      %1877 = vrot.lane.b32.xlu0 %v1870, 96
      %v1878 = vpop.permute.xlu0 %1877
      %v1879 = vunpack.c.l.b16 %v1664
      %v1880 = vunpack.c.l.b16 %v1682
      %v1881 = vunpack.c.l.b16 %v1700
      %v1882 = vunpack.c.l.b16 %v1718
      %v1883 = vunpack.c.l.b16 %v1736
      %v1884 = vunpack.c.l.b16 %v1754
      %v1885 = vunpack.c.l.b16 %v1772
      %v1886 = vunpack.c.l.b16 %v1790
      %v1887 = vpack.c.b16 %v1880, %v1879
      %v1888 = vpack.c.b16 %v1882, %v1881
      %v1889 = vpack.c.b16 %v1884, %v1883
      %v1890 = vpack.c.b16 %v1886, %v1885
      %v1893 = vsel %vm846, %v766, %v1792
      %v1896 = vsel %vm846, %v767, %v1794
      %v1899 = vsel %vm846, %v768, %v1796
      %v1902 = vsel %vm846, %v769, %v1798
      %v1904 = vsel %vm859, %v1893, %v1812
      %v1906 = vsel %vm859, %v1896, %v1814
      %v1908 = vsel %vm859, %v1899, %v1816
      %v1910 = vsel %vm859, %v1902, %v1818
      %v1911 = vsel %vm864, %v1904, %v831
      %v1913 = vsel %vm864, %v1906, %v833
      %v1915 = vsel %vm864, %v1908, %v835
      %v1917 = vsel %vm864, %v1910, %v837
      %v1920 = vsel %vm846, %v826, %v1832
      %v1922 = vsel %vm846, %v827, %v1834
      %v1924 = vsel %vm846, %v828, %v1836
      %v1926 = vsel %vm846, %v829, %v1838
      %v1928 = vsel %vm859, %v1920, %v1852
      %v1930 = vsel %vm859, %v1922, %v1854
      %v1932 = vsel %vm859, %v1924, %v1856
      %v1934 = vsel %vm859, %v1926, %v1858
      %v1936 = vsel %vm864, %v1928, %v1872
      %v1939 = vsel %vm864, %v1930, %v1874
      %v1942 = vsel %vm864, %v1932, %v1876
      %v1945 = vsel %vm864, %v1934, %v1878
      %v1983 = vunpack.c.l.b16 %v309
      %v1984 = vunpack.c.l.b16 %v310
      %v1985 = vunpack.c.l.b16 %v311
      %v1986 = vunpack.c.l.b16 %v312
      %v1987 = vunpack.c.l.b16 %v313
      %v1988 = vunpack.c.l.b16 %v314
      %v1989 = vunpack.c.l.b16 %v315
      %v1990 = vunpack.c.l.b16 %v316
      %v1991 = vunpack.c.l.b16 %v317
      %v1992 = vunpack.c.l.b16 %v318
      %v1993 = vunpack.c.l.b16 %v319
      %v1994 = vunpack.c.l.b16 %v320
      %v1995 = vunpack.c.l.b16 %v321
      %v1996 = vunpack.c.l.b16 %v322
      %v1997 = vunpack.c.l.b16 %v323
      %v1998 = vunpack.c.l.b16 %v324
      %v1999 = vunpack.c.l.b16 %v325
      %v2000 = vunpack.c.l.b16 %v326
      %v2001 = vunpack.c.l.b16 %v327
      %v2002 = vunpack.c.l.b16 %v328
      %v2003 = vunpack.c.l.b16 %v329
      %v2004 = vunpack.c.l.b16 %v330
      %v2005 = vunpack.c.l.b16 %v331
      %v2006 = vunpack.c.l.b16 %v332
      %v2007 = vunpack.c.l.b16 %v333
      %v2008 = vunpack.c.l.b16 %v334
      %v2009 = vunpack.c.l.b16 %v335
      %v2010 = vunpack.c.l.b16 %v336
      %v2011 = vunpack.c.l.b16 %v337
      %v2012 = vunpack.c.l.b16 %v338
      %v2013 = vunpack.c.l.b16 %v339
      %v2014 = vunpack.c.l.b16 %v340
      %v2015 = vunpack.c.l.b16 %v341
      %v2016 = vunpack.c.l.b16 %v342
      %v2017 = vunpack.c.l.b16 %v343
      %v2018 = vunpack.c.l.b16 %v344
      %v2019 = vpack.c.b16 %v1984, %v1983
      %v2020 = vpack.c.b16 %v1986, %v1985
      %v2021 = vpack.c.b16 %v1988, %v1987
      %v2022 = vpack.c.b16 %v1990, %v1989
      %v2023 = vpack.c.b16 %v1992, %v1991
      %v2024 = vpack.c.b16 %v1994, %v1993
      %v2025 = vpack.c.b16 %v1996, %v1995
      %v2026 = vpack.c.b16 %v1998, %v1997
      %v2027 = vpack.c.b16 %v2000, %v1999
      %v2028 = vpack.c.b16 %v2002, %v2001
      %v2029 = vpack.c.b16 %v2004, %v2003
      %v2030 = vpack.c.b16 %v2006, %v2005
      %v2031 = vpack.c.b16 %v2008, %v2007
      %v2032 = vpack.c.b16 %v2010, %v2009
      %v2033 = vpack.c.b16 %v2012, %v2011
      %v2034 = vpack.c.b16 %v2014, %v2013
      %v2035 = vpack.c.b16 %v2016, %v2015
      %v2036 = vpack.c.b16 %v2018, %v2017
      %v2056 = vsel %vm846, %v1887, 0
      %v2059 = vsel %vm846, %v1888, 0
      %v2062 = vsel %vm846, %v1889, 0
      %v2065 = vsel %vm846, %v1890, 0
      %2067 = vmatprep.subr.bf16.mxu0 0
      %2068 = vmatpush1.bf16.msra.mxu0 %v2019
      %2069 = vmatprep.subr.bf16.mxu0 0
      %2070 = vmatpush1.bf16.msra.mxu0 %v2020
      %2071 = vmatprep.subr.bf16.mxu0 0
      %2072 = vmatpush1.bf16.msra.mxu0 %v2021
      %2073 = vmatprep.subr.bf16.mxu0 0
      %2074 = vmatpush1.bf16.msra.mxu0 %v2022
      %2075 = vmatprep.subr.bf16.mxu0 0
      %2076 = vmatpush1.bf16.msra.mxu0 %v2023
      %2077 = vmatprep.subr.bf16.mxu0 0
      %2078 = vmatpush1.bf16.msra.mxu0 %v2024
      %2079 = vmatprep.subr.bf16.mxu0 0
      %2080 = vmatpush1.bf16.msra.mxu0 %v2025
      %2081 = vmatprep.subr.bf16.mxu0 0
      %2082 = vmatpush1.bf16.msra.mxu0 %v2026
      %2083 = vmatprep.subr.bf16.mxu0 0
      %2084 = vmatpush1.bf16.msra.mxu0 %v2027
      %2085 = vmatprep.subr.bf16.mxu0 0
      %2086 = vmatpush1.bf16.msra.mxu0 %v2028
      %2087 = vmatprep.subr.bf16.mxu0 0
      %2088 = vmatpush1.bf16.msra.mxu0 %v2029
      %2089 = vmatprep.subr.bf16.mxu0 0
      %2090 = vmatpush1.bf16.msra.mxu0 %v2030
      %2091 = vmatprep.subr.bf16.mxu0 0
      %2092 = vmatpush1.bf16.msra.mxu0 %v2031
      %2093 = vmatprep.subr.bf16.mxu0 0
      %2094 = vmatpush1.bf16.msra.mxu0 %v2032
      %2095 = vmatprep.subr.bf16.mxu0 0
      %2096 = vmatpush1.bf16.msra.mxu0 %v2033
      %2097 = vmatprep.subr.bf16.mxu0 0
      %2098 = vmatpush1.bf16.msra.mxu0 %v2034
      %2099 = vmatprep.mubr.bf16.mxu0 %v1936
      %2100 = vmatmul.mubr.bf16.gmra.mrb[0].mxu0 %v1911
      %v2101 = vpop.f32.mrb[0].mxu0
      %v2102 = vadd.f32 0.0, %v2101
      %v2103 = vpop.f32.mrb[0].mxu0
      %v2104 = vpop.f32.mrb[0].mxu0
      %v2105 = vadd.f32 0.0, %v2104
      %v2106 = vpop.f32.mrb[0].mxu0
      %2107 = vmatprep.mubr.bf16.mxu0 %v1939
      %2108 = vmatmul.mubr.bf16.gmra.mrb[0].mxu0 %v1913
      %v2109 = vpop.f32.mrb[0].mxu0
      %v2110 = vadd.f32 0.0, %v2109
      %v2111 = vpop.f32.mrb[0].mxu0
      %v2112 = vpop.f32.mrb[0].mxu0
      %v2113 = vadd.f32 0.0, %v2112
      %v2114 = vpop.f32.mrb[0].mxu0
      %2115 = vmatprep.mubr.bf16.mxu0 %v1942
      %2116 = vmatmul.mubr.bf16.gmra.mrb[0].mxu0 %v1915
      %v2117 = vpop.f32.mrb[0].mxu0
      %v2118 = vadd.f32 0.0, %v2117
      %v2119 = vpop.f32.mrb[0].mxu0
      %v2120 = vpop.f32.mrb[0].mxu0
      %v2121 = vadd.f32 0.0, %v2120
      %v2122 = vpop.f32.mrb[0].mxu0
      %2123 = vmatprep.mubr.bf16.mxu0 %v1945
      %2124 = vmatmul.mubr.bf16.gmra.mrb[0].mxu0 %v1917
      %v2125 = vpop.f32.mrb[0].mxu0
      %v2126 = vadd.f32 0.0, %v2125
      %v2127 = vpop.f32.mrb[0].mxu0
      %v2128 = vpop.f32.mrb[0].mxu0
      %v2129 = vadd.f32 0.0, %v2128
      %v2130 = vpop.f32.mrb[0].mxu0
      %2131 = vdwg.mxu0
      %2132 = vmatprep.subr.bf16.mxu0 0
      %2133 = vmatpush1.bf16.msra.mxu0 %v2035
      %2134 = vmatprep.subr.bf16.mxu0 0
      %2135 = vmatpush1.bf16.msra.mxu0 %v2036
      %2136 = vmatprep.subr.bf16.mxu0 0
      %2137 = vmatpush1.bf16.msra.mxu0 0
      %2138 = vmatprep.subr.bf16.mxu0 0
      %2139 = vmatpush1.bf16.msra.mxu0 0
      %2140 = vmatprep.subr.bf16.mxu0 0
      %2141 = vmatpush1.bf16.msra.mxu0 0
      %2142 = vmatprep.subr.bf16.mxu0 0
      %2143 = vmatpush1.bf16.msra.mxu0 0
      %2144 = vmatprep.subr.bf16.mxu0 0
      %2145 = vmatpush1.bf16.msra.mxu0 0
      %2146 = vmatprep.subr.bf16.mxu0 0
      %2147 = vmatpush1.bf16.msra.mxu0 0
      %2148 = vmatprep.subr.bf16.mxu0 0
      %2149 = vmatpush1.bf16.msra.mxu0 0
      %2150 = vmatprep.subr.bf16.mxu0 0
      %2151 = vmatpush1.bf16.msra.mxu0 0
      %2152 = vmatprep.subr.bf16.mxu0 0
      %2153 = vmatpush1.bf16.msra.mxu0 0
      %2154 = vmatprep.subr.bf16.mxu0 0
      %2155 = vmatpush1.bf16.msra.mxu0 0
      %2156 = vmatprep.subr.bf16.mxu0 0
      %2157 = vmatpush1.bf16.msra.mxu0 0
      %2158 = vmatprep.subr.bf16.mxu0 0
      %2159 = vmatpush1.bf16.msra.mxu0 0
      %2160 = vmatprep.subr.bf16.mxu0 0
      %2161 = vmatpush1.bf16.msra.mxu0 0
      %2162 = vmatprep.subr.bf16.mxu0 0
      %2163 = vmatpush1.bf16.msra.mxu0 0
      %2164 = vmatprep.mubr.bf16.mxu0 0
      %2165 = vmatmul.mubr.bf16.gmra.mrb[0].mxu0 %v2056
      %v2166 = vpop.f32.mrb[0].mxu0
      %v2167 = vadd.f32 %v2102, %v2166
      %v2168 = vpop.f32.mrb[0].mxu0
      %v2169 = vpop.f32.mrb[0].mxu0
      %v2170 = vadd.f32 %v2105, %v2169
      %v2171 = vpop.f32.mrb[0].mxu0
      %2172 = vmatprep.mubr.bf16.mxu0 0
      %2173 = vmatmul.mubr.bf16.gmra.mrb[0].mxu0 %v2059
      %v2174 = vpop.f32.mrb[0].mxu0
      %v2175 = vadd.f32 %v2110, %v2174
      %v2176 = vpop.f32.mrb[0].mxu0
      %v2177 = vpop.f32.mrb[0].mxu0
      %v2178 = vadd.f32 %v2113, %v2177
      %v2179 = vpop.f32.mrb[0].mxu0
      %2180 = vmatprep.mubr.bf16.mxu0 0
      %2181 = vmatmul.mubr.bf16.gmra.mrb[0].mxu0 %v2062
      %v2182 = vpop.f32.mrb[0].mxu0
      %v2183 = vadd.f32 %v2118, %v2182
      %v2184 = vpop.f32.mrb[0].mxu0
      %v2185 = vpop.f32.mrb[0].mxu0
      %v2186 = vadd.f32 %v2121, %v2185
      %v2187 = vpop.f32.mrb[0].mxu0
      %2188 = vmatprep.mubr.bf16.mxu0 0
      %2189 = vmatmul.mubr.bf16.gmra.mrb[0].mxu0 %v2065
      %v2190 = vpop.f32.mrb[0].mxu0
      %v2191 = vadd.f32 %v2126, %v2190
      %v2192 = vpop.f32.mrb[0].mxu0
      %v2193 = vpop.f32.mrb[0].mxu0
      %v2194 = vadd.f32 %v2129, %v2193
      %v2195 = vpop.f32.mrb[0].mxu0
      %2196 = vdwg.mxu0
      %v2197 = vld [vmem:[%s253] sm:$0xf]
      %v2198 = vld [vmem:[%s253 + $0x8] sm:$0xf]
      %v2199 = vld [vmem:[%s253 + $0x10] sm:$0xf]
      %v2200 = vld [vmem:[%s253 + $0x18] sm:$0xf]
      %v2201 = vld [vmem:[%s253 + $0x20] sm:$0xf]
      %v2202 = vld [vmem:[%s253 + $0x28] sm:$0xf]
      %v2203 = vld [vmem:[%s253 + $0x30] sm:$0xf]
      %v2204 = vld [vmem:[%s253 + $0x38] sm:$0xf]
      %v2205 = vld [vmem:[%s253] sm:$0xe]
      %v2206 = vld [vmem:[%s253 + $0x4] sm:$0x1]
      %v2207 = vld [vmem:[%s253 + $0x8] sm:$0xe]
      %v2208 = vld [vmem:[%s253 + $0xc] sm:$0x1]
      %v2209 = vld [vmem:[%s253 + $0x10] sm:$0xe]
      %v2210 = vld [vmem:[%s253 + $0x14] sm:$0x1]
      %v2211 = vld [vmem:[%s253 + $0x18] sm:$0xe]
      %v2212 = vld [vmem:[%s253 + $0x1c] sm:$0x1]
      %v2213 = vld [vmem:[%s253 + $0x20] sm:$0xe]
      %v2214 = vld [vmem:[%s253 + $0x24] sm:$0x1]
      %v2215 = vld [vmem:[%s253 + $0x28] sm:$0xe]
      %v2216 = vld [vmem:[%s253 + $0x2c] sm:$0x1]
      %v2217 = vld [vmem:[%s253 + $0x30] sm:$0xe]
      %v2218 = vld [vmem:[%s253 + $0x34] sm:$0x1]
      %v2219 = vld [vmem:[%s253 + $0x38] sm:$0xe]
      %v2220 = vld [vmem:[%s253 + $0x3c] sm:$0x1]
      %v2237 = vrot.slane %v2205, 5
      %v2238 = vrot.slane %v2237, 4
      %v2239 = vrot.slane %v2206, 5
      %v2240 = vsel %vm540, %v2238, %v2239
      %v2241 = vrot.slane %v2207, 5
      %v2242 = vrot.slane %v2241, 4
      %v2243 = vrot.slane %v2208, 5
      %v2244 = vsel %vm540, %v2242, %v2243
      %v2245 = vrot.slane %v2209, 5
      %v2246 = vrot.slane %v2245, 4
      %v2247 = vrot.slane %v2210, 5
      %v2248 = vsel %vm540, %v2246, %v2247
      %v2249 = vrot.slane %v2211, 5
      %v2250 = vrot.slane %v2249, 4
      %v2251 = vrot.slane %v2212, 5
      %v2252 = vsel %vm540, %v2250, %v2251
      %v2253 = vrot.slane %v2213, 5
      %v2254 = vrot.slane %v2253, 4
      %v2255 = vrot.slane %v2214, 5
      %v2256 = vsel %vm540, %v2254, %v2255
      %v2257 = vrot.slane %v2215, 5
      %v2258 = vrot.slane %v2257, 4
      %v2259 = vrot.slane %v2216, 5
      %v2260 = vsel %vm540, %v2258, %v2259
      %v2261 = vrot.slane %v2217, 5
      %v2262 = vrot.slane %v2261, 4
      %v2263 = vrot.slane %v2218, 5
      %v2264 = vsel %vm540, %v2262, %v2263
      %v2265 = vrot.slane %v2219, 5
      %v2266 = vrot.slane %v2265, 4
      %v2267 = vrot.slane %v2220, 5
      %v2268 = vsel %vm540, %v2266, %v2267
      %v2269 = vld [vmem:[%s253] sm:$0xc]
      %v2270 = vld [vmem:[%s253 + $0x4] sm:$0x3]
      %v2271 = vld [vmem:[%s253 + $0x8] sm:$0xc]
      %v2272 = vld [vmem:[%s253 + $0xc] sm:$0x3]
      %v2273 = vld [vmem:[%s253 + $0x10] sm:$0xc]
      %v2274 = vld [vmem:[%s253 + $0x14] sm:$0x3]
      %v2275 = vld [vmem:[%s253 + $0x18] sm:$0xc]
      %v2276 = vld [vmem:[%s253 + $0x1c] sm:$0x3]
      %v2277 = vld [vmem:[%s253 + $0x20] sm:$0xc]
      %v2278 = vld [vmem:[%s253 + $0x24] sm:$0x3]
      %v2279 = vld [vmem:[%s253 + $0x28] sm:$0xc]
      %v2280 = vld [vmem:[%s253 + $0x2c] sm:$0x3]
      %v2281 = vld [vmem:[%s253 + $0x30] sm:$0xc]
      %v2282 = vld [vmem:[%s253 + $0x34] sm:$0x3]
      %v2283 = vld [vmem:[%s253 + $0x38] sm:$0xc]
      %v2284 = vld [vmem:[%s253 + $0x3c] sm:$0x3]
      %vm2301 = vcmask 1041408
      %vm2302 = vcmask 1045508
      %vm2303 = vmor %vm2301, %vm2302
      %v2304 = vrot.slane %v2269, 6
      %v2305 = vrot.slane %v2304, 4
      %v2306 = vrot.slane %v2270, 6
      %v2307 = vsel %vm2303, %v2305, %v2306
      %v2308 = vrot.slane %v2271, 6
      %v2309 = vrot.slane %v2308, 4
      %v2310 = vrot.slane %v2272, 6
      %v2311 = vsel %vm2303, %v2309, %v2310
      %v2312 = vrot.slane %v2273, 6
      %v2313 = vrot.slane %v2312, 4
      %v2314 = vrot.slane %v2274, 6
      %v2315 = vsel %vm2303, %v2313, %v2314
      %v2316 = vrot.slane %v2275, 6
      %v2317 = vrot.slane %v2316, 4
      %v2318 = vrot.slane %v2276, 6
      %v2319 = vsel %vm2303, %v2317, %v2318
      %v2320 = vrot.slane %v2277, 6
      %v2321 = vrot.slane %v2320, 4
      %v2322 = vrot.slane %v2278, 6
      %v2323 = vsel %vm2303, %v2321, %v2322
      %v2324 = vrot.slane %v2279, 6
      %v2325 = vrot.slane %v2324, 4
      %v2326 = vrot.slane %v2280, 6
      %v2327 = vsel %vm2303, %v2325, %v2326
      %v2328 = vrot.slane %v2281, 6
      %v2329 = vrot.slane %v2328, 4
      %v2330 = vrot.slane %v2282, 6
      %v2331 = vsel %vm2303, %v2329, %v2330
      %v2332 = vrot.slane %v2283, 6
      %v2333 = vrot.slane %v2332, 4
      %v2334 = vrot.slane %v2284, 6
      %v2335 = vsel %vm2303, %v2333, %v2334
      %v2336 = vld [vmem:[%s573] sm:$0xf]
      %v2337 = vld [vmem:[%s573 + $0x8] sm:$0xf]
      %v2338 = vld [vmem:[%s573 + $0x10] sm:$0xf]
      %v2339 = vld [vmem:[%s573 + $0x18] sm:$0xf]
      %v2340 = vld [vmem:[%s573 + $0x20] sm:$0xf]
      %v2341 = vld [vmem:[%s573 + $0x28] sm:$0xf]
      %v2342 = vld [vmem:[%s573 + $0x30] sm:$0xf]
      %v2343 = vld [vmem:[%s573 + $0x38] sm:$0xf]
      %v2344 = vld [vmem:[%s573] sm:$0xc]
      %v2345 = vld [vmem:[%s573 + $0x8] sm:$0xc]
      %v2346 = vld [vmem:[%s573 + $0x10] sm:$0xc]
      %v2347 = vld [vmem:[%s573 + $0x18] sm:$0xc]
      %v2348 = vld [vmem:[%s573 + $0x20] sm:$0xc]
      %v2349 = vld [vmem:[%s573 + $0x28] sm:$0xc]
      %v2350 = vld [vmem:[%s573 + $0x30] sm:$0xc]
      %v2351 = vld [vmem:[%s573 + $0x38] sm:$0xc]
      %v2368 = vrot.slane %v2344, 6
      %v2369 = vrot.slane %v2368, 4
      %v2370 = vrot.slane %v1302, 6
      %v2371 = vsel %vm2303, %v2369, %v2370
      %v2372 = vrot.slane %v2345, 6
      %v2373 = vrot.slane %v2372, 4
      %v2374 = vrot.slane %v1303, 6
      %v2375 = vsel %vm2303, %v2373, %v2374
      %v2376 = vrot.slane %v2346, 6
      %v2377 = vrot.slane %v2376, 4
      %v2378 = vrot.slane %v1304, 6
      %v2379 = vsel %vm2303, %v2377, %v2378
      %v2380 = vrot.slane %v2347, 6
      %v2381 = vrot.slane %v2380, 4
      %v2382 = vrot.slane %v1305, 6
      %v2383 = vsel %vm2303, %v2381, %v2382
      %v2384 = vrot.slane %v2348, 6
      %v2385 = vrot.slane %v2384, 4
      %v2386 = vrot.slane %v1306, 6
      %v2387 = vsel %vm2303, %v2385, %v2386
      %v2388 = vrot.slane %v2349, 6
      %v2389 = vrot.slane %v2388, 4
      %v2390 = vrot.slane %v1307, 6
      %v2391 = vsel %vm2303, %v2389, %v2390
      %v2392 = vrot.slane %v2350, 6
      %v2393 = vrot.slane %v2392, 4
      %v2394 = vrot.slane %v1308, 6
      %v2395 = vsel %vm2303, %v2393, %v2394
      %v2396 = vrot.slane %v2351, 6
      %v2397 = vrot.slane %v2396, 4
      %v2398 = vrot.slane %v1309, 6
      %v2399 = vsel %vm2303, %v2397, %v2398
      %s2400 = scalar_lea.vmem %s253, 32
      %v2401 = vld [vmem:[%s2400] sm:$0xf]
      %v2402 = vld [vmem:[%s2400 + $0x8] sm:$0xf]
      %v2403 = vld [vmem:[%s2400 + $0x10] sm:$0xf]
      %v2404 = vld [vmem:[%s2400 + $0x18] sm:$0xf]
      %v2405 = vld [vmem:[%s2400 + $0x20] sm:$0xf]
      %v2406 = vld [vmem:[%s2400 + $0x28] sm:$0xf]
      %v2407 = vld [vmem:[%s2400 + $0x30] sm:$0xf]
      %v2408 = vld [vmem:[%s2400 + $0x38] sm:$0xf]
      %v2409 = vld [vmem:[%s2400] sm:$0xe]
      %v2410 = vld [vmem:[%s2400 + $0x4] sm:$0x1]
      %v2411 = vld [vmem:[%s2400 + $0x8] sm:$0xe]
      %v2412 = vld [vmem:[%s2400 + $0xc] sm:$0x1]
      %v2413 = vld [vmem:[%s2400 + $0x10] sm:$0xe]
      %v2414 = vld [vmem:[%s2400 + $0x14] sm:$0x1]
      %v2415 = vld [vmem:[%s2400 + $0x18] sm:$0xe]
      %v2416 = vld [vmem:[%s2400 + $0x1c] sm:$0x1]
      %v2417 = vld [vmem:[%s2400 + $0x20] sm:$0xe]
      %v2418 = vld [vmem:[%s2400 + $0x24] sm:$0x1]
      %v2419 = vld [vmem:[%s2400 + $0x28] sm:$0xe]
      %v2420 = vld [vmem:[%s2400 + $0x2c] sm:$0x1]
      %v2421 = vld [vmem:[%s2400 + $0x30] sm:$0xe]
      %v2422 = vld [vmem:[%s2400 + $0x34] sm:$0x1]
      %v2423 = vld [vmem:[%s2400 + $0x38] sm:$0xe]
      %v2424 = vld [vmem:[%s2400 + $0x3c] sm:$0x1]
      %v2441 = vrot.slane %v2409, 5
      %v2442 = vrot.slane %v2441, 4
      %v2443 = vrot.slane %v2410, 5
      %v2444 = vsel %vm540, %v2442, %v2443
      %v2445 = vrot.slane %v2411, 5
      %v2446 = vrot.slane %v2445, 4
      %v2447 = vrot.slane %v2412, 5
      %v2448 = vsel %vm540, %v2446, %v2447
      %v2449 = vrot.slane %v2413, 5
      %v2450 = vrot.slane %v2449, 4
      %v2451 = vrot.slane %v2414, 5
      %v2452 = vsel %vm540, %v2450, %v2451
      %v2453 = vrot.slane %v2415, 5
      %v2454 = vrot.slane %v2453, 4
      %v2455 = vrot.slane %v2416, 5
      %v2456 = vsel %vm540, %v2454, %v2455
      %v2457 = vrot.slane %v2417, 5
      %v2458 = vrot.slane %v2457, 4
      %v2459 = vrot.slane %v2418, 5
      %v2460 = vsel %vm540, %v2458, %v2459
      %v2461 = vrot.slane %v2419, 5
      %v2462 = vrot.slane %v2461, 4
      %v2463 = vrot.slane %v2420, 5
      %v2464 = vsel %vm540, %v2462, %v2463
      %v2465 = vrot.slane %v2421, 5
      %v2466 = vrot.slane %v2465, 4
      %v2467 = vrot.slane %v2422, 5
      %v2468 = vsel %vm540, %v2466, %v2467
      %v2469 = vrot.slane %v2423, 5
      %v2470 = vrot.slane %v2469, 4
      %v2471 = vrot.slane %v2424, 5
      %v2472 = vsel %vm540, %v2470, %v2471
      %v2473 = vld [vmem:[%s2400] sm:$0xc]
      %v2474 = vld [vmem:[%s2400 + $0x4] sm:$0x3]
      %v2475 = vld [vmem:[%s2400 + $0x8] sm:$0xc]
      %v2476 = vld [vmem:[%s2400 + $0xc] sm:$0x3]
      %v2477 = vld [vmem:[%s2400 + $0x10] sm:$0xc]
      %v2478 = vld [vmem:[%s2400 + $0x14] sm:$0x3]
      %v2479 = vld [vmem:[%s2400 + $0x18] sm:$0xc]
      %v2480 = vld [vmem:[%s2400 + $0x1c] sm:$0x3]
      %v2481 = vld [vmem:[%s2400 + $0x20] sm:$0xc]
      %v2482 = vld [vmem:[%s2400 + $0x24] sm:$0x3]
      %v2483 = vld [vmem:[%s2400 + $0x28] sm:$0xc]
      %v2484 = vld [vmem:[%s2400 + $0x2c] sm:$0x3]
      %v2485 = vld [vmem:[%s2400 + $0x30] sm:$0xc]
      %v2486 = vld [vmem:[%s2400 + $0x34] sm:$0x3]
      %v2487 = vld [vmem:[%s2400 + $0x38] sm:$0xc]
      %v2488 = vld [vmem:[%s2400 + $0x3c] sm:$0x3]
      %v2505 = vrot.slane %v2473, 6
      %v2506 = vrot.slane %v2505, 4
      %v2507 = vrot.slane %v2474, 6
      %v2508 = vsel %vm2303, %v2506, %v2507
      %v2509 = vrot.slane %v2475, 6
      %v2510 = vrot.slane %v2509, 4
      %v2511 = vrot.slane %v2476, 6
      %v2512 = vsel %vm2303, %v2510, %v2511
      %v2513 = vrot.slane %v2477, 6
      %v2514 = vrot.slane %v2513, 4
      %v2515 = vrot.slane %v2478, 6
      %v2516 = vsel %vm2303, %v2514, %v2515
      %v2517 = vrot.slane %v2479, 6
      %v2518 = vrot.slane %v2517, 4
      %v2519 = vrot.slane %v2480, 6
      %v2520 = vsel %vm2303, %v2518, %v2519
      %v2521 = vrot.slane %v2481, 6
      %v2522 = vrot.slane %v2521, 4
      %v2523 = vrot.slane %v2482, 6
      %v2524 = vsel %vm2303, %v2522, %v2523
      %v2525 = vrot.slane %v2483, 6
      %v2526 = vrot.slane %v2525, 4
      %v2527 = vrot.slane %v2484, 6
      %v2528 = vsel %vm2303, %v2526, %v2527
      %v2529 = vrot.slane %v2485, 6
      %v2530 = vrot.slane %v2529, 4
      %v2531 = vrot.slane %v2486, 6
      %v2532 = vsel %vm2303, %v2530, %v2531
      %v2533 = vrot.slane %v2487, 6
      %v2534 = vrot.slane %v2533, 4
      %v2535 = vrot.slane %v2488, 6
      %v2536 = vsel %vm2303, %v2534, %v2535
      %v2545 = vunpack.c.l.b16 %v2197
      %v2546 = vunpack.c.l.b16 %v2198
      %v2547 = vunpack.c.l.b16 %v2199
      %v2548 = vunpack.c.l.b16 %v2200
      %v2549 = vunpack.c.l.b16 %v2201
      %v2550 = vunpack.c.l.b16 %v2202
      %v2551 = vunpack.c.l.b16 %v2203
      %v2552 = vunpack.c.l.b16 %v2204
      %v2553 = vpack.c.b16 %v2546, %v2545
      %v2554 = vpack.c.b16 %v2548, %v2547
      %v2555 = vpack.c.b16 %v2550, %v2549
      %v2556 = vpack.c.b16 %v2552, %v2551
      %v2557 = vunpack.c.l.b16 %v2240
      %v2558 = vunpack.c.l.b16 %v2244
      %v2559 = vunpack.c.l.b16 %v2248
      %v2560 = vunpack.c.l.b16 %v2252
      %v2561 = vunpack.c.l.b16 %v2256
      %v2562 = vunpack.c.l.b16 %v2260
      %v2563 = vunpack.c.l.b16 %v2264
      %v2564 = vunpack.c.l.b16 %v2268
      %v2565 = vpack.c.b16 %v2558, %v2557
      %v2566 = vpack.c.b16 %v2560, %v2559
      %v2567 = vpack.c.b16 %v2562, %v2561
      %v2568 = vpack.c.b16 %v2564, %v2563
      %2569 = vrot.lane.b32.xlu0 %v2565, 32
      %v2570 = vpop.permute.xlu0 %2569
      %2571 = vrot.lane.b32.xlu0 %v2566, 32
      %v2572 = vpop.permute.xlu0 %2571
      %2573 = vrot.lane.b32.xlu0 %v2567, 32
      %v2574 = vpop.permute.xlu0 %2573
      %2575 = vrot.lane.b32.xlu0 %v2568, 32
      %v2576 = vpop.permute.xlu0 %2575
      %v2577 = vunpack.c.l.b16 %v2307
      %v2578 = vunpack.c.l.b16 %v2311
      %v2579 = vunpack.c.l.b16 %v2315
      %v2580 = vunpack.c.l.b16 %v2319
      %v2581 = vunpack.c.l.b16 %v2323
      %v2582 = vunpack.c.l.b16 %v2327
      %v2583 = vunpack.c.l.b16 %v2331
      %v2584 = vunpack.c.l.b16 %v2335
      %v2585 = vpack.c.b16 %v2578, %v2577
      %v2586 = vpack.c.b16 %v2580, %v2579
      %v2587 = vpack.c.b16 %v2582, %v2581
      %v2588 = vpack.c.b16 %v2584, %v2583
      %2589 = vrot.lane.b32.xlu0 %v2585, 64
      %v2590 = vpop.permute.xlu0 %2589
      %2591 = vrot.lane.b32.xlu0 %v2586, 64
      %v2592 = vpop.permute.xlu0 %2591
      %2593 = vrot.lane.b32.xlu0 %v2587, 64
      %v2594 = vpop.permute.xlu0 %2593
      %2595 = vrot.lane.b32.xlu0 %v2588, 64
      %v2596 = vpop.permute.xlu0 %2595
      %v2605 = vunpack.c.l.b16 %v2336
      %v2606 = vunpack.c.l.b16 %v2337
      %v2607 = vunpack.c.l.b16 %v2338
      %v2608 = vunpack.c.l.b16 %v2339
      %v2609 = vunpack.c.l.b16 %v2340
      %v2610 = vunpack.c.l.b16 %v2341
      %v2611 = vunpack.c.l.b16 %v2342
      %v2612 = vunpack.c.l.b16 %v2343
      %v2613 = vpack.c.b16 %v2606, %v2605
      %v2614 = vpack.c.b16 %v2608, %v2607
      %v2615 = vpack.c.b16 %v2610, %v2609
      %v2616 = vpack.c.b16 %v2612, %v2611
      %2617 = vrot.lane.b32.xlu0 %v2613, 96
      %v2618 = vpop.permute.xlu0 %2617
      %2619 = vrot.lane.b32.xlu0 %v2614, 96
      %v2620 = vpop.permute.xlu0 %2619
      %2621 = vrot.lane.b32.xlu0 %v2615, 96
      %v2622 = vpop.permute.xlu0 %2621
      %2623 = vrot.lane.b32.xlu0 %v2616, 96
      %v2624 = vpop.permute.xlu0 %2623
      %v2625 = vunpack.c.l.b16 %v2371
      %v2626 = vunpack.c.l.b16 %v2375
      %v2627 = vunpack.c.l.b16 %v2379
      %v2628 = vunpack.c.l.b16 %v2383
      %v2629 = vunpack.c.l.b16 %v2387
      %v2630 = vunpack.c.l.b16 %v2391
      %v2631 = vunpack.c.l.b16 %v2395
      %v2632 = vunpack.c.l.b16 %v2399
      %v2633 = vpack.c.b16 %v2626, %v2625
      %v2634 = vpack.c.b16 %v2628, %v2627
      %v2635 = vpack.c.b16 %v2630, %v2629
      %v2636 = vpack.c.b16 %v2632, %v2631
      %2637 = vrot.lane.b32.xlu0 %v2633, 32
      %v2638 = vpop.permute.xlu0 %2637
      %2639 = vrot.lane.b32.xlu0 %v2634, 32
      %v2640 = vpop.permute.xlu0 %2639
      %2641 = vrot.lane.b32.xlu0 %v2635, 32
      %v2642 = vpop.permute.xlu0 %2641
      %2643 = vrot.lane.b32.xlu0 %v2636, 32
      %v2644 = vpop.permute.xlu0 %2643
      %v2653 = vunpack.c.l.b16 %v2401
      %v2654 = vunpack.c.l.b16 %v2402
      %v2655 = vunpack.c.l.b16 %v2403
      %v2656 = vunpack.c.l.b16 %v2404
      %v2657 = vunpack.c.l.b16 %v2405
      %v2658 = vunpack.c.l.b16 %v2406
      %v2659 = vunpack.c.l.b16 %v2407
      %v2660 = vunpack.c.l.b16 %v2408
      %v2661 = vpack.c.b16 %v2654, %v2653
      %v2662 = vpack.c.b16 %v2656, %v2655
      %v2663 = vpack.c.b16 %v2658, %v2657
      %v2664 = vpack.c.b16 %v2660, %v2659
      %2665 = vrot.lane.b32.xlu0 %v2661, 64
      %v2666 = vpop.permute.xlu0 %2665
      %2667 = vrot.lane.b32.xlu0 %v2662, 64
      %v2668 = vpop.permute.xlu0 %2667
      %2669 = vrot.lane.b32.xlu0 %v2663, 64
      %v2670 = vpop.permute.xlu0 %2669
      %2671 = vrot.lane.b32.xlu0 %v2664, 64
      %v2672 = vpop.permute.xlu0 %2671
      %v2673 = vunpack.c.l.b16 %v2444
      %v2674 = vunpack.c.l.b16 %v2448
      %v2675 = vunpack.c.l.b16 %v2452
      %v2676 = vunpack.c.l.b16 %v2456
      %v2677 = vunpack.c.l.b16 %v2460
      %v2678 = vunpack.c.l.b16 %v2464
      %v2679 = vunpack.c.l.b16 %v2468
      %v2680 = vunpack.c.l.b16 %v2472
      %v2681 = vpack.c.b16 %v2674, %v2673
      %v2682 = vpack.c.b16 %v2676, %v2675
      %v2683 = vpack.c.b16 %v2678, %v2677
      %v2684 = vpack.c.b16 %v2680, %v2679
      %2685 = vrot.lane.b32.xlu0 %v2681, 96
      %v2686 = vpop.permute.xlu0 %2685
      %2687 = vrot.lane.b32.xlu0 %v2682, 96
      %v2688 = vpop.permute.xlu0 %2687
      %2689 = vrot.lane.b32.xlu0 %v2683, 96
      %v2690 = vpop.permute.xlu0 %2689
      %2691 = vrot.lane.b32.xlu0 %v2684, 96
      %v2692 = vpop.permute.xlu0 %2691
      %v2693 = vunpack.c.l.b16 %v2508
      %v2694 = vunpack.c.l.b16 %v2512
      %v2695 = vunpack.c.l.b16 %v2516
      %v2696 = vunpack.c.l.b16 %v2520
      %v2697 = vunpack.c.l.b16 %v2524
      %v2698 = vunpack.c.l.b16 %v2528
      %v2699 = vunpack.c.l.b16 %v2532
      %v2700 = vunpack.c.l.b16 %v2536
      %v2701 = vpack.c.b16 %v2694, %v2693
      %v2702 = vpack.c.b16 %v2696, %v2695
      %v2703 = vpack.c.b16 %v2698, %v2697
      %v2704 = vpack.c.b16 %v2700, %v2699
      %v2707 = vsel %vm846, %v2553, %v2570
      %v2710 = vsel %vm846, %v2554, %v2572
      %v2713 = vsel %vm846, %v2555, %v2574
      %v2716 = vsel %vm846, %v2556, %v2576
      %v2718 = vsel %vm859, %v2707, %v2590
      %v2720 = vsel %vm859, %v2710, %v2592
      %v2722 = vsel %vm859, %v2713, %v2594
      %v2724 = vsel %vm859, %v2716, %v2596
      %v2726 = vsel %vm864, %v2718, %v2618
      %v2729 = vsel %vm864, %v2720, %v2620
      %v2732 = vsel %vm864, %v2722, %v2622
      %v2735 = vsel %vm864, %v2724, %v2624
      %v2738 = vsel %vm846, %v826, %v2638
      %v2740 = vsel %vm846, %v827, %v2640
      %v2742 = vsel %vm846, %v828, %v2642
      %v2744 = vsel %vm846, %v829, %v2644
      %v2746 = vsel %vm859, %v2738, %v2666
      %v2748 = vsel %vm859, %v2740, %v2668
      %v2750 = vsel %vm859, %v2742, %v2670
      %v2752 = vsel %vm859, %v2744, %v2672
      %v2754 = vsel %vm864, %v2746, %v2686
      %v2757 = vsel %vm864, %v2748, %v2688
      %v2760 = vsel %vm864, %v2750, %v2690
      %v2763 = vsel %vm864, %v2752, %v2692
      %v2801 = vunpack.c.l.b16 %v346
      %v2802 = vunpack.c.l.b16 %v347
      %v2803 = vunpack.c.l.b16 %v348
      %v2804 = vunpack.c.l.b16 %v349
      %v2805 = vunpack.c.l.b16 %v350
      %v2806 = vunpack.c.l.b16 %v351
      %v2807 = vunpack.c.l.b16 %v352
      %v2808 = vunpack.c.l.b16 %v353
      %v2809 = vunpack.c.l.b16 %v354
      %v2810 = vunpack.c.l.b16 %v355
      %v2811 = vunpack.c.l.b16 %v356
      %v2812 = vunpack.c.l.b16 %v357
      %v2813 = vunpack.c.l.b16 %v358
      %v2814 = vunpack.c.l.b16 %v359
      %v2815 = vunpack.c.l.b16 %v360
      %v2816 = vunpack.c.l.b16 %v361
      %v2817 = vunpack.c.l.b16 %v362
      %v2818 = vunpack.c.l.b16 %v363
      %v2819 = vunpack.c.l.b16 %v364
      %v2820 = vunpack.c.l.b16 %v365
      %v2821 = vunpack.c.l.b16 %v366
      %v2822 = vunpack.c.l.b16 %v367
      %v2823 = vunpack.c.l.b16 %v368
      %v2824 = vunpack.c.l.b16 %v369
      %v2825 = vunpack.c.l.b16 %v370
      %v2826 = vunpack.c.l.b16 %v371
      %v2827 = vunpack.c.l.b16 %v372
      %v2828 = vunpack.c.l.b16 %v373
      %v2829 = vunpack.c.l.b16 %v374
      %v2830 = vunpack.c.l.b16 %v375
      %v2831 = vunpack.c.l.b16 %v376
      %v2832 = vunpack.c.l.b16 %v377
      %v2833 = vunpack.c.l.b16 %v378
      %v2834 = vunpack.c.l.b16 %v379
      %v2835 = vunpack.c.l.b16 %v380
      %v2836 = vunpack.c.l.b16 %v381
      %v2837 = vpack.c.b16 %v2802, %v2801
      %v2838 = vpack.c.b16 %v2804, %v2803
      %v2839 = vpack.c.b16 %v2806, %v2805
      %v2840 = vpack.c.b16 %v2808, %v2807
      %v2841 = vpack.c.b16 %v2810, %v2809
      %v2842 = vpack.c.b16 %v2812, %v2811
      %v2843 = vpack.c.b16 %v2814, %v2813
      %v2844 = vpack.c.b16 %v2816, %v2815
      %v2845 = vpack.c.b16 %v2818, %v2817
      %v2846 = vpack.c.b16 %v2820, %v2819
      %v2847 = vpack.c.b16 %v2822, %v2821
      %v2848 = vpack.c.b16 %v2824, %v2823
      %v2849 = vpack.c.b16 %v2826, %v2825
      %v2850 = vpack.c.b16 %v2828, %v2827
      %v2851 = vpack.c.b16 %v2830, %v2829
      %v2852 = vpack.c.b16 %v2832, %v2831
      %v2853 = vpack.c.b16 %v2834, %v2833
      %v2854 = vpack.c.b16 %v2836, %v2835
      %v2874 = vsel %vm846, %v2701, 0
      %v2877 = vsel %vm846, %v2702, 0
      %v2880 = vsel %vm846, %v2703, 0
      %v2883 = vsel %vm846, %v2704, 0
      %2885 = vmatprep.subr.bf16.mxu0 0
      %2886 = vmatpush1.bf16.msra.mxu0 %v2837
      %2887 = vmatprep.subr.bf16.mxu0 0
      %2888 = vmatpush1.bf16.msra.mxu0 %v2838
      %2889 = vmatprep.subr.bf16.mxu0 0
      %2890 = vmatpush1.bf16.msra.mxu0 %v2839
      %2891 = vmatprep.subr.bf16.mxu0 0
      %2892 = vmatpush1.bf16.msra.mxu0 %v2840
      %2893 = vmatprep.subr.bf16.mxu0 0
      %2894 = vmatpush1.bf16.msra.mxu0 %v2841
      %2895 = vmatprep.subr.bf16.mxu0 0
      %2896 = vmatpush1.bf16.msra.mxu0 %v2842
      %2897 = vmatprep.subr.bf16.mxu0 0
      %2898 = vmatpush1.bf16.msra.mxu0 %v2843
      %2899 = vmatprep.subr.bf16.mxu0 0
      %2900 = vmatpush1.bf16.msra.mxu0 %v2844
      %2901 = vmatprep.subr.bf16.mxu0 0
      %2902 = vmatpush1.bf16.msra.mxu0 %v2845
      %2903 = vmatprep.subr.bf16.mxu0 0
      %2904 = vmatpush1.bf16.msra.mxu0 %v2846
      %2905 = vmatprep.subr.bf16.mxu0 0
      %2906 = vmatpush1.bf16.msra.mxu0 %v2847
      %2907 = vmatprep.subr.bf16.mxu0 0
      %2908 = vmatpush1.bf16.msra.mxu0 %v2848
      %2909 = vmatprep.subr.bf16.mxu0 0
      %2910 = vmatpush1.bf16.msra.mxu0 %v2849
      %2911 = vmatprep.subr.bf16.mxu0 0
      %2912 = vmatpush1.bf16.msra.mxu0 %v2850
      %2913 = vmatprep.subr.bf16.mxu0 0
      %2914 = vmatpush1.bf16.msra.mxu0 %v2851
      %2915 = vmatprep.subr.bf16.mxu0 0
      %2916 = vmatpush1.bf16.msra.mxu0 %v2852
      %2917 = vmatprep.mubr.bf16.mxu0 %v2754
      %2918 = vmatmul.mubr.bf16.gmra.mrb[0].mxu0 %v2726
      %v2919 = vpop.f32.mrb[0].mxu0
      %v2920 = vadd.f32 0.0, %v2919
      %v2921 = vpop.f32.mrb[0].mxu0
      %v2922 = vpop.f32.mrb[0].mxu0
      %v2923 = vadd.f32 0.0, %v2922
      %v2924 = vpop.f32.mrb[0].mxu0
      %2925 = vmatprep.mubr.bf16.mxu0 %v2757
      %2926 = vmatmul.mubr.bf16.gmra.mrb[0].mxu0 %v2729
      %v2927 = vpop.f32.mrb[0].mxu0
      %v2928 = vadd.f32 0.0, %v2927
      %v2929 = vpop.f32.mrb[0].mxu0
      %v2930 = vpop.f32.mrb[0].mxu0
      %v2931 = vadd.f32 0.0, %v2930
      %v2932 = vpop.f32.mrb[0].mxu0
      %2933 = vmatprep.mubr.bf16.mxu0 %v2760
      %2934 = vmatmul.mubr.bf16.gmra.mrb[0].mxu0 %v2732
      %v2935 = vpop.f32.mrb[0].mxu0
      %v2936 = vadd.f32 0.0, %v2935
      %v2937 = vpop.f32.mrb[0].mxu0
      %v2938 = vpop.f32.mrb[0].mxu0
      %v2939 = vadd.f32 0.0, %v2938
      %v2940 = vpop.f32.mrb[0].mxu0
      %2941 = vmatprep.mubr.bf16.mxu0 %v2763
      %2942 = vmatmul.mubr.bf16.gmra.mrb[0].mxu0 %v2735
      %v2943 = vpop.f32.mrb[0].mxu0
      %v2944 = vadd.f32 0.0, %v2943
      %v2945 = vpop.f32.mrb[0].mxu0
      %v2946 = vpop.f32.mrb[0].mxu0
      %v2947 = vadd.f32 0.0, %v2946
      %v2948 = vpop.f32.mrb[0].mxu0
      %2949 = vdwg.mxu0
      %2950 = vmatprep.subr.bf16.mxu0 0
      %2951 = vmatpush1.bf16.msra.mxu0 %v2853
      %2952 = vmatprep.subr.bf16.mxu0 0
      %2953 = vmatpush1.bf16.msra.mxu0 %v2854
      %2954 = vmatprep.subr.bf16.mxu0 0
      %2955 = vmatpush1.bf16.msra.mxu0 0
      %2956 = vmatprep.subr.bf16.mxu0 0
      %2957 = vmatpush1.bf16.msra.mxu0 0
      %2958 = vmatprep.subr.bf16.mxu0 0
      %2959 = vmatpush1.bf16.msra.mxu0 0
      %2960 = vmatprep.subr.bf16.mxu0 0
      %2961 = vmatpush1.bf16.msra.mxu0 0
      %2962 = vmatprep.subr.bf16.mxu0 0
      %2963 = vmatpush1.bf16.msra.mxu0 0
      %2964 = vmatprep.subr.bf16.mxu0 0
      %2965 = vmatpush1.bf16.msra.mxu0 0
      %2966 = vmatprep.subr.bf16.mxu0 0
      %2967 = vmatpush1.bf16.msra.mxu0 0
      %2968 = vmatprep.subr.bf16.mxu0 0
      %2969 = vmatpush1.bf16.msra.mxu0 0
      %2970 = vmatprep.subr.bf16.mxu0 0
      %2971 = vmatpush1.bf16.msra.mxu0 0
      %2972 = vmatprep.subr.bf16.mxu0 0
      %2973 = vmatpush1.bf16.msra.mxu0 0
      %2974 = vmatprep.subr.bf16.mxu0 0
      %2975 = vmatpush1.bf16.msra.mxu0 0
      %2976 = vmatprep.subr.bf16.mxu0 0
      %2977 = vmatpush1.bf16.msra.mxu0 0
      %2978 = vmatprep.subr.bf16.mxu0 0
      %2979 = vmatpush1.bf16.msra.mxu0 0
      %2980 = vmatprep.subr.bf16.mxu0 0
      %2981 = vmatpush1.bf16.msra.mxu0 0
      %2982 = vmatprep.mubr.bf16.mxu0 0
      %2983 = vmatmul.mubr.bf16.gmra.mrb[0].mxu0 %v2874
      %v2984 = vpop.f32.mrb[0].mxu0
      %v2985 = vadd.f32 %v2920, %v2984
      %v2986 = vpop.f32.mrb[0].mxu0
      %v2987 = vpop.f32.mrb[0].mxu0
      %v2988 = vadd.f32 %v2923, %v2987
      %v2989 = vpop.f32.mrb[0].mxu0
      %2990 = vmatprep.mubr.bf16.mxu0 0
      %2991 = vmatmul.mubr.bf16.gmra.mrb[0].mxu0 %v2877
      %v2992 = vpop.f32.mrb[0].mxu0
      %v2993 = vadd.f32 %v2928, %v2992
      %v2994 = vpop.f32.mrb[0].mxu0
      %v2995 = vpop.f32.mrb[0].mxu0
      %v2996 = vadd.f32 %v2931, %v2995
      %v2997 = vpop.f32.mrb[0].mxu0
      %2998 = vmatprep.mubr.bf16.mxu0 0
      %2999 = vmatmul.mubr.bf16.gmra.mrb[0].mxu0 %v2880
      %v3000 = vpop.f32.mrb[0].mxu0
      %v3001 = vadd.f32 %v2936, %v3000
      %v3002 = vpop.f32.mrb[0].mxu0
      %v3003 = vpop.f32.mrb[0].mxu0
      %v3004 = vadd.f32 %v2939, %v3003
      %v3005 = vpop.f32.mrb[0].mxu0
      %3006 = vmatprep.mubr.bf16.mxu0 0
      %3007 = vmatmul.mubr.bf16.gmra.mrb[0].mxu0 %v2883
      %v3008 = vpop.f32.mrb[0].mxu0
      %v3009 = vadd.f32 %v2944, %v3008
      %v3010 = vpop.f32.mrb[0].mxu0
      %v3011 = vpop.f32.mrb[0].mxu0
      %v3012 = vadd.f32 %v2947, %v3011
      %v3013 = vpop.f32.mrb[0].mxu0
      %3014 = vdwg.mxu0
      %v3019 = vunpack.c.l.b16 %v268
      %v3020 = vunpack.c.l.b16 %v269
      %v3021 = vunpack.c.l.b16 %v270
      %v3022 = vunpack.c.l.b16 %v271
      %v3023 = vpack.c.b16 %v3020, %v3019
      %v3024 = vpack.c.b16 %v3022, %v3021
      %v3027 = vsel %vm846, %v826, 0
      %v3029 = vsel %vm846, %v827, 0
      %v3031 = vsel %vm846, %v828, 0
      %v3033 = vsel %vm846, %v829, 0
      %3035 = vmatprep.subr.bf16.mxu0 0
      %3036 = vmatpush1.bf16.msra.mxu0 %v3023
      %3037 = vmatprep.subr.bf16.mxu0 0
      %3038 = vmatpush1.bf16.msra.mxu0 %v3024
      %3039 = vmatprep.subr.bf16.mxu0 0
      %3040 = vmatpush1.bf16.msra.mxu0 0
      %3041 = vmatprep.subr.bf16.mxu0 0
      %3042 = vmatpush1.bf16.msra.mxu0 0
      %3043 = vmatprep.subr.bf16.mxu0 0
      %3044 = vmatpush1.bf16.msra.mxu0 0
      %3045 = vmatprep.subr.bf16.mxu0 0
      %3046 = vmatpush1.bf16.msra.mxu0 0
      %3047 = vmatprep.subr.bf16.mxu0 0
      %3048 = vmatpush1.bf16.msra.mxu0 0
      %3049 = vmatprep.subr.bf16.mxu0 0
      %3050 = vmatpush1.bf16.msra.mxu0 0
      %3051 = vmatprep.subr.bf16.mxu0 0
      %3052 = vmatpush1.bf16.msra.mxu0 0
      %3053 = vmatprep.subr.bf16.mxu0 0
      %3054 = vmatpush1.bf16.msra.mxu0 0
      %3055 = vmatprep.subr.bf16.mxu0 0
      %3056 = vmatpush1.bf16.msra.mxu0 0
      %3057 = vmatprep.subr.bf16.mxu0 0
      %3058 = vmatpush1.bf16.msra.mxu0 0
      %3059 = vmatprep.subr.bf16.mxu0 0
      %3060 = vmatpush1.bf16.msra.mxu0 0
      %3061 = vmatprep.subr.bf16.mxu0 0
      %3062 = vmatpush1.bf16.msra.mxu0 0
      %3063 = vmatprep.subr.bf16.mxu0 0
      %3064 = vmatpush1.bf16.msra.mxu0 0
      %3065 = vmatprep.subr.bf16.mxu0 0
      %3066 = vmatpush1.bf16.msra.mxu0 0
      %3067 = vmatprep.mubr.bf16.mxu0 0
      %3068 = vmatmul.mubr.bf16.gmra.mrb[0].mxu0 %v3027
      %v3069 = vpop.f32.mrb[0].mxu0
      %v3070 = vadd.f32 0.0, %v3069
      %v3071 = vpop.f32.mrb[0].mxu0
      %v3072 = vpop.f32.mrb[0].mxu0
      %v3073 = vadd.f32 0.0, %v3072
      %v3074 = vpop.f32.mrb[0].mxu0
      %3075 = vmatprep.mubr.bf16.mxu0 0
      %3076 = vmatmul.mubr.bf16.gmra.mrb[0].mxu0 %v3029
      %v3077 = vpop.f32.mrb[0].mxu0
      %v3078 = vadd.f32 0.0, %v3077
      %v3079 = vpop.f32.mrb[0].mxu0
      %v3080 = vpop.f32.mrb[0].mxu0
      %v3081 = vadd.f32 0.0, %v3080
      %v3082 = vpop.f32.mrb[0].mxu0
      %3083 = vmatprep.mubr.bf16.mxu0 0
      %3084 = vmatmul.mubr.bf16.gmra.mrb[0].mxu0 %v3031
      %v3085 = vpop.f32.mrb[0].mxu0
      %v3086 = vadd.f32 0.0, %v3085
      %v3087 = vpop.f32.mrb[0].mxu0
      %v3088 = vpop.f32.mrb[0].mxu0
      %v3089 = vadd.f32 0.0, %v3088
      %v3090 = vpop.f32.mrb[0].mxu0
      %3091 = vmatprep.mubr.bf16.mxu0 0
      %3092 = vmatmul.mubr.bf16.gmra.mrb[0].mxu0 %v3033
      %v3093 = vpop.f32.mrb[0].mxu0
      %v3094 = vadd.f32 0.0, %v3093
      %v3095 = vpop.f32.mrb[0].mxu0
      %v3096 = vpop.f32.mrb[0].mxu0
      %v3097 = vadd.f32 0.0, %v3096
      %v3098 = vpop.f32.mrb[0].mxu0
      %3099 = vdwg.mxu0
      %3100 = vrot.lane.b32.xlu0 %v826, 96
      %v3101 = vpop.permute.xlu0 %3100
      %3102 = vrot.lane.b32.xlu0 %v827, 96
      %v3103 = vpop.permute.xlu0 %3102
      %3104 = vrot.lane.b32.xlu0 %v828, 96
      %v3105 = vpop.permute.xlu0 %3104
      %3106 = vrot.lane.b32.xlu0 %v829, 96
      %v3107 = vpop.permute.xlu0 %3106
      %v3109 = vsel %vm846, %v3101, 0
      %v3112 = vsel %vm846, %v3103, 0
      %v3115 = vsel %vm846, %v3105, 0
      %v3118 = vsel %vm846, %v3107, 0
      %3120 = vmatprep.subr.bf16.mxu0 0
      %3121 = vmatpush1.bf16.msra.mxu0 %v3023
      %3122 = vmatprep.subr.bf16.mxu0 0
      %3123 = vmatpush1.bf16.msra.mxu0 %v3024
      %3124 = vmatprep.subr.bf16.mxu0 0
      %3125 = vmatpush1.bf16.msra.mxu0 0
      %3126 = vmatprep.subr.bf16.mxu0 0
      %3127 = vmatpush1.bf16.msra.mxu0 0
      %3128 = vmatprep.subr.bf16.mxu0 0
      %3129 = vmatpush1.bf16.msra.mxu0 0
      %3130 = vmatprep.subr.bf16.mxu0 0
      %3131 = vmatpush1.bf16.msra.mxu0 0
      %3132 = vmatprep.subr.bf16.mxu0 0
      %3133 = vmatpush1.bf16.msra.mxu0 0
      %3134 = vmatprep.subr.bf16.mxu0 0
      %3135 = vmatpush1.bf16.msra.mxu0 0
      %3136 = vmatprep.subr.bf16.mxu0 0
      %3137 = vmatpush1.bf16.msra.mxu0 0
      %3138 = vmatprep.subr.bf16.mxu0 0
      %3139 = vmatpush1.bf16.msra.mxu0 0
      %3140 = vmatprep.subr.bf16.mxu0 0
      %3141 = vmatpush1.bf16.msra.mxu0 0
      %3142 = vmatprep.subr.bf16.mxu0 0
      %3143 = vmatpush1.bf16.msra.mxu0 0
      %3144 = vmatprep.subr.bf16.mxu0 0
      %3145 = vmatpush1.bf16.msra.mxu0 0
      %3146 = vmatprep.subr.bf16.mxu0 0
      %3147 = vmatpush1.bf16.msra.mxu0 0
      %3148 = vmatprep.subr.bf16.mxu0 0
      %3149 = vmatpush1.bf16.msra.mxu0 0
      %3150 = vmatprep.subr.bf16.mxu0 0
      %3151 = vmatpush1.bf16.msra.mxu0 0
      %3152 = vmatprep.mubr.bf16.mxu0 0
      %3153 = vmatmul.mubr.bf16.gmra.mrb[0].mxu0 %v3109
      %v3154 = vpop.f32.mrb[0].mxu0
      %v3155 = vadd.f32 0.0, %v3154
      %v3156 = vpop.f32.mrb[0].mxu0
      %v3157 = vpop.f32.mrb[0].mxu0
      %v3158 = vadd.f32 0.0, %v3157
      %v3159 = vpop.f32.mrb[0].mxu0
      %3160 = vmatprep.mubr.bf16.mxu0 0
      %3161 = vmatmul.mubr.bf16.gmra.mrb[0].mxu0 %v3112
      %v3162 = vpop.f32.mrb[0].mxu0
      %v3163 = vadd.f32 0.0, %v3162
      %v3164 = vpop.f32.mrb[0].mxu0
      %v3165 = vpop.f32.mrb[0].mxu0
      %v3166 = vadd.f32 0.0, %v3165
      %v3167 = vpop.f32.mrb[0].mxu0
      %3168 = vmatprep.mubr.bf16.mxu0 0
      %3169 = vmatmul.mubr.bf16.gmra.mrb[0].mxu0 %v3115
      %v3170 = vpop.f32.mrb[0].mxu0
      %v3171 = vadd.f32 0.0, %v3170
      %v3172 = vpop.f32.mrb[0].mxu0
      %v3173 = vpop.f32.mrb[0].mxu0
      %v3174 = vadd.f32 0.0, %v3173
      %v3175 = vpop.f32.mrb[0].mxu0
      %3176 = vmatprep.mubr.bf16.mxu0 0
      %3177 = vmatmul.mubr.bf16.gmra.mrb[0].mxu0 %v3118
      %v3178 = vpop.f32.mrb[0].mxu0
      %v3179 = vadd.f32 0.0, %v3178
      %v3180 = vpop.f32.mrb[0].mxu0
      %v3181 = vpop.f32.mrb[0].mxu0
      %v3182 = vadd.f32 0.0, %v3181
      %v3183 = vpop.f32.mrb[0].mxu0
      %3184 = vdwg.mxu0
      %v3185 = vmax.f32 %v3070, %v3155
      %v3186 = vmax.f32 %v3073, %v3158
      %v3187 = vmax.f32 %v3078, %v3163
      %v3188 = vmax.f32 %v3081, %v3166
      %v3189 = vmax.f32 %v3086, %v3171
      %v3190 = vmax.f32 %v3089, %v3174
      %v3191 = vmax.f32 %v3094, %v3179
      %v3192 = vmax.f32 %v3097, %v3182
      %v3194 = vsel %vm846, %v1827, 0
      %v3197 = vsel %vm846, %v1828, 0
      %v3200 = vsel %vm846, %v1829, 0
      %v3203 = vsel %vm846, %v1830, 0
      %3205 = vmatprep.subr.bf16.mxu0 0
      %3206 = vmatpush1.bf16.msra.mxu0 %v3023
      %3207 = vmatprep.subr.bf16.mxu0 0
      %3208 = vmatpush1.bf16.msra.mxu0 %v3024
      %3209 = vmatprep.subr.bf16.mxu0 0
      %3210 = vmatpush1.bf16.msra.mxu0 0
      %3211 = vmatprep.subr.bf16.mxu0 0
      %3212 = vmatpush1.bf16.msra.mxu0 0
      %3213 = vmatprep.subr.bf16.mxu0 0
      %3214 = vmatpush1.bf16.msra.mxu0 0
      %3215 = vmatprep.subr.bf16.mxu0 0
      %3216 = vmatpush1.bf16.msra.mxu0 0
      %3217 = vmatprep.subr.bf16.mxu0 0
      %3218 = vmatpush1.bf16.msra.mxu0 0
      %3219 = vmatprep.subr.bf16.mxu0 0
      %3220 = vmatpush1.bf16.msra.mxu0 0
      %3221 = vmatprep.subr.bf16.mxu0 0
      %3222 = vmatpush1.bf16.msra.mxu0 0
      %3223 = vmatprep.subr.bf16.mxu0 0
      %3224 = vmatpush1.bf16.msra.mxu0 0
      %3225 = vmatprep.subr.bf16.mxu0 0
      %3226 = vmatpush1.bf16.msra.mxu0 0
      %3227 = vmatprep.subr.bf16.mxu0 0
      %3228 = vmatpush1.bf16.msra.mxu0 0
      %3229 = vmatprep.subr.bf16.mxu0 0
      %3230 = vmatpush1.bf16.msra.mxu0 0
      %3231 = vmatprep.subr.bf16.mxu0 0
      %3232 = vmatpush1.bf16.msra.mxu0 0
      %3233 = vmatprep.subr.bf16.mxu0 0
      %3234 = vmatpush1.bf16.msra.mxu0 0
      %3235 = vmatprep.subr.bf16.mxu0 0
      %3236 = vmatpush1.bf16.msra.mxu0 0
      %3237 = vmatprep.mubr.bf16.mxu0 0
      %3238 = vmatmul.mubr.bf16.gmra.mrb[0].mxu0 %v3194
      %v3239 = vpop.f32.mrb[0].mxu0
      %v3240 = vadd.f32 0.0, %v3239
      %v3241 = vpop.f32.mrb[0].mxu0
      %v3242 = vpop.f32.mrb[0].mxu0
      %v3243 = vadd.f32 0.0, %v3242
      %v3244 = vpop.f32.mrb[0].mxu0
      %3245 = vmatprep.mubr.bf16.mxu0 0
      %3246 = vmatmul.mubr.bf16.gmra.mrb[0].mxu0 %v3197
      %v3247 = vpop.f32.mrb[0].mxu0
      %v3248 = vadd.f32 0.0, %v3247
      %v3249 = vpop.f32.mrb[0].mxu0
      %v3250 = vpop.f32.mrb[0].mxu0
      %v3251 = vadd.f32 0.0, %v3250
      %v3252 = vpop.f32.mrb[0].mxu0
      %3253 = vmatprep.mubr.bf16.mxu0 0
      %3254 = vmatmul.mubr.bf16.gmra.mrb[0].mxu0 %v3200
      %v3255 = vpop.f32.mrb[0].mxu0
      %v3256 = vadd.f32 0.0, %v3255
      %v3257 = vpop.f32.mrb[0].mxu0
      %v3258 = vpop.f32.mrb[0].mxu0
      %v3259 = vadd.f32 0.0, %v3258
      %v3260 = vpop.f32.mrb[0].mxu0
      %3261 = vmatprep.mubr.bf16.mxu0 0
      %3262 = vmatmul.mubr.bf16.gmra.mrb[0].mxu0 %v3203
      %v3263 = vpop.f32.mrb[0].mxu0
      %v3264 = vadd.f32 0.0, %v3263
      %v3265 = vpop.f32.mrb[0].mxu0
      %v3266 = vpop.f32.mrb[0].mxu0
      %v3267 = vadd.f32 0.0, %v3266
      %v3268 = vpop.f32.mrb[0].mxu0
      %3269 = vdwg.mxu0
      %v3270 = vmax.f32 %v3185, %v3240
      %v3271 = vmax.f32 %v3186, %v3243
      %v3272 = vmax.f32 %v3187, %v3248
      %v3273 = vmax.f32 %v3188, %v3251
      %v3274 = vmax.f32 %v3189, %v3256
      %v3275 = vmax.f32 %v3190, %v3259
      %v3276 = vmax.f32 %v3191, %v3264
      %v3277 = vmax.f32 %v3192, %v3267
      %3278 = vrot.lane.b32.xlu0 %v826, 64
      %v3279 = vpop.permute.xlu0 %3278
      %3280 = vrot.lane.b32.xlu0 %v827, 64
      %v3281 = vpop.permute.xlu0 %3280
      %3282 = vrot.lane.b32.xlu0 %v828, 64
      %v3283 = vpop.permute.xlu0 %3282
      %3284 = vrot.lane.b32.xlu0 %v829, 64
      %v3285 = vpop.permute.xlu0 %3284
      %v3287 = vsel %vm846, %v3279, 0
      %v3290 = vsel %vm846, %v3281, 0
      %v3293 = vsel %vm846, %v3283, 0
      %v3296 = vsel %vm846, %v3285, 0
      %3298 = vmatprep.subr.bf16.mxu0 0
      %3299 = vmatpush1.bf16.msra.mxu0 %v3023
      %3300 = vmatprep.subr.bf16.mxu0 0
      %3301 = vmatpush1.bf16.msra.mxu0 %v3024
      %3302 = vmatprep.subr.bf16.mxu0 0
      %3303 = vmatpush1.bf16.msra.mxu0 0
      %3304 = vmatprep.subr.bf16.mxu0 0
      %3305 = vmatpush1.bf16.msra.mxu0 0
      %3306 = vmatprep.subr.bf16.mxu0 0
      %3307 = vmatpush1.bf16.msra.mxu0 0
      %3308 = vmatprep.subr.bf16.mxu0 0
      %3309 = vmatpush1.bf16.msra.mxu0 0
      %3310 = vmatprep.subr.bf16.mxu0 0
      %3311 = vmatpush1.bf16.msra.mxu0 0
      %3312 = vmatprep.subr.bf16.mxu0 0
      %3313 = vmatpush1.bf16.msra.mxu0 0
      %3314 = vmatprep.subr.bf16.mxu0 0
      %3315 = vmatpush1.bf16.msra.mxu0 0
      %3316 = vmatprep.subr.bf16.mxu0 0
      %3317 = vmatpush1.bf16.msra.mxu0 0
      %3318 = vmatprep.subr.bf16.mxu0 0
      %3319 = vmatpush1.bf16.msra.mxu0 0
      %3320 = vmatprep.subr.bf16.mxu0 0
      %3321 = vmatpush1.bf16.msra.mxu0 0
      %3322 = vmatprep.subr.bf16.mxu0 0
      %3323 = vmatpush1.bf16.msra.mxu0 0
      %3324 = vmatprep.subr.bf16.mxu0 0
      %3325 = vmatpush1.bf16.msra.mxu0 0
      %3326 = vmatprep.subr.bf16.mxu0 0
      %3327 = vmatpush1.bf16.msra.mxu0 0
      %3328 = vmatprep.subr.bf16.mxu0 0
      %3329 = vmatpush1.bf16.msra.mxu0 0
      %3330 = vmatprep.mubr.bf16.mxu0 0
      %3331 = vmatmul.mubr.bf16.gmra.mrb[0].mxu0 %v3287
      %v3332 = vpop.f32.mrb[0].mxu0
      %v3333 = vadd.f32 0.0, %v3332
      %v3334 = vpop.f32.mrb[0].mxu0
      %v3335 = vpop.f32.mrb[0].mxu0
      %v3336 = vadd.f32 0.0, %v3335
      %v3337 = vpop.f32.mrb[0].mxu0
      %3338 = vmatprep.mubr.bf16.mxu0 0
      %3339 = vmatmul.mubr.bf16.gmra.mrb[0].mxu0 %v3290
      %v3340 = vpop.f32.mrb[0].mxu0
      %v3341 = vadd.f32 0.0, %v3340
      %v3342 = vpop.f32.mrb[0].mxu0
      %v3343 = vpop.f32.mrb[0].mxu0
      %v3344 = vadd.f32 0.0, %v3343
      %v3345 = vpop.f32.mrb[0].mxu0
      %3346 = vmatprep.mubr.bf16.mxu0 0
      %3347 = vmatmul.mubr.bf16.gmra.mrb[0].mxu0 %v3293
      %v3348 = vpop.f32.mrb[0].mxu0
      %v3349 = vadd.f32 0.0, %v3348
      %v3350 = vpop.f32.mrb[0].mxu0
      %v3351 = vpop.f32.mrb[0].mxu0
      %v3352 = vadd.f32 0.0, %v3351
      %v3353 = vpop.f32.mrb[0].mxu0
      %3354 = vmatprep.mubr.bf16.mxu0 0
      %3355 = vmatmul.mubr.bf16.gmra.mrb[0].mxu0 %v3296
      %v3356 = vpop.f32.mrb[0].mxu0
      %v3357 = vadd.f32 0.0, %v3356
      %v3358 = vpop.f32.mrb[0].mxu0
      %v3359 = vpop.f32.mrb[0].mxu0
      %v3360 = vadd.f32 0.0, %v3359
      %v3361 = vpop.f32.mrb[0].mxu0
      %3362 = vdwg.mxu0
      %v3363 = vmax.f32 %v3270, %v3333
      %v3364 = vmax.f32 %v3271, %v3336
      %v3365 = vmax.f32 %v3272, %v3341
      %v3366 = vmax.f32 %v3273, %v3344
      %v3367 = vmax.f32 %v3274, %v3349
      %v3368 = vmax.f32 %v3275, %v3352
      %v3369 = vmax.f32 %v3276, %v3357
      %v3370 = vmax.f32 %v3277, %v3360
      %3371 = vmatprep.subr.bf16.mxu0 0
      %3372 = vmatpush1.bf16.msra.mxu0 %v3023
      %3373 = vmatprep.subr.bf16.mxu0 0
      %3374 = vmatpush1.bf16.msra.mxu0 %v3024
      %3375 = vmatprep.subr.bf16.mxu0 0
      %3376 = vmatpush1.bf16.msra.mxu0 0
      %3377 = vmatprep.subr.bf16.mxu0 0
      %3378 = vmatpush1.bf16.msra.mxu0 0
      %3379 = vmatprep.subr.bf16.mxu0 0
      %3380 = vmatpush1.bf16.msra.mxu0 0
      %3381 = vmatprep.subr.bf16.mxu0 0
      %3382 = vmatpush1.bf16.msra.mxu0 0
      %3383 = vmatprep.subr.bf16.mxu0 0
      %3384 = vmatpush1.bf16.msra.mxu0 0
      %3385 = vmatprep.subr.bf16.mxu0 0
      %3386 = vmatpush1.bf16.msra.mxu0 0
      %3387 = vmatprep.subr.bf16.mxu0 0
      %3388 = vmatpush1.bf16.msra.mxu0 0
      %3389 = vmatprep.subr.bf16.mxu0 0
      %3390 = vmatpush1.bf16.msra.mxu0 0
      %3391 = vmatprep.subr.bf16.mxu0 0
      %3392 = vmatpush1.bf16.msra.mxu0 0
      %3393 = vmatprep.subr.bf16.mxu0 0
      %3394 = vmatpush1.bf16.msra.mxu0 0
      %3395 = vmatprep.subr.bf16.mxu0 0
      %3396 = vmatpush1.bf16.msra.mxu0 0
      %3397 = vmatprep.subr.bf16.mxu0 0
      %3398 = vmatpush1.bf16.msra.mxu0 0
      %3399 = vmatprep.subr.bf16.mxu0 0
      %3400 = vmatpush1.bf16.msra.mxu0 0
      %3401 = vmatprep.subr.bf16.mxu0 0
      %3402 = vmatpush1.bf16.msra.mxu0 0
      %3403 = vmatprep.mubr.bf16.mxu0 0
      %3404 = vmatmul.mubr.bf16.gmra.mrb[0].mxu0 %v1009
      %v3405 = vpop.f32.mrb[0].mxu0
      %v3406 = vadd.f32 0.0, %v3405
      %v3407 = vpop.f32.mrb[0].mxu0
      %v3408 = vpop.f32.mrb[0].mxu0
      %v3409 = vadd.f32 0.0, %v3408
      %v3410 = vpop.f32.mrb[0].mxu0
      %3411 = vmatprep.mubr.bf16.mxu0 0
      %3412 = vmatmul.mubr.bf16.gmra.mrb[0].mxu0 %v1011
      %v3413 = vpop.f32.mrb[0].mxu0
      %v3414 = vadd.f32 0.0, %v3413
      %v3415 = vpop.f32.mrb[0].mxu0
      %v3416 = vpop.f32.mrb[0].mxu0
      %v3417 = vadd.f32 0.0, %v3416
      %v3418 = vpop.f32.mrb[0].mxu0
      %3419 = vmatprep.mubr.bf16.mxu0 0
      %3420 = vmatmul.mubr.bf16.gmra.mrb[0].mxu0 %v1013
      %v3421 = vpop.f32.mrb[0].mxu0
      %v3422 = vadd.f32 0.0, %v3421
      %v3423 = vpop.f32.mrb[0].mxu0
      %v3424 = vpop.f32.mrb[0].mxu0
      %v3425 = vadd.f32 0.0, %v3424
      %v3426 = vpop.f32.mrb[0].mxu0
      %3427 = vmatprep.mubr.bf16.mxu0 0
      %3428 = vmatmul.mubr.bf16.gmra.mrb[0].mxu0 %v1015
      %v3429 = vpop.f32.mrb[0].mxu0
      %v3430 = vadd.f32 0.0, %v3429
      %v3431 = vpop.f32.mrb[0].mxu0
      %v3432 = vpop.f32.mrb[0].mxu0
      %v3433 = vadd.f32 0.0, %v3432
      %v3434 = vpop.f32.mrb[0].mxu0
      %3435 = vdwg.mxu0
      %v3436 = vmax.f32 %v3363, %v3406
      %v3437 = vmax.f32 %v3364, %v3409
      %v3438 = vmax.f32 %v3365, %v3414
      %v3439 = vmax.f32 %v3366, %v3417
      %v3440 = vmax.f32 %v3367, %v3422
      %v3441 = vmax.f32 %v3368, %v3425
      %v3442 = vmax.f32 %v3369, %v3430
      %v3443 = vmax.f32 %v3370, %v3433
      %3444 = vrot.lane.b32.xlu0 %v1827, 64
      %v3445 = vpop.permute.xlu0 %3444
      %3446 = vrot.lane.b32.xlu0 %v1828, 64
      %v3447 = vpop.permute.xlu0 %3446
      %3448 = vrot.lane.b32.xlu0 %v1829, 64
      %v3449 = vpop.permute.xlu0 %3448
      %3450 = vrot.lane.b32.xlu0 %v1830, 64
      %v3451 = vpop.permute.xlu0 %3450
      %v3453 = vsel %vm846, %v3445, 0
      %v3456 = vsel %vm846, %v3447, 0
      %v3459 = vsel %vm846, %v3449, 0
      %v3462 = vsel %vm846, %v3451, 0
      %3464 = vmatprep.subr.bf16.mxu0 0
      %3465 = vmatpush1.bf16.msra.mxu0 %v3023
      %3466 = vmatprep.subr.bf16.mxu0 0
      %3467 = vmatpush1.bf16.msra.mxu0 %v3024
      %3468 = vmatprep.subr.bf16.mxu0 0
      %3469 = vmatpush1.bf16.msra.mxu0 0
      %3470 = vmatprep.subr.bf16.mxu0 0
      %3471 = vmatpush1.bf16.msra.mxu0 0
      %3472 = vmatprep.subr.bf16.mxu0 0
      %3473 = vmatpush1.bf16.msra.mxu0 0
      %3474 = vmatprep.subr.bf16.mxu0 0
      %3475 = vmatpush1.bf16.msra.mxu0 0
      %3476 = vmatprep.subr.bf16.mxu0 0
      %3477 = vmatpush1.bf16.msra.mxu0 0
      %3478 = vmatprep.subr.bf16.mxu0 0
      %3479 = vmatpush1.bf16.msra.mxu0 0
      %3480 = vmatprep.subr.bf16.mxu0 0
      %3481 = vmatpush1.bf16.msra.mxu0 0
      %3482 = vmatprep.subr.bf16.mxu0 0
      %3483 = vmatpush1.bf16.msra.mxu0 0
      %3484 = vmatprep.subr.bf16.mxu0 0
      %3485 = vmatpush1.bf16.msra.mxu0 0
      %3486 = vmatprep.subr.bf16.mxu0 0
      %3487 = vmatpush1.bf16.msra.mxu0 0
      %3488 = vmatprep.subr.bf16.mxu0 0
      %3489 = vmatpush1.bf16.msra.mxu0 0
      %3490 = vmatprep.subr.bf16.mxu0 0
      %3491 = vmatpush1.bf16.msra.mxu0 0
      %3492 = vmatprep.subr.bf16.mxu0 0
      %3493 = vmatpush1.bf16.msra.mxu0 0
      %3494 = vmatprep.subr.bf16.mxu0 0
      %3495 = vmatpush1.bf16.msra.mxu0 0
      %3496 = vmatprep.mubr.bf16.mxu0 0
      %3497 = vmatmul.mubr.bf16.gmra.mrb[0].mxu0 %v3453
      %v3498 = vpop.f32.mrb[0].mxu0
      %v3499 = vadd.f32 0.0, %v3498
      %v3500 = vpop.f32.mrb[0].mxu0
      %v3501 = vpop.f32.mrb[0].mxu0
      %v3502 = vadd.f32 0.0, %v3501
      %v3503 = vpop.f32.mrb[0].mxu0
      %3504 = vmatprep.mubr.bf16.mxu0 0
      %3505 = vmatmul.mubr.bf16.gmra.mrb[0].mxu0 %v3456
      %v3506 = vpop.f32.mrb[0].mxu0
      %v3507 = vadd.f32 0.0, %v3506
      %v3508 = vpop.f32.mrb[0].mxu0
      %v3509 = vpop.f32.mrb[0].mxu0
      %v3510 = vadd.f32 0.0, %v3509
      %v3511 = vpop.f32.mrb[0].mxu0
      %3512 = vmatprep.mubr.bf16.mxu0 0
      %3513 = vmatmul.mubr.bf16.gmra.mrb[0].mxu0 %v3459
      %v3514 = vpop.f32.mrb[0].mxu0
      %v3515 = vadd.f32 0.0, %v3514
      %v3516 = vpop.f32.mrb[0].mxu0
      %v3517 = vpop.f32.mrb[0].mxu0
      %v3518 = vadd.f32 0.0, %v3517
      %v3519 = vpop.f32.mrb[0].mxu0
      %3520 = vmatprep.mubr.bf16.mxu0 0
      %3521 = vmatmul.mubr.bf16.gmra.mrb[0].mxu0 %v3462
      %v3522 = vpop.f32.mrb[0].mxu0
      %v3523 = vadd.f32 0.0, %v3522
      %v3524 = vpop.f32.mrb[0].mxu0
      %v3525 = vpop.f32.mrb[0].mxu0
      %v3526 = vadd.f32 0.0, %v3525
      %v3527 = vpop.f32.mrb[0].mxu0
      %3528 = vdwg.mxu0
      %v3529 = vmax.f32 %v3436, %v3499
      %v3530 = vmax.f32 %v3437, %v3502
      %v3531 = vmax.f32 %v3438, %v3507
      %v3532 = vmax.f32 %v3439, %v3510
      %v3533 = vmax.f32 %v3440, %v3515
      %v3534 = vmax.f32 %v3441, %v3518
      %v3535 = vmax.f32 %v3442, %v3523
      %v3536 = vmax.f32 %v3443, %v3526
      %v3538 = vsel %vm846, %v1867, 0
      %v3541 = vsel %vm846, %v1868, 0
      %v3544 = vsel %vm846, %v1869, 0
      %v3547 = vsel %vm846, %v1870, 0
      %3549 = vmatprep.subr.bf16.mxu0 0
      %3550 = vmatpush1.bf16.msra.mxu0 %v3023
      %3551 = vmatprep.subr.bf16.mxu0 0
      %3552 = vmatpush1.bf16.msra.mxu0 %v3024
      %3553 = vmatprep.subr.bf16.mxu0 0
      %3554 = vmatpush1.bf16.msra.mxu0 0
      %3555 = vmatprep.subr.bf16.mxu0 0
      %3556 = vmatpush1.bf16.msra.mxu0 0
      %3557 = vmatprep.subr.bf16.mxu0 0
      %3558 = vmatpush1.bf16.msra.mxu0 0
      %3559 = vmatprep.subr.bf16.mxu0 0
      %3560 = vmatpush1.bf16.msra.mxu0 0
      %3561 = vmatprep.subr.bf16.mxu0 0
      %3562 = vmatpush1.bf16.msra.mxu0 0
      %3563 = vmatprep.subr.bf16.mxu0 0
      %3564 = vmatpush1.bf16.msra.mxu0 0
      %3565 = vmatprep.subr.bf16.mxu0 0
      %3566 = vmatpush1.bf16.msra.mxu0 0
      %3567 = vmatprep.subr.bf16.mxu0 0
      %3568 = vmatpush1.bf16.msra.mxu0 0
      %3569 = vmatprep.subr.bf16.mxu0 0
      %3570 = vmatpush1.bf16.msra.mxu0 0
      %3571 = vmatprep.subr.bf16.mxu0 0
      %3572 = vmatpush1.bf16.msra.mxu0 0
      %3573 = vmatprep.subr.bf16.mxu0 0
      %3574 = vmatpush1.bf16.msra.mxu0 0
      %3575 = vmatprep.subr.bf16.mxu0 0
      %3576 = vmatpush1.bf16.msra.mxu0 0
      %3577 = vmatprep.subr.bf16.mxu0 0
      %3578 = vmatpush1.bf16.msra.mxu0 0
      %3579 = vmatprep.subr.bf16.mxu0 0
      %3580 = vmatpush1.bf16.msra.mxu0 0
      %3581 = vmatprep.mubr.bf16.mxu0 0
      %3582 = vmatmul.mubr.bf16.gmra.mrb[0].mxu0 %v3538
      %v3583 = vpop.f32.mrb[0].mxu0
      %v3584 = vadd.f32 0.0, %v3583
      %v3585 = vpop.f32.mrb[0].mxu0
      %v3586 = vpop.f32.mrb[0].mxu0
      %v3587 = vadd.f32 0.0, %v3586
      %v3588 = vpop.f32.mrb[0].mxu0
      %3589 = vmatprep.mubr.bf16.mxu0 0
      %3590 = vmatmul.mubr.bf16.gmra.mrb[0].mxu0 %v3541
      %v3591 = vpop.f32.mrb[0].mxu0
      %v3592 = vadd.f32 0.0, %v3591
      %v3593 = vpop.f32.mrb[0].mxu0
      %v3594 = vpop.f32.mrb[0].mxu0
      %v3595 = vadd.f32 0.0, %v3594
      %v3596 = vpop.f32.mrb[0].mxu0
      %3597 = vmatprep.mubr.bf16.mxu0 0
      %3598 = vmatmul.mubr.bf16.gmra.mrb[0].mxu0 %v3544
      %v3599 = vpop.f32.mrb[0].mxu0
      %v3600 = vadd.f32 0.0, %v3599
      %v3601 = vpop.f32.mrb[0].mxu0
      %v3602 = vpop.f32.mrb[0].mxu0
      %v3603 = vadd.f32 0.0, %v3602
      %v3604 = vpop.f32.mrb[0].mxu0
      %3605 = vmatprep.mubr.bf16.mxu0 0
      %3606 = vmatmul.mubr.bf16.gmra.mrb[0].mxu0 %v3547
      %v3607 = vpop.f32.mrb[0].mxu0
      %v3608 = vadd.f32 0.0, %v3607
      %v3609 = vpop.f32.mrb[0].mxu0
      %v3610 = vpop.f32.mrb[0].mxu0
      %v3611 = vadd.f32 0.0, %v3610
      %v3612 = vpop.f32.mrb[0].mxu0
      %3613 = vdwg.mxu0
      %v3614 = vmax.f32 %v3529, %v3584
      %v3615 = vmax.f32 %v3530, %v3587
      %v3616 = vmax.f32 %v3531, %v3592
      %v3617 = vmax.f32 %v3532, %v3595
      %v3618 = vmax.f32 %v3533, %v3600
      %v3619 = vmax.f32 %v3534, %v3603
      %v3620 = vmax.f32 %v3535, %v3608
      %v3621 = vmax.f32 %v3536, %v3611
      %v3622 = vsel %vm846, %v1872, 0
      %v3624 = vsel %vm846, %v1874, 0
      %v3626 = vsel %vm846, %v1876, 0
      %v3628 = vsel %vm846, %v1878, 0
      %3630 = vmatprep.subr.bf16.mxu0 0
      %3631 = vmatpush1.bf16.msra.mxu0 %v3023
      %3632 = vmatprep.subr.bf16.mxu0 0
      %3633 = vmatpush1.bf16.msra.mxu0 %v3024
      %3634 = vmatprep.subr.bf16.mxu0 0
      %3635 = vmatpush1.bf16.msra.mxu0 0
      %3636 = vmatprep.subr.bf16.mxu0 0
      %3637 = vmatpush1.bf16.msra.mxu0 0
      %3638 = vmatprep.subr.bf16.mxu0 0
      %3639 = vmatpush1.bf16.msra.mxu0 0
      %3640 = vmatprep.subr.bf16.mxu0 0
      %3641 = vmatpush1.bf16.msra.mxu0 0
      %3642 = vmatprep.subr.bf16.mxu0 0
      %3643 = vmatpush1.bf16.msra.mxu0 0
      %3644 = vmatprep.subr.bf16.mxu0 0
      %3645 = vmatpush1.bf16.msra.mxu0 0
      %3646 = vmatprep.subr.bf16.mxu0 0
      %3647 = vmatpush1.bf16.msra.mxu0 0
      %3648 = vmatprep.subr.bf16.mxu0 0
      %3649 = vmatpush1.bf16.msra.mxu0 0
      %3650 = vmatprep.subr.bf16.mxu0 0
      %3651 = vmatpush1.bf16.msra.mxu0 0
      %3652 = vmatprep.subr.bf16.mxu0 0
      %3653 = vmatpush1.bf16.msra.mxu0 0
      %3654 = vmatprep.subr.bf16.mxu0 0
      %3655 = vmatpush1.bf16.msra.mxu0 0
      %3656 = vmatprep.subr.bf16.mxu0 0
      %3657 = vmatpush1.bf16.msra.mxu0 0
      %3658 = vmatprep.subr.bf16.mxu0 0
      %3659 = vmatpush1.bf16.msra.mxu0 0
      %3660 = vmatprep.subr.bf16.mxu0 0
      %3661 = vmatpush1.bf16.msra.mxu0 0
      %3662 = vmatprep.mubr.bf16.mxu0 0
      %3663 = vmatmul.mubr.bf16.gmra.mrb[0].mxu0 %v3622
      %v3664 = vpop.f32.mrb[0].mxu0
      %v3665 = vadd.f32 0.0, %v3664
      %v3666 = vpop.f32.mrb[0].mxu0
      %v3667 = vpop.f32.mrb[0].mxu0
      %v3668 = vadd.f32 0.0, %v3667
      %v3669 = vpop.f32.mrb[0].mxu0
      %3670 = vmatprep.mubr.bf16.mxu0 0
      %3671 = vmatmul.mubr.bf16.gmra.mrb[0].mxu0 %v3624
      %v3672 = vpop.f32.mrb[0].mxu0
      %v3673 = vadd.f32 0.0, %v3672
      %v3674 = vpop.f32.mrb[0].mxu0
      %v3675 = vpop.f32.mrb[0].mxu0
      %v3676 = vadd.f32 0.0, %v3675
      %v3677 = vpop.f32.mrb[0].mxu0
      %3678 = vmatprep.mubr.bf16.mxu0 0
      %3679 = vmatmul.mubr.bf16.gmra.mrb[0].mxu0 %v3626
      %v3680 = vpop.f32.mrb[0].mxu0
      %v3681 = vadd.f32 0.0, %v3680
      %v3682 = vpop.f32.mrb[0].mxu0
      %v3683 = vpop.f32.mrb[0].mxu0
      %v3684 = vadd.f32 0.0, %v3683
      %v3685 = vpop.f32.mrb[0].mxu0
      %3686 = vmatprep.mubr.bf16.mxu0 0
      %3687 = vmatmul.mubr.bf16.gmra.mrb[0].mxu0 %v3628
      %v3688 = vpop.f32.mrb[0].mxu0
      %v3689 = vadd.f32 0.0, %v3688
      %v3690 = vpop.f32.mrb[0].mxu0
      %v3691 = vpop.f32.mrb[0].mxu0
      %v3692 = vadd.f32 0.0, %v3691
      %v3693 = vpop.f32.mrb[0].mxu0
      %3694 = vdwg.mxu0
      %v3695 = vmax.f32 %v3614, %v3665
      %v3696 = vmax.f32 %v3615, %v3668
      %v3697 = vmax.f32 %v3616, %v3673
      %v3698 = vmax.f32 %v3617, %v3676
      %v3699 = vmax.f32 %v3618, %v3681
      %v3700 = vmax.f32 %v3619, %v3684
      %v3701 = vmax.f32 %v3620, %v3689
      %v3702 = vmax.f32 %v3621, %v3692
      %3703 = vmatprep.subr.bf16.mxu0 0
      %3704 = vmatpush1.bf16.msra.mxu0 %v3023
      %3705 = vmatprep.subr.bf16.mxu0 0
      %3706 = vmatpush1.bf16.msra.mxu0 %v3024
      %3707 = vmatprep.subr.bf16.mxu0 0
      %3708 = vmatpush1.bf16.msra.mxu0 0
      %3709 = vmatprep.subr.bf16.mxu0 0
      %3710 = vmatpush1.bf16.msra.mxu0 0
      %3711 = vmatprep.subr.bf16.mxu0 0
      %3712 = vmatpush1.bf16.msra.mxu0 0
      %3713 = vmatprep.subr.bf16.mxu0 0
      %3714 = vmatpush1.bf16.msra.mxu0 0
      %3715 = vmatprep.subr.bf16.mxu0 0
      %3716 = vmatpush1.bf16.msra.mxu0 0
      %3717 = vmatprep.subr.bf16.mxu0 0
      %3718 = vmatpush1.bf16.msra.mxu0 0
      %3719 = vmatprep.subr.bf16.mxu0 0
      %3720 = vmatpush1.bf16.msra.mxu0 0
      %3721 = vmatprep.subr.bf16.mxu0 0
      %3722 = vmatpush1.bf16.msra.mxu0 0
      %3723 = vmatprep.subr.bf16.mxu0 0
      %3724 = vmatpush1.bf16.msra.mxu0 0
      %3725 = vmatprep.subr.bf16.mxu0 0
      %3726 = vmatpush1.bf16.msra.mxu0 0
      %3727 = vmatprep.subr.bf16.mxu0 0
      %3728 = vmatpush1.bf16.msra.mxu0 0
      %3729 = vmatprep.subr.bf16.mxu0 0
      %3730 = vmatpush1.bf16.msra.mxu0 0
      %3731 = vmatprep.subr.bf16.mxu0 0
      %3732 = vmatpush1.bf16.msra.mxu0 0
      %3733 = vmatprep.subr.bf16.mxu0 0
      %3734 = vmatpush1.bf16.msra.mxu0 0
      %3735 = vmatprep.mubr.bf16.mxu0 0
      %3736 = vmatmul.mubr.bf16.gmra.mrb[0].mxu0 %v2056
      %v3737 = vpop.f32.mrb[0].mxu0
      %v3738 = vadd.f32 0.0, %v3737
      %v3739 = vpop.f32.mrb[0].mxu0
      %v3740 = vpop.f32.mrb[0].mxu0
      %v3741 = vadd.f32 0.0, %v3740
      %v3742 = vpop.f32.mrb[0].mxu0
      %3743 = vmatprep.mubr.bf16.mxu0 0
      %3744 = vmatmul.mubr.bf16.gmra.mrb[0].mxu0 %v2059
      %v3745 = vpop.f32.mrb[0].mxu0
      %v3746 = vadd.f32 0.0, %v3745
      %v3747 = vpop.f32.mrb[0].mxu0
      %v3748 = vpop.f32.mrb[0].mxu0
      %v3749 = vadd.f32 0.0, %v3748
      %v3750 = vpop.f32.mrb[0].mxu0
      %3751 = vmatprep.mubr.bf16.mxu0 0
      %3752 = vmatmul.mubr.bf16.gmra.mrb[0].mxu0 %v2062
      %v3753 = vpop.f32.mrb[0].mxu0
      %v3754 = vadd.f32 0.0, %v3753
      %v3755 = vpop.f32.mrb[0].mxu0
      %v3756 = vpop.f32.mrb[0].mxu0
      %v3757 = vadd.f32 0.0, %v3756
      %v3758 = vpop.f32.mrb[0].mxu0
      %3759 = vmatprep.mubr.bf16.mxu0 0
      %3760 = vmatmul.mubr.bf16.gmra.mrb[0].mxu0 %v2065
      %v3761 = vpop.f32.mrb[0].mxu0
      %v3762 = vadd.f32 0.0, %v3761
      %v3763 = vpop.f32.mrb[0].mxu0
      %v3764 = vpop.f32.mrb[0].mxu0
      %v3765 = vadd.f32 0.0, %v3764
      %v3766 = vpop.f32.mrb[0].mxu0
      %3767 = vdwg.mxu0
      %v3768 = vmax.f32 %v3695, %v3738
      %v3769 = vmax.f32 %v3696, %v3741
      %v3770 = vmax.f32 %v3697, %v3746
      %v3771 = vmax.f32 %v3698, %v3749
      %v3772 = vmax.f32 %v3699, %v3754
      %v3773 = vmax.f32 %v3700, %v3757
      %v3774 = vmax.f32 %v3701, %v3762
      %v3775 = vmax.f32 %v3702, %v3765
      %v3776 = vadd.f32 %v1117, %v2167
      %v3777 = vadd.f32 %v1120, %v2170
      %v3778 = vadd.f32 %v1125, %v2175
      %v3779 = vadd.f32 %v1128, %v2178
      %v3780 = vadd.f32 %v1133, %v2183
      %v3781 = vadd.f32 %v1136, %v2186
      %v3782 = vadd.f32 %v1141, %v2191
      %v3783 = vadd.f32 %v1144, %v2194
      %v3784 = vadd.f32 %v3776, %v2985
      %v3785 = vadd.f32 %v3777, %v2988
      %v3786 = vadd.f32 %v3778, %v2993
      %v3787 = vadd.f32 %v3779, %v2996
      %v3788 = vadd.f32 %v3780, %v3001
      %v3789 = vadd.f32 %v3781, %v3004
      %v3790 = vadd.f32 %v3782, %v3009
      %v3791 = vadd.f32 %v3783, %v3012
      %v3792 = vld [vmem:[#allocation3] sm:$0xf]
      %vm3793 = vcmask 64512
      %v3794 = vsel %vm3793, %v3768, 0.0
      %v3795 = vsel %vm3793, %v3769, 0.0
      %v3796 = vadd.f32 %v3794, %v3795
      %v3797 = vsel %vm3793, %v3770, 0.0
      %v3798 = vadd.f32 %v3796, %v3797
      %v3799 = vsel %vm3793, %v3771, 0.0
      %v3800 = vadd.f32 %v3798, %v3799
      %v3801 = vsel %vm3793, %v3772, 0.0
      %v3802 = vadd.f32 %v3800, %v3801
      %v3803 = vsel %vm3793, %v3773, 0.0
      %v3804 = vadd.f32 %v3802, %v3803
      %v3805 = vsel %vm3793, %v3774, 0.0
      %v3806 = vadd.f32 %v3804, %v3805
      %v3807 = vsel %vm3793, %v3775, 0.0
      %v3808 = vadd.f32 %v3806, %v3807
      %v3809 = vrot.slane %v3808, 4
      %v3810 = vadd.f32 %v3808, %v3809
      %v3811 = vrot.slane %v3810, 2
      %v3812 = vadd.f32 %v3810, %v3811
      %v3813 = vrot.slane %v3812, 1
      %v3814 = vadd.f32 %v3812, %v3813
      %v3815 = vsel %vm3793, %v1117, 0.0
      %v3816 = vsel %vm3793, %v1120, 0.0
      %v3817 = vadd.f32 %v3815, %v3816
      %v3818 = vsel %vm3793, %v1125, 0.0
      %v3819 = vadd.f32 %v3817, %v3818
      %v3820 = vsel %vm3793, %v1128, 0.0
      %v3821 = vadd.f32 %v3819, %v3820
      %v3822 = vsel %vm3793, %v1133, 0.0
      %v3823 = vadd.f32 %v3821, %v3822
      %v3824 = vsel %vm3793, %v1136, 0.0
      %v3825 = vadd.f32 %v3823, %v3824
      %v3826 = vsel %vm3793, %v1141, 0.0
      %v3827 = vadd.f32 %v3825, %v3826
      %v3828 = vsel %vm3793, %v1144, 0.0
      %v3829 = vadd.f32 %v3827, %v3828
      %v3830 = vrot.slane %v3829, 4
      %v3831 = vadd.f32 %v3829, %v3830
      %v3832 = vrot.slane %v3831, 2
      %v3833 = vadd.f32 %v3831, %v3832
      %v3834 = vrot.slane %v3833, 1
      %v3835 = vadd.f32 %v3833, %v3834
      %v3836 = vsel %vm3793, %v2167, 0.0
      %v3837 = vsel %vm3793, %v2170, 0.0
      %v3838 = vadd.f32 %v3836, %v3837
      %v3839 = vsel %vm3793, %v2175, 0.0
      %v3840 = vadd.f32 %v3838, %v3839
      %v3841 = vsel %vm3793, %v2178, 0.0
      %v3842 = vadd.f32 %v3840, %v3841
      %v3843 = vsel %vm3793, %v2183, 0.0
      %v3844 = vadd.f32 %v3842, %v3843
      %v3845 = vsel %vm3793, %v2186, 0.0
      %v3846 = vadd.f32 %v3844, %v3845
      %v3847 = vsel %vm3793, %v2191, 0.0
      %v3848 = vadd.f32 %v3846, %v3847
      %v3849 = vsel %vm3793, %v2194, 0.0
      %v3850 = vadd.f32 %v3848, %v3849
      %v3851 = vrot.slane %v3850, 4
      %v3852 = vadd.f32 %v3850, %v3851
      %v3853 = vrot.slane %v3852, 2
      %v3854 = vadd.f32 %v3852, %v3853
      %v3855 = vrot.slane %v3854, 1
      %v3856 = vadd.f32 %v3854, %v3855
      %v3857 = vsel %vm3793, %v2985, 0.0
      %v3858 = vsel %vm3793, %v2988, 0.0
      %v3859 = vadd.f32 %v3857, %v3858
      %v3860 = vsel %vm3793, %v2993, 0.0
      %v3861 = vadd.f32 %v3859, %v3860
      %v3862 = vsel %vm3793, %v2996, 0.0
      %v3863 = vadd.f32 %v3861, %v3862
      %v3864 = vsel %vm3793, %v3001, 0.0
      %v3865 = vadd.f32 %v3863, %v3864
      %v3866 = vsel %vm3793, %v3004, 0.0
      %v3867 = vadd.f32 %v3865, %v3866
      %v3868 = vsel %vm3793, %v3009, 0.0
      %v3869 = vadd.f32 %v3867, %v3868
      %v3870 = vsel %vm3793, %v3012, 0.0
      %v3871 = vadd.f32 %v3869, %v3870
      %v3872 = vrot.slane %v3871, 4
      %v3873 = vadd.f32 %v3871, %v3872
      %v3874 = vrot.slane %v3873, 2
      %v3875 = vadd.f32 %v3873, %v3874
      %v3876 = vrot.slane %v3875, 1
      %v3877 = vadd.f32 %v3875, %v3876
      %vm3878 = vcmask 1040384
      %v3879 = vsel %vm3878, %v3814, %v3835
      %vm3880 = vcmask 1041408
      %v3881 = vsel %vm3880, %v3879, %v3856
      %vm3882 = vcmask 1042432
      %v3883 = vsel %vm3882, %v3881, %v3877
      %v3884 = vadd.f32 %v3792, %v3883
      %3885 = vst.msk [vmem:[#allocation3] sm:$0xf] %vm264, %v3884
      %v3886 = vpack.c.bf16 %v3769, %v3768
      %v3887 = vpack.c.bf16 %v3771, %v3770
      %v3888 = vpack.c.bf16 %v3773, %v3772
      %v3889 = vpack.c.bf16 %v3775, %v3774
      %3890 = vst.msk [vmem:[#allocation2] sm:$0xff] %vm3793, %v3886
      %3891 = vst.msk [vmem:[#allocation2 + $0x8] sm:$0xff] %vm3793, %v3887
      %3892 = vst.msk [vmem:[#allocation2 + $0x10] sm:$0xff] %vm3793, %v3888
      %3893 = vst.msk [vmem:[#allocation2 + $0x18] sm:$0xff] %vm3793, %v3889
      %v3894 = vpack.c.bf16 %v1120, %v1117
      %v3895 = vpack.c.bf16 %v1128, %v1125
      %v3896 = vpack.c.bf16 %v1136, %v1133
      %v3897 = vpack.c.bf16 %v1144, %v1141
      %s3898 = scalar_lea.vmem [#allocation2], 32
      %3899 = vst.msk [vmem:[%s3898] sm:$0xff] %vm3793, %v3894
      %3900 = vst.msk [vmem:[%s3898 + $0x8] sm:$0xff] %vm3793, %v3895
      %3901 = vst.msk [vmem:[%s3898 + $0x10] sm:$0xff] %vm3793, %v3896
      %3902 = vst.msk [vmem:[%s3898 + $0x18] sm:$0xff] %vm3793, %v3897
      %v3903 = vpack.c.bf16 %v3777, %v3776
      %v3904 = vpack.c.bf16 %v3779, %v3778
      %v3905 = vpack.c.bf16 %v3781, %v3780
      %v3906 = vpack.c.bf16 %v3783, %v3782
      %s3907 = scalar_lea.vmem [#allocation2], 64
      %3908 = vst.msk [vmem:[%s3907] sm:$0xff] %vm3793, %v3903
      %3909 = vst.msk [vmem:[%s3907 + $0x8] sm:$0xff] %vm3793, %v3904
      %3910 = vst.msk [vmem:[%s3907 + $0x10] sm:$0xff] %vm3793, %v3905
      %3911 = vst.msk [vmem:[%s3907 + $0x18] sm:$0xff] %vm3793, %v3906
      %v3912 = vpack.c.bf16 %v3785, %v3784
      %v3913 = vpack.c.bf16 %v3787, %v3786
      %v3914 = vpack.c.bf16 %v3789, %v3788
      %v3915 = vpack.c.bf16 %v3791, %v3790
      %s3916 = scalar_lea.vmem [#allocation2], 96
      %3917 = vst.msk [vmem:[%s3916] sm:$0xff] %vm3793, %v3912
      %3918 = vst.msk [vmem:[%s3916 + $0x8] sm:$0xff] %vm3793, %v3913
      %3919 = vst.msk [vmem:[%s3916 + $0x10] sm:$0xff] %vm3793, %v3914
      %3920 = vst.msk [vmem:[%s3916 + $0x18] sm:$0xff] %vm3793, %v3915
      %v3921 = vld [vmem:[#allocation3] sm:$0xf]
      %v3922 = vmul.f32 %v3921, 0.015625
      %v3923 = vld [vmem:[%s3] sm:$0xff]
      %v3925 = vsel %vm3793, %v3922, 0
      %3927 = vmatprep.subr.mxu0 0.0
      %3928 = vmatpush1.msra.mxu0 %v3923
      %3929 = vmatprep.subr.mxu0 0.0
      %3930 = vmatpush1.msra.mxu0 0.0
      %3931 = vmatprep.subr.mxu0 0.0
      %3932 = vmatpush1.msra.mxu0 0.0
      %3933 = vmatprep.subr.mxu0 0.0
      %3934 = vmatpush1.msra.mxu0 0.0
      %3935 = vmatprep.subr.mxu0 0.0
      %3936 = vmatpush1.msra.mxu0 0.0
      %3937 = vmatprep.subr.mxu0 0.0
      %3938 = vmatpush1.msra.mxu0 0.0
      %3939 = vmatprep.subr.mxu0 0.0
      %3940 = vmatpush1.msra.mxu0 0.0
      %3941 = vmatprep.subr.mxu0 0.0
      %3942 = vmatpush1.msra.mxu0 0.0
      %3943 = vmatprep.subr.mxu0 0.0
      %3944 = vmatpush1.msra.mxu0 0.0
      %3945 = vmatprep.subr.mxu0 0.0
      %3946 = vmatpush1.msra.mxu0 0.0
      %3947 = vmatprep.subr.mxu0 0.0
      %3948 = vmatpush1.msra.mxu0 0.0
      %3949 = vmatprep.subr.mxu0 0.0
      %3950 = vmatpush1.msra.mxu0 0.0
      %3951 = vmatprep.subr.mxu0 0.0
      %3952 = vmatpush1.msra.mxu0 0.0
      %3953 = vmatprep.subr.mxu0 0.0
      %3954 = vmatpush1.msra.mxu0 0.0
      %3955 = vmatprep.subr.mxu0 0.0
      %3956 = vmatpush1.msra.mxu0 0.0
      %3957 = vmatprep.subr.mxu0 0.0
      %3958 = vmatpush1.msra.mxu0 0.0
      %3959 = vmatprep.subr.mxu0 0.0
      %3960 = vmatpush1.msra.mxu0 0.0
      %3961 = vmatprep.subr.mxu0 0.0
      %3962 = vmatpush1.msra.mxu0 0.0
      %3963 = vmatprep.subr.mxu0 0.0
      %3964 = vmatpush1.msra.mxu0 0.0
      %3965 = vmatprep.subr.mxu0 0.0
      %3966 = vmatpush1.msra.mxu0 0.0
      %3967 = vmatprep.subr.mxu0 0.0
      %3968 = vmatpush1.msra.mxu0 0.0
      %3969 = vmatprep.subr.mxu0 0.0
      %3970 = vmatpush1.msra.mxu0 0.0
      %3971 = vmatprep.subr.mxu0 0.0
      %3972 = vmatpush1.msra.mxu0 0.0
      %3973 = vmatprep.subr.mxu0 0.0
      %3974 = vmatpush1.msra.mxu0 0.0
      %3975 = vmatprep.subr.mxu0 0.0
      %3976 = vmatpush1.msra.mxu0 0.0
      %3977 = vmatprep.subr.mxu0 0.0
      %3978 = vmatpush1.msra.mxu0 0.0
      %3979 = vmatprep.subr.mxu0 0.0
      %3980 = vmatpush1.msra.mxu0 0.0
      %3981 = vmatprep.subr.mxu0 0.0
      %3982 = vmatpush1.msra.mxu0 0.0
      %3983 = vmatprep.subr.mxu0 0.0
      %3984 = vmatpush1.msra.mxu0 0.0
      %3985 = vmatprep.subr.mxu0 0.0
      %3986 = vmatpush1.msra.mxu0 0.0
      %3987 = vmatprep.subr.mxu0 0.0
      %3988 = vmatpush1.msra.mxu0 0.0
      %3989 = vmatprep.subr.mxu0 0.0
      %3990 = vmatpush1.msra.mxu0 0.0
      %3991 = vmatprep.mubr.f32.mxu0 0.0
      %3992 = vmatmul.mubr.f32.gmra.mrb[0].mxu0 %v3925
      %v3993 = vpop.f32.mrb[0].mxu0
      %v3994 = vadd.f32 0.0, %v3993
      %v3995 = vpop.f32.mrb[0].mxu0
      %3996 = vdwg.mxu0
      %v3997 = vxor.u32 %v3994, 2147483648
      %v3998 = vmul.f32 %v3997, 1.442695
      %v3999 = vpow.pop %v3998
      %v4000 = vadd.f32 %v3999, 1.0
      %v4001 = vrcp.pop %v4000
      %v4002 = vmul.f32 1.0, %v4001
      %v4003 = vsel %vm264, %v4002, -inf
      %v4004 = vrot.slane %v4003, 4
      %v4005 = vmax.f32 %v4003, %v4004
      %v4006 = vrot.slane %v4005, 2
      %v4007 = vmax.f32 %v4005, %v4006
      %v4008 = vrot.slane %v4007, 1
      %v4009 = vmax.f32 %v4007, %v4008
      %v4010 = vsub.f32 %v4002, %v4009
      %v4011 = vmul.f32 %v4010, 1.442695
      %v4012 = vpow.pop %v4011
      %v4013 = vsel %vm264, %v4012, 0.0
      %v4014 = vrot.slane %v4013, 4
      %v4015 = vadd.f32 %v4013, %v4014
      %v4016 = vrot.slane %v4015, 2
      %v4017 = vadd.f32 %v4015, %v4016
      %v4018 = vrot.slane %v4017, 1
      %v4019 = vadd.f32 %v4017, %v4018
      %v4020 = vrcp.pop %v4019
      %v4021 = vmul.f32 %v4012, %v4020
      %4022 = vxpose.xlu0.b32.start [1/16] %v4021, 128
      %4023 = vxpose.xlu0.b32.cont [2/16] 0.0, 128
      %4024 = vxpose.xlu0.b32.cont [3/16] 0.0, 128
      %4025 = vxpose.xlu0.b32.cont [4/16] 0.0, 128
      %4026 = vxpose.xlu0.b32.cont [5/16] 0.0, 128
      %4027 = vxpose.xlu0.b32.cont [6/16] 0.0, 128
      %4028 = vxpose.xlu0.b32.cont [7/16] 0.0, 128
      %4029 = vxpose.xlu0.b32.cont [8/16] 0.0, 128
      %4030 = vxpose.xlu0.b32.cont [9/16] 0.0, 128
      %4031 = vxpose.xlu0.b32.cont [10/16] 0.0, 128
      %4032 = vxpose.xlu0.b32.cont [11/16] 0.0, 128
      %4033 = vxpose.xlu0.b32.cont [12/16] 0.0, 128
      %4034 = vxpose.xlu0.b32.cont [13/16] 0.0, 128
      %4035 = vxpose.xlu0.b32.cont [14/16] 0.0, 128
      %4036 = vxpose.xlu0.b32.cont [15/16] 0.0, 128
      %4037 = vxpose.xlu0.b32.end [16/16] 0.0, 128
      %v4038 = vpop.trf.xlu0
      %v4039 = vpop.trf.xlu0
      %v4040 = vpop.trf.xlu0
      %v4041 = vpop.trf.xlu0
      %v4042 = vpop.trf.xlu0
      %v4043 = vpop.trf.xlu0
      %v4044 = vpop.trf.xlu0
      %v4045 = vpop.trf.xlu0
      %v4046 = vpop.trf.xlu0
      %v4047 = vpop.trf.xlu0
      %v4048 = vpop.trf.xlu0
      %v4049 = vpop.trf.xlu0
      %v4050 = vpop.trf.xlu0
      %v4051 = vpop.trf.xlu0
      %v4052 = vpop.trf.xlu0
      %v4053 = vpop.trf.xlu0
      %v4054 = vld [vmem:[%s4] sm:$0xf]
      %v4055 = vunpack.c.l.bf16 %v4054
      %4057 = vset.pattern.permute.xlu0 0
      %4058 = vperm.xlu0 %4057, %v4038
      %v4059 = vpop.permute.xlu0 %4058
      %v4061 = vmul.f32 %v4055, %v4059
      %v4062 = vpack.c.bf16 %v4061, %v4061
      %s4063 = scalar_lea.vmem %s4, 4
      %v4064 = vld [vmem:[%s4063] sm:$0xf]
      %v4065 = vunpack.c.l.bf16 %v4064
      %4066 = vset.pattern.permute.xlu0 1
      %4067 = vperm.xlu0 %4066, %v4038
      %v4068 = vpop.permute.xlu0 %4067
      %v4070 = vmul.f32 %v4065, %v4068
      %v4071 = vpack.c.bf16 %v4070, %v4070
      %s4072 = scalar_lea.vmem %s4, 8
      %v4073 = vld [vmem:[%s4072] sm:$0xf]
      %v4074 = vunpack.c.l.bf16 %v4073
      %4075 = vset.pattern.permute.xlu0 2
      %4076 = vperm.xlu0 %4075, %v4038
      %v4077 = vpop.permute.xlu0 %4076
      %v4079 = vmul.f32 %v4074, %v4077
      %v4080 = vpack.c.bf16 %v4079, %v4079
      %s4081 = scalar_lea.vmem %s4, 12
      %v4082 = vld [vmem:[%s4081] sm:$0xf]
      %v4083 = vunpack.c.l.bf16 %v4082
      %4084 = vset.pattern.permute.xlu0 3
      %4085 = vperm.xlu0 %4084, %v4038
      %v4086 = vpop.permute.xlu0 %4085
      %v4088 = vmul.f32 %v4083, %v4086
      %v4089 = vpack.c.bf16 %v4088, %v4088
      %v4090 = vld [vmem:[#allocation2] sm:$0xff]
      %v4091 = vld [vmem:[#allocation2 + $0x8] sm:$0xff]
      %v4092 = vld [vmem:[#allocation2 + $0x10] sm:$0xff]
      %v4093 = vld [vmem:[#allocation2 + $0x18] sm:$0xff]
      %v4094 = vld [vmem:[%s3898] sm:$0xff]
      %v4095 = vld [vmem:[%s3898 + $0x8] sm:$0xff]
      %v4096 = vld [vmem:[%s3898 + $0x10] sm:$0xff]
      %v4097 = vld [vmem:[%s3898 + $0x18] sm:$0xff]
      %v4099 = vsel %vm3793, %v4094, 0
      %v4102 = vsel %vm3793, %v4095, 0
      %v4105 = vsel %vm3793, %v4096, 0
      %v4108 = vsel %vm3793, %v4097, 0
      %vm4110 = vcmask 1043456
      %v4112 = vsel %vm4110, %v4071, 0
      %4114 = vmatprep.subr.bf16.mxu0 0
      %4115 = vmatpush1.bf16.msra.mxu0 %v4112
      %4116 = vmatprep.subr.bf16.mxu0 0
      %4117 = vmatpush1.bf16.msra.mxu0 0
      %4118 = vmatprep.subr.bf16.mxu0 0
      %4119 = vmatpush1.bf16.msra.mxu0 0
      %4120 = vmatprep.subr.bf16.mxu0 0
      %4121 = vmatpush1.bf16.msra.mxu0 0
      %4122 = vmatprep.subr.bf16.mxu0 0
      %4123 = vmatpush1.bf16.msra.mxu0 0
      %4124 = vmatprep.subr.bf16.mxu0 0
      %4125 = vmatpush1.bf16.msra.mxu0 0
      %4126 = vmatprep.subr.bf16.mxu0 0
      %4127 = vmatpush1.bf16.msra.mxu0 0
      %4128 = vmatprep.subr.bf16.mxu0 0
      %4129 = vmatpush1.bf16.msra.mxu0 0
      %4130 = vmatprep.subr.bf16.mxu0 0
      %4131 = vmatpush1.bf16.msra.mxu0 0
      %4132 = vmatprep.subr.bf16.mxu0 0
      %4133 = vmatpush1.bf16.msra.mxu0 0
      %4134 = vmatprep.subr.bf16.mxu0 0
      %4135 = vmatpush1.bf16.msra.mxu0 0
      %4136 = vmatprep.subr.bf16.mxu0 0
      %4137 = vmatpush1.bf16.msra.mxu0 0
      %4138 = vmatprep.subr.bf16.mxu0 0
      %4139 = vmatpush1.bf16.msra.mxu0 0
      %4140 = vmatprep.subr.bf16.mxu0 0
      %4141 = vmatpush1.bf16.msra.mxu0 0
      %4142 = vmatprep.subr.bf16.mxu0 0
      %4143 = vmatpush1.bf16.msra.mxu0 0
      %4144 = vmatprep.subr.bf16.mxu0 0
      %4145 = vmatpush1.bf16.msra.mxu0 0
      %4146 = vmatprep.mubr.bf16.mxu0 0
      %4147 = vmatmul.mubr.bf16.gmra.mrb[0].mxu0 %v4099
      %v4148 = vpop.f32.mrb[0].mxu0
      %v4149 = vadd.f32 0.0, %v4148
      %v4150 = vpop.f32.mrb[0].mxu0
      %v4151 = vpop.f32.mrb[0].mxu0
      %v4152 = vadd.f32 0.0, %v4151
      %v4153 = vpop.f32.mrb[0].mxu0
      %4154 = vmatprep.mubr.bf16.mxu0 0
      %4155 = vmatmul.mubr.bf16.gmra.mrb[0].mxu0 %v4102
      %v4156 = vpop.f32.mrb[0].mxu0
      %v4157 = vadd.f32 0.0, %v4156
      %v4158 = vpop.f32.mrb[0].mxu0
      %v4159 = vpop.f32.mrb[0].mxu0
      %v4160 = vadd.f32 0.0, %v4159
      %v4161 = vpop.f32.mrb[0].mxu0
      %4162 = vmatprep.mubr.bf16.mxu0 0
      %4163 = vmatmul.mubr.bf16.gmra.mrb[0].mxu0 %v4105
      %v4164 = vpop.f32.mrb[0].mxu0
      %v4165 = vadd.f32 0.0, %v4164
      %v4166 = vpop.f32.mrb[0].mxu0
      %v4167 = vpop.f32.mrb[0].mxu0
      %v4168 = vadd.f32 0.0, %v4167
      %v4169 = vpop.f32.mrb[0].mxu0
      %4170 = vmatprep.mubr.bf16.mxu0 0
      %4171 = vmatmul.mubr.bf16.gmra.mrb[0].mxu0 %v4108
      %v4172 = vpop.f32.mrb[0].mxu0
      %v4173 = vadd.f32 0.0, %v4172
      %v4174 = vpop.f32.mrb[0].mxu0
      %v4175 = vpop.f32.mrb[0].mxu0
      %v4176 = vadd.f32 0.0, %v4175
      %v4177 = vpop.f32.mrb[0].mxu0
      %4178 = vdwg.mxu0
      %v4180 = vsel %vm3793, %v4090, 0
      %v4183 = vsel %vm3793, %v4091, 0
      %v4186 = vsel %vm3793, %v4092, 0
      %v4189 = vsel %vm3793, %v4093, 0
      %v4192 = vsel %vm4110, %v4062, 0
      %4194 = vmatprep.subr.bf16.mxu0 0
      %4195 = vmatpush1.bf16.msra.mxu0 %v4192
      %4196 = vmatprep.subr.bf16.mxu0 0
      %4197 = vmatpush1.bf16.msra.mxu0 0
      %4198 = vmatprep.subr.bf16.mxu0 0
      %4199 = vmatpush1.bf16.msra.mxu0 0
      %4200 = vmatprep.subr.bf16.mxu0 0
      %4201 = vmatpush1.bf16.msra.mxu0 0
      %4202 = vmatprep.subr.bf16.mxu0 0
      %4203 = vmatpush1.bf16.msra.mxu0 0
      %4204 = vmatprep.subr.bf16.mxu0 0
      %4205 = vmatpush1.bf16.msra.mxu0 0
      %4206 = vmatprep.subr.bf16.mxu0 0
      %4207 = vmatpush1.bf16.msra.mxu0 0
      %4208 = vmatprep.subr.bf16.mxu0 0
      %4209 = vmatpush1.bf16.msra.mxu0 0
      %4210 = vmatprep.subr.bf16.mxu0 0
      %4211 = vmatpush1.bf16.msra.mxu0 0
      %4212 = vmatprep.subr.bf16.mxu0 0
      %4213 = vmatpush1.bf16.msra.mxu0 0
      %4214 = vmatprep.subr.bf16.mxu0 0
      %4215 = vmatpush1.bf16.msra.mxu0 0
      %4216 = vmatprep.subr.bf16.mxu0 0
      %4217 = vmatpush1.bf16.msra.mxu0 0
      %4218 = vmatprep.subr.bf16.mxu0 0
      %4219 = vmatpush1.bf16.msra.mxu0 0
      %4220 = vmatprep.subr.bf16.mxu0 0
      %4221 = vmatpush1.bf16.msra.mxu0 0
      %4222 = vmatprep.subr.bf16.mxu0 0
      %4223 = vmatpush1.bf16.msra.mxu0 0
      %4224 = vmatprep.subr.bf16.mxu0 0
      %4225 = vmatpush1.bf16.msra.mxu0 0
      %4226 = vmatprep.mubr.bf16.mxu0 0
      %4227 = vmatmul.mubr.bf16.gmra.mrb[0].mxu0 %v4180
      %v4228 = vpop.f32.mrb[0].mxu0
      %v4229 = vadd.f32 %v4149, %v4228
      %v4230 = vpop.f32.mrb[0].mxu0
      %v4231 = vpop.f32.mrb[0].mxu0
      %v4232 = vadd.f32 %v4152, %v4231
      %v4233 = vpop.f32.mrb[0].mxu0
      %4234 = vmatprep.mubr.bf16.mxu0 0
      %4235 = vmatmul.mubr.bf16.gmra.mrb[0].mxu0 %v4183
      %v4236 = vpop.f32.mrb[0].mxu0
      %v4237 = vadd.f32 %v4157, %v4236
      %v4238 = vpop.f32.mrb[0].mxu0
      %v4239 = vpop.f32.mrb[0].mxu0
      %v4240 = vadd.f32 %v4160, %v4239
      %v4241 = vpop.f32.mrb[0].mxu0
      %4242 = vmatprep.mubr.bf16.mxu0 0
      %4243 = vmatmul.mubr.bf16.gmra.mrb[0].mxu0 %v4186
      %v4244 = vpop.f32.mrb[0].mxu0
      %v4245 = vadd.f32 %v4165, %v4244
      %v4246 = vpop.f32.mrb[0].mxu0
      %v4247 = vpop.f32.mrb[0].mxu0
      %v4248 = vadd.f32 %v4168, %v4247
      %v4249 = vpop.f32.mrb[0].mxu0
      %4250 = vmatprep.mubr.bf16.mxu0 0
      %4251 = vmatmul.mubr.bf16.gmra.mrb[0].mxu0 %v4189
      %v4252 = vpop.f32.mrb[0].mxu0
      %v4253 = vadd.f32 %v4173, %v4252
      %v4254 = vpop.f32.mrb[0].mxu0
      %v4255 = vpop.f32.mrb[0].mxu0
      %v4256 = vadd.f32 %v4176, %v4255
      %v4257 = vpop.f32.mrb[0].mxu0
      %4258 = vdwg.mxu0
      %v4259 = vld [vmem:[%s3907] sm:$0xff]
      %v4260 = vld [vmem:[%s3907 + $0x8] sm:$0xff]
      %v4261 = vld [vmem:[%s3907 + $0x10] sm:$0xff]
      %v4262 = vld [vmem:[%s3907 + $0x18] sm:$0xff]
      %v4264 = vsel %vm3793, %v4259, 0
      %v4267 = vsel %vm3793, %v4260, 0
      %v4270 = vsel %vm3793, %v4261, 0
      %v4273 = vsel %vm3793, %v4262, 0
      %v4276 = vsel %vm4110, %v4080, 0
      %4278 = vmatprep.subr.bf16.mxu0 0
      %4279 = vmatpush1.bf16.msra.mxu0 %v4276
      %4280 = vmatprep.subr.bf16.mxu0 0
      %4281 = vmatpush1.bf16.msra.mxu0 0
      %4282 = vmatprep.subr.bf16.mxu0 0
      %4283 = vmatpush1.bf16.msra.mxu0 0
      %4284 = vmatprep.subr.bf16.mxu0 0
      %4285 = vmatpush1.bf16.msra.mxu0 0
      %4286 = vmatprep.subr.bf16.mxu0 0
      %4287 = vmatpush1.bf16.msra.mxu0 0
      %4288 = vmatprep.subr.bf16.mxu0 0
      %4289 = vmatpush1.bf16.msra.mxu0 0
      %4290 = vmatprep.subr.bf16.mxu0 0
      %4291 = vmatpush1.bf16.msra.mxu0 0
      %4292 = vmatprep.subr.bf16.mxu0 0
      %4293 = vmatpush1.bf16.msra.mxu0 0
      %4294 = vmatprep.subr.bf16.mxu0 0
      %4295 = vmatpush1.bf16.msra.mxu0 0
      %4296 = vmatprep.subr.bf16.mxu0 0
      %4297 = vmatpush1.bf16.msra.mxu0 0
      %4298 = vmatprep.subr.bf16.mxu0 0
      %4299 = vmatpush1.bf16.msra.mxu0 0
      %4300 = vmatprep.subr.bf16.mxu0 0
      %4301 = vmatpush1.bf16.msra.mxu0 0
      %4302 = vmatprep.subr.bf16.mxu0 0
      %4303 = vmatpush1.bf16.msra.mxu0 0
      %4304 = vmatprep.subr.bf16.mxu0 0
      %4305 = vmatpush1.bf16.msra.mxu0 0
      %4306 = vmatprep.subr.bf16.mxu0 0
      %4307 = vmatpush1.bf16.msra.mxu0 0
      %4308 = vmatprep.subr.bf16.mxu0 0
      %4309 = vmatpush1.bf16.msra.mxu0 0
      %4310 = vmatprep.mubr.bf16.mxu0 0
      %4311 = vmatmul.mubr.bf16.gmra.mrb[0].mxu0 %v4264
      %v4312 = vpop.f32.mrb[0].mxu0
      %v4313 = vadd.f32 0.0, %v4312
      %v4314 = vpop.f32.mrb[0].mxu0
      %v4315 = vpop.f32.mrb[0].mxu0
      %v4316 = vadd.f32 0.0, %v4315
      %v4317 = vpop.f32.mrb[0].mxu0
      %4318 = vmatprep.mubr.bf16.mxu0 0
      %4319 = vmatmul.mubr.bf16.gmra.mrb[0].mxu0 %v4267
      %v4320 = vpop.f32.mrb[0].mxu0
      %v4321 = vadd.f32 0.0, %v4320
      %v4322 = vpop.f32.mrb[0].mxu0
      %v4323 = vpop.f32.mrb[0].mxu0
      %v4324 = vadd.f32 0.0, %v4323
      %v4325 = vpop.f32.mrb[0].mxu0
      %4326 = vmatprep.mubr.bf16.mxu0 0
      %4327 = vmatmul.mubr.bf16.gmra.mrb[0].mxu0 %v4270
      %v4328 = vpop.f32.mrb[0].mxu0
      %v4329 = vadd.f32 0.0, %v4328
      %v4330 = vpop.f32.mrb[0].mxu0
      %v4331 = vpop.f32.mrb[0].mxu0
      %v4332 = vadd.f32 0.0, %v4331
      %v4333 = vpop.f32.mrb[0].mxu0
      %4334 = vmatprep.mubr.bf16.mxu0 0
      %4335 = vmatmul.mubr.bf16.gmra.mrb[0].mxu0 %v4273
      %v4336 = vpop.f32.mrb[0].mxu0
      %v4337 = vadd.f32 0.0, %v4336
      %v4338 = vpop.f32.mrb[0].mxu0
      %v4339 = vpop.f32.mrb[0].mxu0
      %v4340 = vadd.f32 0.0, %v4339
      %v4341 = vpop.f32.mrb[0].mxu0
      %4342 = vdwg.mxu0
      %v4343 = vadd.f32 %v4229, %v4313
      %v4344 = vadd.f32 %v4232, %v4316
      %v4345 = vadd.f32 %v4237, %v4321
      %v4346 = vadd.f32 %v4240, %v4324
      %v4347 = vadd.f32 %v4245, %v4329
      %v4348 = vadd.f32 %v4248, %v4332
      %v4349 = vadd.f32 %v4253, %v4337
      %v4350 = vadd.f32 %v4256, %v4340
      %v4351 = vld [vmem:[%s3916] sm:$0xff]
      %v4352 = vld [vmem:[%s3916 + $0x8] sm:$0xff]
      %v4353 = vld [vmem:[%s3916 + $0x10] sm:$0xff]
      %v4354 = vld [vmem:[%s3916 + $0x18] sm:$0xff]
      %v4356 = vsel %vm3793, %v4351, 0
      %v4359 = vsel %vm3793, %v4352, 0
      %v4362 = vsel %vm3793, %v4353, 0
      %v4365 = vsel %vm3793, %v4354, 0
      %v4368 = vsel %vm4110, %v4089, 0
      %4370 = vmatprep.subr.bf16.mxu0 0
      %4371 = vmatpush1.bf16.msra.mxu0 %v4368
      %4372 = vmatprep.subr.bf16.mxu0 0
      %4373 = vmatpush1.bf16.msra.mxu0 0
      %4374 = vmatprep.subr.bf16.mxu0 0
      %4375 = vmatpush1.bf16.msra.mxu0 0
      %4376 = vmatprep.subr.bf16.mxu0 0
      %4377 = vmatpush1.bf16.msra.mxu0 0
      %4378 = vmatprep.subr.bf16.mxu0 0
      %4379 = vmatpush1.bf16.msra.mxu0 0
      %4380 = vmatprep.subr.bf16.mxu0 0
      %4381 = vmatpush1.bf16.msra.mxu0 0
      %4382 = vmatprep.subr.bf16.mxu0 0
      %4383 = vmatpush1.bf16.msra.mxu0 0
      %4384 = vmatprep.subr.bf16.mxu0 0
      %4385 = vmatpush1.bf16.msra.mxu0 0
      %4386 = vmatprep.subr.bf16.mxu0 0
      %4387 = vmatpush1.bf16.msra.mxu0 0
      %4388 = vmatprep.subr.bf16.mxu0 0
      %4389 = vmatpush1.bf16.msra.mxu0 0
      %4390 = vmatprep.subr.bf16.mxu0 0
      %4391 = vmatpush1.bf16.msra.mxu0 0
      %4392 = vmatprep.subr.bf16.mxu0 0
      %4393 = vmatpush1.bf16.msra.mxu0 0
      %4394 = vmatprep.subr.bf16.mxu0 0
      %4395 = vmatpush1.bf16.msra.mxu0 0
      %4396 = vmatprep.subr.bf16.mxu0 0
      %4397 = vmatpush1.bf16.msra.mxu0 0
      %4398 = vmatprep.subr.bf16.mxu0 0
      %4399 = vmatpush1.bf16.msra.mxu0 0
      %4400 = vmatprep.subr.bf16.mxu0 0
      %4401 = vmatpush1.bf16.msra.mxu0 0
      %4402 = vmatprep.mubr.bf16.mxu0 0
      %4403 = vmatmul.mubr.bf16.gmra.mrb[0].mxu0 %v4356
      %v4404 = vpop.f32.mrb[0].mxu0
      %v4405 = vadd.f32 0.0, %v4404
      %v4406 = vpop.f32.mrb[0].mxu0
      %v4407 = vpop.f32.mrb[0].mxu0
      %v4408 = vadd.f32 0.0, %v4407
      %v4409 = vpop.f32.mrb[0].mxu0
      %4410 = vmatprep.mubr.bf16.mxu0 0
      %4411 = vmatmul.mubr.bf16.gmra.mrb[0].mxu0 %v4359
      %v4412 = vpop.f32.mrb[0].mxu0
      %v4413 = vadd.f32 0.0, %v4412
      %v4414 = vpop.f32.mrb[0].mxu0
      %v4415 = vpop.f32.mrb[0].mxu0
      %v4416 = vadd.f32 0.0, %v4415
      %v4417 = vpop.f32.mrb[0].mxu0
      %4418 = vmatprep.mubr.bf16.mxu0 0
      %4419 = vmatmul.mubr.bf16.gmra.mrb[0].mxu0 %v4362
      %v4420 = vpop.f32.mrb[0].mxu0
      %v4421 = vadd.f32 0.0, %v4420
      %v4422 = vpop.f32.mrb[0].mxu0
      %v4423 = vpop.f32.mrb[0].mxu0
      %v4424 = vadd.f32 0.0, %v4423
      %v4425 = vpop.f32.mrb[0].mxu0
      %4426 = vmatprep.mubr.bf16.mxu0 0
      %4427 = vmatmul.mubr.bf16.gmra.mrb[0].mxu0 %v4365
      %v4428 = vpop.f32.mrb[0].mxu0
      %v4429 = vadd.f32 0.0, %v4428
      %v4430 = vpop.f32.mrb[0].mxu0
      %v4431 = vpop.f32.mrb[0].mxu0
      %v4432 = vadd.f32 0.0, %v4431
      %v4433 = vpop.f32.mrb[0].mxu0
      %4434 = vdwg.mxu0
      %v4435 = vadd.f32 %v4343, %v4405
      %v4436 = vadd.f32 %v4344, %v4408
      %v4437 = vadd.f32 %v4345, %v4413
      %v4438 = vadd.f32 %v4346, %v4416
      %v4439 = vadd.f32 %v4347, %v4421
      %v4440 = vadd.f32 %v4348, %v4424
      %v4441 = vadd.f32 %v4349, %v4429
      %v4442 = vadd.f32 %v4350, %v4432
      %v4443 = vld [vmem:[#allocation4] sm:$0x3]
      %v4444 = vsel %vm846, %v4435, 0.0
      %v4445 = vsel %vm846, %v4436, 0.0
      %v4446 = vadd.f32 %v4444, %v4445
      %v4447 = vsel %vm846, %v4437, 0.0
      %v4448 = vadd.f32 %v4446, %v4447
      %v4449 = vsel %vm846, %v4438, 0.0
      %v4450 = vadd.f32 %v4448, %v4449
      %v4451 = vsel %vm846, %v4439, 0.0
      %v4452 = vadd.f32 %v4450, %v4451
      %v4453 = vsel %vm846, %v4440, 0.0
      %v4454 = vadd.f32 %v4452, %v4453
      %v4455 = vsel %vm846, %v4441, 0.0
      %v4456 = vadd.f32 %v4454, %v4455
      %v4457 = vsel %vm846, %v4442, 0.0
      %v4458 = vadd.f32 %v4456, %v4457
      %v4459 = vrot.slane %v4458, 4
      %v4460 = vadd.f32 %v4458, %v4459
      %v4461 = vrot.slane %v4460, 2
      %v4462 = vadd.f32 %v4460, %v4461
      %v4463 = vrot.slane %v4462, 1
      %v4464 = vadd.f32 %v4462, %v4463
      %v4465 = vmul.f32 %v4435, %v4435
      %v4466 = vmul.f32 %v4436, %v4436
      %v4467 = vmul.f32 %v4437, %v4437
      %v4468 = vmul.f32 %v4438, %v4438
      %v4469 = vmul.f32 %v4439, %v4439
      %v4470 = vmul.f32 %v4440, %v4440
      %v4471 = vmul.f32 %v4441, %v4441
      %v4472 = vmul.f32 %v4442, %v4442
      %v4473 = vsel %vm846, %v4465, 0.0
      %v4474 = vsel %vm846, %v4466, 0.0
      %v4475 = vadd.f32 %v4473, %v4474
      %v4476 = vsel %vm846, %v4467, 0.0
      %v4477 = vadd.f32 %v4475, %v4476
      %v4478 = vsel %vm846, %v4468, 0.0
      %v4479 = vadd.f32 %v4477, %v4478
      %v4480 = vsel %vm846, %v4469, 0.0
      %v4481 = vadd.f32 %v4479, %v4480
      %v4482 = vsel %vm846, %v4470, 0.0
      %v4483 = vadd.f32 %v4481, %v4482
      %v4484 = vsel %vm846, %v4471, 0.0
      %v4485 = vadd.f32 %v4483, %v4484
      %v4486 = vsel %vm846, %v4472, 0.0
      %v4487 = vadd.f32 %v4485, %v4486
      %v4488 = vrot.slane %v4487, 4
      %v4489 = vadd.f32 %v4487, %v4488
      %v4490 = vrot.slane %v4489, 2
      %v4491 = vadd.f32 %v4489, %v4490
      %v4492 = vrot.slane %v4491, 1
      %v4493 = vadd.f32 %v4491, %v4492
      %v4494 = vsel %vm3878, %v4464, %v4493
      %v4495 = vadd.f32 %v4443, %v4494
      %4496 = vst.msk [vmem:[#allocation4] sm:$0x3] %vm266, %v4495
      %4497 = vxpose.xlu0.b32.start [1/16] %v4435, 128
      %4498 = vxpose.xlu0.b32.cont [2/16] %v4436, 128
      %4499 = vxpose.xlu0.b32.cont [3/16] %v4437, 128
      %4500 = vxpose.xlu0.b32.cont [4/16] %v4438, 128
      %4501 = vxpose.xlu0.b32.cont [5/16] %v4439, 128
      %4502 = vxpose.xlu0.b32.cont [6/16] %v4440, 128
      %4503 = vxpose.xlu0.b32.cont [7/16] %v4441, 128
      %4504 = vxpose.xlu0.b32.cont [8/16] %v4442, 128
      %4505 = vxpose.xlu0.b32.cont [9/16] 0.0, 128
      %4506 = vxpose.xlu0.b32.cont [10/16] 0.0, 128
      %4507 = vxpose.xlu0.b32.cont [11/16] 0.0, 128
      %4508 = vxpose.xlu0.b32.cont [12/16] 0.0, 128
      %4509 = vxpose.xlu0.b32.cont [13/16] 0.0, 128
      %4510 = vxpose.xlu0.b32.cont [14/16] 0.0, 128
      %4511 = vxpose.xlu0.b32.cont [15/16] 0.0, 128
      %4512 = vxpose.xlu0.b32.end [16/16] 0.0, 128
      %v4513 = vpop.trf.xlu0
      %v4514 = vpop.trf.xlu0
      %v4515 = vpop.trf.xlu0
      %v4516 = vpop.trf.xlu0
      %v4517 = vpop.trf.xlu0
      %v4518 = vpop.trf.xlu0
      %v4519 = vpop.trf.xlu0
      %v4520 = vpop.trf.xlu0
      %v4521 = vpop.trf.xlu0
      %v4522 = vpop.trf.xlu0
      %v4523 = vpop.trf.xlu0
      %v4524 = vpop.trf.xlu0
      %v4525 = vpop.trf.xlu0
      %v4526 = vpop.trf.xlu0
      %v4527 = vpop.trf.xlu0
      %v4528 = vpop.trf.xlu0
      %4529 = vst.msk [vmem:[%s258] sm:$0xff] %vm859, %v4513
      %4530 = vst.msk [vmem:[%s258 + $0x8] sm:$0xff] %vm859, %v4514
      %4531 = vst.msk [vmem:[%s258 + $0x10] sm:$0xff] %vm859, %v4515
      %4532 = vst.msk [vmem:[%s258 + $0x18] sm:$0xff] %vm859, %v4516
      %v4533 = vld [vmem:[#allocation4] sm:$0x3]
      %4534 = vst.msk [vmem:[%s262] sm:$0x3] %vm266, %v4533
      %p4535 = scmp.lt.s32.totalorder %s18, 1
      %s4536 = scalar_select %p4535, %s18, 1
      %s4537 = smul.addr %s4536, 4
      %s4538 = smul.addr %s4537, 8
      %s4539 = scalar_lea.vmem %s5, %s4538
      %p4540 = scmp.lt.s32.totalorder %s18, 1
      %s4541 = scalar_select %p4540, %s18, 1
      %s4542 = smul.addr %s4541, 2
      %s4543 = scalar_lea.vmem %s6, %s4542
      // Predicated region
      $region41: #{pdam_forward.2} parent=39 // pred_check
        %p4544 = pneg %p146
      $region42: #{pdam_forward.2} parent=39 // pred_check_branch
        %4546 = sbr.rel (%p4544) target = $region44
      $region43: #{pdam_forward.2} parent=39 // pred_region
        _
      $region44: #{pdam_forward.2} parent=39 // pred_fallthru
        _
      // Predicated region
      $region45: #{pdam_forward.2} parent=39 // pred_check
        %p4547 = pneg %p172
      $region46: #{pdam_forward.2} parent=39 // pred_check_branch
        %4549 = sbr.rel (%p4547) target = $region48
      $region47: #{pdam_forward.2} parent=39 // pred_region
        _
      $region48: #{pdam_forward.2} parent=39 // pred_fallthru
        _
    $region40: #{pdam_forward.2} parent=5 // pred_fallthru
      _
    %p4550 = scmp.le.s32.totalorder 2, %s13
    // Predicated region
    $region49: #{pdam_forward.2} parent=5 // pred_check
      %p4551 = pneg %p4550
    $region50: #{pdam_forward.2} parent=5 // pred_check_branch
      %4553 = sbr.rel (%p4551) target = $region52
    $region51: #{pdam_forward.2} parent=5 // pred_region
      %s4554 = ssub.s32 %s13, 2
      // Predicated region
      $region53: #{pdam_forward.2} parent=51 // pred_check
        %p4555 = pneg %p152
      $region54: #{pdam_forward.2} parent=51 // pred_check_branch
        %4557 = sbr.rel (%p4555) target = $region56
      $region55: #{pdam_forward.2} parent=51 // pred_region
        %p4558 = scmp.lt.s32.totalorder %s19, 1
        %s4559 = scalar_select %p4558, %s19, 1
        %s4560 = smul.addr %s4559, 4
        %s4561 = smul.addr %s4560, 8
        %s4562 = scalar_lea.vmem %s5, %s4561
      $region56: #{pdam_forward.2} parent=51 // pred_fallthru
        _
      // Predicated region
      $region57: #{pdam_forward.2} parent=51 // pred_check
        %p4563 = pneg %p178
      $region58: #{pdam_forward.2} parent=51 // pred_check_branch
        %4565 = sbr.rel (%p4563) target = $region60
      $region59: #{pdam_forward.2} parent=51 // pred_region
        %p4566 = scmp.lt.s32.totalorder %s19, 1
        %s4567 = scalar_select %p4566, %s19, 1
        %s4568 = smul.addr %s4567, 2
        %s4569 = scalar_lea.vmem %s6, %s4568
      $region60: #{pdam_forward.2} parent=51 // pred_fallthru
        _
    $region52: #{pdam_forward.2} parent=5 // pred_fallthru
      _
  $region6: #{pdam_forward.2} parent=0 // loop_footer
    %s17 = sadd.s32 1, %s13
  $region7: #{pdam_forward.2} parent=0 // loop_footer_branch
    %12 = sbr.rel target = $region3
  $region8: #{pdam_forward.2} parent=0 // loop_exit
    _

</llo_original>
